<compile_context>
chip_gen: v7x
topology: tpu7x:2x2x1
jax: 0.10.0
libtpu: 0.0.40
codegen_flags: <defaults>
</compile_context>

<pallas_src>
import functools
import math

import numpy as np
import jax
import jax.numpy as jnp
from jax.experimental import pallas as pl
from jax.experimental.pallas import tpu as pltpu

ARCSEC = math.pi / 180.0 / 3600.0          # radians per arcsecond


def _round_up(x, m):
    return ((x + m - 1) // m) * m


# ---------------------------------------------------------------------------
# One-time feature probes (keep the script runnable across Pallas versions).
# ---------------------------------------------------------------------------
@functools.lru_cache(maxsize=None)
def _single_buffer_supported():
    """Whether BlockSpec(pipeline_mode=pl.Buffered(1)) lowers on this build."""
    def k(x_ref, o_ref):
        o_ref[...] = x_ref[...] + 1.0
    try:
        x = jnp.zeros((8, 128), jnp.float32)
        jax.block_until_ready(pl.pallas_call(
            k,
            out_shape=jax.ShapeDtypeStruct((8, 128), jnp.float32),
            grid=(2,),
            in_specs=[pl.BlockSpec((8, 128), lambda i: (0, 0),
                                   pipeline_mode=pl.Buffered(1))],
            out_specs=pl.BlockSpec((8, 128), lambda i: (0, 0)),
        )(x))
        return True
    except Exception:
        return False


@functools.lru_cache(maxsize=None)
def _dft_precision():
    """Prefer HIGH (≈3 bf16 MXU passes) over HIGHEST (≈6) for the f32 DFT matmuls."""
    for prec in (jax.lax.Precision.HIGH, jax.lax.Precision.HIGHEST):
        def k(a_ref, b_ref, o_ref, prec=prec):
            o_ref[...] = jnp.dot(a_ref[...], b_ref[...],
                                 preferred_element_type=jnp.float32, precision=prec)
        try:
            a = jnp.ones((128, 128), jnp.float32)
            jax.block_until_ready(pl.pallas_call(
                k, out_shape=jax.ShapeDtypeStruct((128, 128), jnp.float32))(a, a))
            return prec
        except Exception:
            continue
    return jax.lax.Precision.DEFAULT


@functools.lru_cache(maxsize=None)
def _vmem_budget_bytes():
    cap = 64 * 1024 * 1024          # conservative fallback (v7x per-core VMEM)
    try:
        info = pltpu.get_tpu_info()
        cap = int(getattr(info, "vmem_capacity_bytes", cap) or cap)
    except Exception:
        pass
    return int(cap * 0.85)


# ---------------------------------------------------------------------------
# VMEM footprint estimates (drive vmem_limit_bytes and channel_block choice).
# ---------------------------------------------------------------------------
def _vis_vmem_bytes(cb, npix, Wh, single_buffered_consts):
    f32 = 4
    nconst = 1 if single_buffered_consts else 2
    const_b = nconst * f32 * (3 * npix * npix + 2 * npix * Wh)   # corr, Ar, Ai, BrT, BiT
    in_b = 2 * f32 * cb * npix * npix                            # base cube, double-buffered
    out_b = 2 * 2 * f32 * cb * npix * Wh                         # two outputs, double-buffered
    tmp_b = f32 * (3 * npix * npix + 4 * npix * Wh)              # softplus/img + tr/ti headroom
    return const_b + in_b + out_b + tmp_b


def _interp_vmem_bytes(tk, tn):
    return (2 * 2 * 2 * tk * tn      # two bf16 C tiles, double-buffered
            + 2 * 2 * 4 * tk         # vr/vi tiles
            + 2 * 2 * 4 * tn         # resident outputs
            + (1 << 20))             # headroom


def _pick_channel_block(nchan, npix, Wh, budget, single_buf):
    cands = [cb for cb in range(1, min(nchan, 4) + 1)
             if nchan % cb == 0
             and int(1.3 * _vis_vmem_bytes(cb, npix, Wh, single_buf)) <= budget]
    if not cands:
        return 1
    # Prefer an even number (>=2) of grid steps so v7x's two TensorCores split the
    # "parallel" channel axis evenly; among those, the largest batch.
    even = [cb for cb in cands if (nchan // cb) >= 2 and (nchan // cb) % 2 == 0]
    return max(even) if even else max(cands)


# ---------------------------------------------------------------------------
# Kernel A: softplus pixel mapping + (pre-scaled) corrfun + 2D real DFT.
# Processes a batch of `cb` channels per grid step; channel loop is a
# fori_loop(unroll=True) so the tr/ti temporaries stay bounded per iteration.
# ---------------------------------------------------------------------------
def _make_vis_kernel(prec):
    def kernel(base_ref, corr_ref, ar_ref, ai_ref, brT_ref, biT_ref,
               vre_ref, vim_ref):
        corr = corr_ref[...]          # (npix, npix), already includes 1/arcsec^2
        ar = ar_ref[...]              # (npix, npix)   Re of column DFT
        ai = ai_ref[...]              # (npix, npix)   Im of column DFT
        brT = brT_ref[...]            # (npix, Wh)     cell^2 * Re(row DFT)^T
        biT = biT_ref[...]            # (npix, Wh)     cell^2 * Im(row DFT)^T

        def one_channel(c, carry):
            x = base_ref[c]                           # (npix, npix)
            # numerically-stable softplus == torch.nn.Softplus() (beta=1)
            sp = jnp.maximum(x, 0.0) + jnp.log1p(jnp.exp(-jnp.abs(x)))
            img = sp * corr
            # rfft2 via matmuls, narrow (Wh) side first:  vis = A @ (img @ B^T)
            tr = jnp.dot(img, brT, preferred_element_type=jnp.float32, precision=prec)
            ti = jnp.dot(img, biT, preferred_element_type=jnp.float32, precision=prec)
            vre_ref[c] = (jnp.dot(ar, tr, preferred_element_type=jnp.float32, precision=prec)
                          - jnp.dot(ai, ti, preferred_element_type=jnp.float32, precision=prec))
            vim_ref[c] = (jnp.dot(ar, ti, preferred_element_type=jnp.float32, precision=prec)
                          + jnp.dot(ai, tr, preferred_element_type=jnp.float32, precision=prec))
            return carry

        jax.lax.fori_loop(0, base_ref.shape[0], one_channel, 0, unroll=True)
    return kernel


# ---------------------------------------------------------------------------
# Kernel B: tiled per-channel (u,v) interpolation,  re[c] = vec(vis_re[c]) @ C_re[c]
# C is stored transposed (F_pad, nvis_pad) in bf16 and streamed in (tk, tn) tiles;
# the reduction over F (last grid axis) accumulates into the resident output block.
# ---------------------------------------------------------------------------
def _interp_kernel(vr_ref, vi_ref, cre_ref, cim_ref, re_ref, im_ref):
    @pl.when(pl.program_id(2) == 0)
    def _():
        re_ref[...] = jnp.zeros_like(re_ref)
        im_ref[...] = jnp.zeros_like(im_ref)
    # Cast the tiny (1, tk) vis vector to bf16 (NOT the big (tk, tn) C tile to f32):
    # single-pass bf16 MXU matmul with f32 accumulation, no large VMEM temp.
    vr = vr_ref[0].astype(jnp.bfloat16)
    vi = vi_ref[0].astype(jnp.bfloat16)
    re_ref[...] += jnp.dot(vr, cre_ref[0], preferred_element_type=jnp.float32)[None]
    im_ref[...] += jnp.dot(vi, cim_ref[0], preferred_element_type=jnp.float32)[None]


# ---------------------------------------------------------------------------
# One-time precomputation (hoisted out of the per-call hot path).
# ---------------------------------------------------------------------------
def precompute_image_operands(npix, cell_size_arcsec, corrfun):
    """DFT matrices + scaled corrfun.  Constants: build once, reuse every forward."""
    Wh = npix // 2 + 1
    cell = cell_size_arcsec * ARCSEC
    cell2 = cell * cell
    inv_arcsec2 = 1.0 / ARCSEC ** 2
    k = np.arange(npix)
    ang_a = 2.0 * np.pi * np.outer(k, k) / npix
    Ar = jnp.asarray(np.cos(ang_a), jnp.float32)                      # (npix, npix)
    Ai = jnp.asarray(-np.sin(ang_a), jnp.float32)
    l = np.arange(Wh)
    ang_b = 2.0 * np.pi * np.outer(l, k) / npix                       # (Wh, npix)
    BrT = jnp.asarray((cell2 * np.cos(ang_b)).T, jnp.float32)         # (npix, Wh)
    BiT = jnp.asarray((cell2 * (-np.sin(ang_b))).T, jnp.float32)
    corr = jnp.asarray(corrfun, jnp.float32) * inv_arcsec2            # fold 1/arcsec^2 in
    return dict(npix=npix, Wh=Wh, Ar=Ar, Ai=Ai, BrT=BrT, BiT=BiT, corr=corr)


def precache_interpolation(C_re, C_im, npix, *, interp_tk=1024, interp_tn=2048):
    """Mirror of ImageCube.precache_interpolation: prepare the (dense stand-in)
    interpolation matrices ONCE.  C_re/C_im: (nchan, F, nvis), F = npix*(npix//2+1),
    rows indexed by the flattened rfft2 plane (transposed vs the torch sparse mats).

    bf16 cast happens BEFORE padding (2-byte pad writes); no per-row Wh padding —
    only the flat F axis and nvis are padded up to the requested tile sizes.
    """
    nchan, F, nvis = C_re.shape
    Wh = npix // 2 + 1
    assert F == npix * Wh, "C row count must equal npix*(npix//2+1)"
    tk = min(interp_tk, _round_up(F, 128))        # reduction tile (multiple of 128)
    tn = min(interp_tn, _round_up(nvis, 128))     # output tile    (multiple of 128)
    F_pad = _round_up(F, tk)
    nvis_pad = _round_up(nvis, tn)

    def prep(C):
        # TODO(synk): quantize C to fp8 (v7x) / int8 (v5e,v6e) with per-tile scales to
        # halve the HBM stream again if the interpolation accuracy budget allows.
        Cb = jnp.asarray(C, jnp.bfloat16)
        return jnp.pad(Cb, ((0, 0), (0, F_pad - F), (0, nvis_pad - nvis)))

    return dict(C_re=prep(C_re), C_im=prep(C_im), tk=tk, tn=tn,
                F=F, F_pad=F_pad, nvis=nvis, nvis_pad=nvis_pad)


# ---------------------------------------------------------------------------
# Forward (hot path)
# ---------------------------------------------------------------------------
def image_cube_forward(base_cube, img_ops, interp, *, channel_block=None):
    nchan, npix, _ = base_cube.shape
    assert img_ops["npix"] == npix
    Wh = img_ops["Wh"]
    F, F_pad = interp["F"], interp["F_pad"]
    nvis, nvis_pad = interp["nvis"], interp["nvis_pad"]
    tk, tn = interp["tk"], interp["tn"]

    single_buf = _single_buffer_supported()
    const_kwargs = {"pipeline_mode": pl.Buffered(1)} if single_buf else {}
    budget = _vmem_budget_bytes()

    if channel_block is None:
        cb = _pick_channel_block(nchan, npix, Wh, budget, single_buf)
    else:
        cb = channel_block
    assert nchan % cb == 0, "channel_block must divide nchan"

    vmem_a = min(max(int(1.3 * _vis_vmem_bytes(cb, npix, Wh, single_buf)), 32 << 20),
                 budget)

    # TODO(synk): for npix >= 2048 on v7x (64 MiB VMEM) the Ar/Ai operands should be
    # row-tiled (extra grid axis accumulating output row blocks) — not needed here.
    vis_re, vis_im = pl.pallas_call(
        _make_vis_kernel(_dft_precision()),
        out_shape=(jax.ShapeDtypeStruct((nchan, npix, Wh), jnp.float32),
                   jax.ShapeDtypeStruct((nchan, npix, Wh), jnp.float32)),
        grid_spec=pltpu.PrefetchScalarGridSpec(
            num_scalar_prefetch=0,
            grid=(nchan // cb,),
            in_specs=[
                pl.BlockSpec((cb, npix, npix), lambda c: (c, 0, 0)),          # base cube batch
                pl.BlockSpec((npix, npix), lambda c: (0, 0), **const_kwargs),  # corrfun/arcsec^2
                pl.BlockSpec((npix, npix), lambda c: (0, 0), **const_kwargs),  # Ar
                pl.BlockSpec((npix, npix), lambda c: (0, 0), **const_kwargs),  # Ai
                pl.BlockSpec((npix, Wh), lambda c: (0, 0), **const_kwargs),    # cell^2 * Br^T
                pl.BlockSpec((npix, Wh), lambda c: (0, 0), **const_kwargs),    # cell^2 * Bi^T
            ],
            out_specs=[
                pl.BlockSpec((cb, npix, Wh), lambda c: (c, 0, 0)),
                pl.BlockSpec((cb, npix, Wh), lambda c: (c, 0, 0)),
            ],
        ),
        compiler_params=pltpu.CompilerParams(
            dimension_semantics=("parallel",),
            vmem_limit_bytes=vmem_a),
    )(base_cube.astype(jnp.float32), img_ops["corr"], img_ops["Ar"], img_ops["Ai"],
      img_ops["BrT"], img_ops["BiT"])

    # Glue: flatten the half-spectrum plane (contiguous reshape) and pad only the
    # flat F axis up to the reduction tile.  Small vs the streamed C bytes.
    # TODO(synk): a fully fused version would stream the C tiles inside the vis
    # kernel via pltpu.emit_pipeline and skip this small HBM round trip.
    vr = vis_re.reshape(nchan, 1, F)
    vi = vis_im.reshape(nchan, 1, F)
    if F_pad != F:
        pad = ((0, 0), (0, 0), (0, F_pad - F))
        vr = jnp.pad(vr, pad)
        vi = jnp.pad(vi, pad)

    vmem_b = min(max(int(1.3 * _interp_vmem_bytes(tk, tn)), 32 << 20), budget)

    # TODO(synk): the real C matrices are band-limited sparse; a scalar-prefetch
    # gather over per-vis-tile nonzero F-block lists would cut this kernel's HBM
    # traffic 10-100x at production sizes.
    re3, im3 = pl.pallas_call(
        _interp_kernel,
        out_shape=(jax.ShapeDtypeStruct((nchan, 1, nvis_pad), jnp.float32),
                   jax.ShapeDtypeStruct((nchan, 1, nvis_pad), jnp.float32)),
        grid_spec=pltpu.PrefetchScalarGridSpec(
            num_scalar_prefetch=0,
            grid=(nchan, nvis_pad // tn, F_pad // tk),       # reduction axis last
            in_specs=[
                pl.BlockSpec((1, 1, tk), lambda c, j, k: (c, 0, k)),
                pl.BlockSpec((1, 1, tk), lambda c, j, k: (c, 0, k)),
                pl.BlockSpec((1, tk, tn), lambda c, j, k: (c, k, j)),
                pl.BlockSpec((1, tk, tn), lambda c, j, k: (c, k, j)),
            ],
            out_specs=[
                pl.BlockSpec((1, 1, tn), lambda c, j, k: (c, 0, j)),
                pl.BlockSpec((1, 1, tn), lambda c, j, k: (c, 0, j)),
            ],
        ),
        compiler_params=pltpu.CompilerParams(
            dimension_semantics=("parallel", "parallel", "arbitrary"),
            vmem_limit_bytes=vmem_b),
    )(vr, vi, interp["C_re"], interp["C_im"])

    return re3[:, 0, :nvis], im3[:, 0, :nvis]        # (nchan, nvis) each


# ---------------------------------------------------------------------------
# Pure-JAX reference (same bf16-C storage rounding; f32 compute)
# ---------------------------------------------------------------------------
def _reference(base_cube, corrfun, C_re, C_im, cell_size_arcsec):
    nchan = base_cube.shape[0]
    cell_size = cell_size_arcsec * ARCSEC
    img = jax.nn.softplus(base_cube) * corrfun[None] / ARCSEC ** 2
    vis = (cell_size ** 2) * jnp.fft.rfft2(img)
    vr = jnp.real(vis).reshape(nchan, -1).astype(jnp.float32)
    vi = jnp.imag(vis).reshape(nchan, -1).astype(jnp.float32)
    cre = C_re.astype(jnp.bfloat16).astype(jnp.float32)   # same C storage rounding
    cim = C_im.astype(jnp.bfloat16).astype(jnp.float32)
    re = jnp.einsum("cf,cfv->cv", vr, cre, precision=jax.lax.Precision.HIGHEST)
    im = jnp.einsum("cf,cfv->cv", vi, cim, precision=jax.lax.Precision.HIGHEST)
    return re, im


if __name__ == "__main__":
    # Small shapes consistent with the module: nchan=4, npix=16 (even), nvis=100.
    nchan, npix, nvis = 4, 16, 100
    cell_size_arcsec = 0.01
    Wh = npix // 2 + 1
    F = npix * Wh

    # Parameter init exactly as ImageCube.__init__: base cube filled with 0.05.
    base_cube = jnp.full((nchan, npix, npix), 0.05, dtype=jnp.float32)

    key = jax.random.PRNGKey(0)
    k1, k2, k3 = jax.random.split(key, 3)
    # TODO(synk): gridding.corrfun_mat (prolate-spheroidal taper) not available;
    # deterministic positive stand-in with the right shape.
    corrfun = 1.0 + 0.1 * jax.random.uniform(k1, (npix, npix), dtype=jnp.float32)
    # TODO(synk): gridding.calc_matrices band-limited *sparse* interpolation matrices
    # not available; dense stand-ins (stored transposed: (F, nvis)).
    C_re = 0.1 * jax.random.normal(k2, (nchan, F, nvis), dtype=jnp.float32)
    C_im = 0.1 * jax.random.normal(k3, (nchan, F, nvis), dtype=jnp.float32)

    # One-time precomputation (hoisted out of the hot path, as per perf review).
    img_ops = precompute_image_operands(npix, cell_size_arcsec, corrfun)
    interp = precache_interpolation(C_re, C_im, npix)

    re, im = image_cube_forward(base_cube, img_ops, interp)
    jax.block_until_ready((re, im))

    re_ref, im_ref = _reference(base_cube, corrfun, C_re, C_im, cell_size_arcsec)
    assert re.shape == (nchan, nvis) and im.shape == (nchan, nvis)
    assert jnp.allclose(re, re_ref, rtol=2e-3, atol=1e-4), "re mismatch vs reference"
    assert jnp.allclose(im, im_ref, rtol=2e-3, atol=1e-4), "im mismatch vs reference"

    print("KERNEL_OK")
</pallas_src>

<mosaic_0001>
module attributes {stable_mosaic.version = 11 : i64} {
  func.func @k(%arg0: i32, %arg1: memref<8x128xf32, #tpu.memory_space<vmem>>, %arg2: memref<8x128xf32, #tpu.memory_space<vmem>>) attributes {dimension_semantics = [#tpu.dimension_semantics<arbitrary>], iteration_bounds = array<i64: 2>, scalar_prefetch = 0 : i64, scratch_operands = 0 : i64, tpu.core_type = #tpu.core_type<tc>, window_params = [{pipeline_mode = #tpu.pipeline_mode<synchronous>, transform_indices = @transform_0, window_bounds = array<i64: 8, 128>}, {pipeline_mode = #tpu.pipeline_mode<synchronous>, transform_indices = @transform_1, window_bounds = array<i64: 8, 128>}]} {
    %c0 = arith.constant 0 : index
    %c0_0 = arith.constant 0 : index
    %0 = vector.load %arg1[%c0, %c0_0] : memref<8x128xf32, #tpu.memory_space<vmem>>, vector<8x128xf32>
    %cst = arith.constant 1.000000e+00 : f32
    %1 = vector.broadcast %cst : f32 to vector<8x128xf32>
    %2 = arith.addf %0, %1 : vector<8x128xf32>
    %c0_1 = arith.constant 0 : index
    %c0_2 = arith.constant 0 : index
    %3 = vector.load %arg2[%c0_1, %c0_2] : memref<8x128xf32, #tpu.memory_space<vmem>>, vector<8x128xf32>
    tpu.vector_store %arg2[%c0_1, %c0_2], %2 {strides = array<i32>} : memref<8x128xf32, #tpu.memory_space<vmem>>, vector<8x128xf32>,
    return
  }
  func.func @transform_0(%arg0: i32) -> (i32, i32) {
    %c0_i32 = arith.constant 0 : i32
    %c0_i32_0 = arith.constant 0 : i32
    %c0_i32_1 = arith.constant 0 : i32
    return %c0_i32, %c0_i32_0 : i32, i32
  }
  func.func @transform_1(%arg0: i32) -> (i32, i32) {
    %c0_i32 = arith.constant 0 : i32
    %c0_i32_0 = arith.constant 0 : i32
    %c0_i32_1 = arith.constant 0 : i32
    return %c0_i32, %c0_i32_0 : i32, i32
  }
}

module attributes {stable_mosaic.version = 11 : i64} {
  func.func @k(%arg0: memref<128x128xf32, #tpu.memory_space<vmem>>, %arg1: memref<128x128xf32, #tpu.memory_space<vmem>>, %arg2: memref<128x128xf32, #tpu.memory_space<vmem>>) attributes {dimension_semantics = [], scalar_prefetch = 0 : i64, scratch_operands = 0 : i64, tpu.core_type = #tpu.core_type<tc>} {
    %c0 = arith.constant 0 : index
    %c0_0 = arith.constant 0 : index
    %0 = vector.load %arg0[%c0, %c0_0] : memref<128x128xf32, #tpu.memory_space<vmem>>, vector<128x128xf32>
    %c0_1 = arith.constant 0 : index
    %c0_2 = arith.constant 0 : index
    %1 = vector.load %arg1[%c0_1, %c0_2] : memref<128x128xf32, #tpu.memory_space<vmem>>, vector<128x128xf32>
    %cst = arith.constant dense<0.000000e+00> : vector<128x128xf32>
    %2 = tpu.matmul %0, %1, %cst {dimension_numbers = #tpu.dot_dimension_numbers<[1], [0], [0], [1], [0, 0, 1, 1], [], []>, precision = #tpu.contract_precision<fp32>} : vector<128x128xf32>, vector<128x128xf32>, vector<128x128xf32> -> vector<128x128xf32>
    %c0_3 = arith.constant 0 : index
    %c0_4 = arith.constant 0 : index
    %3 = vector.load %arg2[%c0_3, %c0_4] : memref<128x128xf32, #tpu.memory_space<vmem>>, vector<128x128xf32>
    tpu.vector_store %arg2[%c0_3, %c0_4], %2 {strides = array<i32>} : memref<128x128xf32, #tpu.memory_space<vmem>>, vector<128x128xf32>,
    return
  }
}

module attributes {stable_mosaic.version = 11 : i64} {
  func.func @kernel(%arg0: i32, %arg1: memref<2x16x16xf32, #tpu.memory_space<vmem>>, %arg2: memref<16x16xf32, #tpu.memory_space<vmem>>, %arg3: memref<16x16xf32, #tpu.memory_space<vmem>>, %arg4: memref<16x16xf32, #tpu.memory_space<vmem>>, %arg5: memref<16x9xf32, #tpu.memory_space<vmem>>, %arg6: memref<16x9xf32, #tpu.memory_space<vmem>>, %arg7: memref<2x16x9xf32, #tpu.memory_space<vmem>>, %arg8: memref<2x16x9xf32, #tpu.memory_space<vmem>>) attributes {dimension_semantics = [#tpu.dimension_semantics<parallel>], iteration_bounds = array<i64: 2>, scalar_prefetch = 0 : i64, scratch_operands = 0 : i64, tpu.core_type = #tpu.core_type<tc>, window_params = [{transform_indices = @transform_0, window_bounds = array<i64: 2, 16, 16>}, {pipeline_mode = #tpu.pipeline_mode<synchronous>, transform_indices = @transform_1, window_bounds = array<i64: 16, 16>}, {pipeline_mode = #tpu.pipeline_mode<synchronous>, transform_indices = @transform_2, window_bounds = array<i64: 16, 16>}, {pipeline_mode = #tpu.pipeline_mode<synchronous>, transform_indices = @transform_3, window_bounds = array<i64: 16, 16>}, {pipeline_mode = #tpu.pipeline_mode<synchronous>, transform_indices = @transform_4, window_bounds = array<i64: 16, 9>}, {pipeline_mode = #tpu.pipeline_mode<synchronous>, transform_indices = @transform_5, window_bounds = array<i64: 16, 9>}, {transform_indices = @transform_6, window_bounds = array<i64: 2, 16, 9>}, {transform_indices = @transform_7, window_bounds = array<i64: 2, 16, 9>}]} {
    %c0 = arith.constant 0 : index
    %c0_0 = arith.constant 0 : index
    %0 = vector.load %arg2[%c0, %c0_0] : memref<16x16xf32, #tpu.memory_space<vmem>>, vector<16x16xf32>
    %c0_1 = arith.constant 0 : index
    %c0_2 = arith.constant 0 : index
    %1 = vector.load %arg3[%c0_1, %c0_2] : memref<16x16xf32, #tpu.memory_space<vmem>>, vector<16x16xf32>
    %c0_3 = arith.constant 0 : index
    %c0_4 = arith.constant 0 : index
    %2 = vector.load %arg4[%c0_3, %c0_4] : memref<16x16xf32, #tpu.memory_space<vmem>>, vector<16x16xf32>
    %c0_5 = arith.constant 0 : index
    %c0_6 = arith.constant 0 : index
    %3 = vector.load %arg5[%c0_5, %c0_6] : memref<16x9xf32, #tpu.memory_space<vmem>>, vector<16x9xf32>
    %c0_7 = arith.constant 0 : index
    %c0_8 = arith.constant 0 : index
    %4 = vector.load %arg6[%c0_7, %c0_8] : memref<16x9xf32, #tpu.memory_space<vmem>>, vector<16x9xf32>
    %c0_i32 = arith.constant 0 : i32
    %5 = arith.index_cast %c0_i32 : i32 to index
    %c0_9 = arith.constant 0 : index
    %c0_10 = arith.constant 0 : index
    %6 = vector.load %arg1[%5, %c0_9, %c0_10] : memref<2x16x16xf32, #tpu.memory_space<vmem>>, vector<1x16x16xf32>
    %7 = vector.shape_cast %6 : vector<1x16x16xf32> to vector<16x16xf32>
    %cst = arith.constant 0.000000e+00 : f32
    %8 = vector.broadcast %cst : f32 to vector<16x16xf32>
    %9 = arith.maximumf %7, %8 : vector<16x16xf32>
    %10 = math.absf %7 : vector<16x16xf32>
    %cst_11 = arith.constant 0.000000e+00 : f32
    %11 = vector.broadcast %cst_11 : f32 to vector<16x16xf32>
    %12 = arith.subf %11, %10 : vector<16x16xf32>
    %13 = math.exp %12 : vector<16x16xf32>
    %14 = math.log1p %13 : vector<16x16xf32>
    %15 = arith.addf %9, %14 : vector<16x16xf32>
    %16 = arith.mulf %15, %0 : vector<16x16xf32>
    %cst_12 = arith.constant dense<0.000000e+00> : vector<16x9xf32>
    %17 = tpu.matmul %16, %3, %cst_12 {dimension_numbers = #tpu.dot_dimension_numbers<[1], [0], [0], [1], [0, 0, 1, 1], [], []>} : vector<16x16xf32>, vector<16x9xf32>, vector<16x9xf32> -> vector<16x9xf32>
    %cst_13 = arith.constant dense<0.000000e+00> : vector<16x9xf32>
    %18 = tpu.matmul %16, %4, %cst_13 {dimension_numbers = #tpu.dot_dimension_numbers<[1], [0], [0], [1], [0, 0, 1, 1], [], []>} : vector<16x16xf32>, vector<16x9xf32>, vector<16x9xf32> -> vector<16x9xf32>
    %cst_14 = arith.constant dense<0.000000e+00> : vector<16x9xf32>
    %19 = tpu.matmul %1, %17, %cst_14 {dimension_numbers = #tpu.dot_dimension_numbers<[1], [0], [0], [1], [0, 0, 1, 1], [], []>} : vector<16x16xf32>, vector<16x9xf32>, vector<16x9xf32> -> vector<16x9xf32>
    %cst_15 = arith.constant dense<0.000000e+00> : vector<16x9xf32>
    %20 = tpu.matmul %2, %18, %cst_15 {dimension_numbers = #tpu.dot_dimension_numbers<[1], [0], [0], [1], [0, 0, 1, 1], [], []>} : vector<16x16xf32>, vector<16x9xf32>, vector<16x9xf32> -> vector<16x9xf32>
    %21 = arith.subf %19, %20 : vector<16x9xf32>
    %22 = arith.index_cast %c0_i32 : i32 to index
    %c0_16 = arith.constant 0 : index
    %c0_17 = arith.constant 0 : index
    %23 = vector.load %arg7[%22, %c0_16, %c0_17] : memref<2x16x9xf32, #tpu.memory_space<vmem>>, vector<1x16x9xf32>
    %24 = vector.shape_cast %23 : vector<1x16x9xf32> to vector<16x9xf32>
    %25 = vector.shape_cast %21 : vector<16x9xf32> to vector<1x16x9xf32>
    tpu.vector_store %arg7[%22, %c0_16, %c0_17], %25 {strides = array<i32>} : memref<2x16x9xf32, #tpu.memory_space<vmem>>, vector<1x16x9xf32>,
    %cst_18 = arith.constant dense<0.000000e+00> : vector<16x9xf32>
    %26 = tpu.matmul %1, %18, %cst_18 {dimension_numbers = #tpu.dot_dimension_numbers<[1], [0], [0], [1], [0, 0, 1, 1], [], []>} : vector<16x16xf32>, vector<16x9xf32>, vector<16x9xf32> -> vector<16x9xf32>
    %cst_19 = arith.constant dense<0.000000e+00> : vector<16x9xf32>
    %27 = tpu.matmul %2, %17, %cst_19 {dimension_numbers = #tpu.dot_dimension_numbers<[1], [0], [0], [1], [0, 0, 1, 1], [], []>} : vector<16x16xf32>, vector<16x9xf32>, vector<16x9xf32> -> vector<16x9xf32>
    %28 = arith.addf %26, %27 : vector<16x9xf32>
    %29 = arith.index_cast %c0_i32 : i32 to index
    %c0_20 = arith.constant 0 : index
    %c0_21 = arith.constant 0 : index
    %30 = vector.load %arg8[%29, %c0_20, %c0_21] : memref<2x16x9xf32, #tpu.memory_space<vmem>>, vector<1x16x9xf32>
    %31 = vector.shape_cast %30 : vector<1x16x9xf32> to vector<16x9xf32>
    %32 = vector.shape_cast %28 : vector<16x9xf32> to vector<1x16x9xf32>
    tpu.vector_store %arg8[%29, %c0_20, %c0_21], %32 {strides = array<i32>} : memref<2x16x9xf32, #tpu.memory_space<vmem>>, vector<1x16x9xf32>,
    %c1_i32 = arith.constant 1 : i32
    %33 = arith.index_cast %c1_i32 : i32 to index
    %c0_22 = arith.constant 0 : index
    %c0_23 = arith.constant 0 : index
    %34 = vector.load %arg1[%33, %c0_22, %c0_23] : memref<2x16x16xf32, #tpu.memory_space<vmem>>, vector<1x16x16xf32>
    %35 = vector.shape_cast %34 : vector<1x16x16xf32> to vector<16x16xf32>
    %cst_24 = arith.constant 0.000000e+00 : f32
    %36 = vector.broadcast %cst_24 : f32 to vector<16x16xf32>
    %37 = arith.maximumf %35, %36 : vector<16x16xf32>
    %38 = math.absf %35 : vector<16x16xf32>
    %cst_25 = arith.constant 0.000000e+00 : f32
    %39 = vector.broadcast %cst_25 : f32 to vector<16x16xf32>
    %40 = arith.subf %39, %38 : vector<16x16xf32>
    %41 = math.exp %40 : vector<16x16xf32>
    %42 = math.log1p %41 : vector<16x16xf32>
    %43 = arith.addf %37, %42 : vector<16x16xf32>
    %44 = arith.mulf %43, %0 : vector<16x16xf32>
    %cst_26 = arith.constant dense<0.000000e+00> : vector<16x9xf32>
    %45 = tpu.matmul %44, %3, %cst_26 {dimension_numbers = #tpu.dot_dimension_numbers<[1], [0], [0], [1], [0, 0, 1, 1], [], []>} : vector<16x16xf32>, vector<16x9xf32>, vector<16x9xf32> -> vector<16x9xf32>
    %cst_27 = arith.constant dense<0.000000e+00> : vector<16x9xf32>
    %46 = tpu.matmul %44, %4, %cst_27 {dimension_numbers = #tpu.dot_dimension_numbers<[1], [0], [0], [1], [0, 0, 1, 1], [], []>} : vector<16x16xf32>, vector<16x9xf32>, vector<16x9xf32> -> vector<16x9xf32>
    %cst_28 = arith.constant dense<0.000000e+00> : vector<16x9xf32>
    %47 = tpu.matmul %1, %45, %cst_28 {dimension_numbers = #tpu.dot_dimension_numbers<[1], [0], [0], [1], [0, 0, 1, 1], [], []>} : vector<16x16xf32>, vector<16x9xf32>, vector<16x9xf32> -> vector<16x9xf32>
    %cst_29 = arith.constant dense<0.000000e+00> : vector<16x9xf32>
    %48 = tpu.matmul %2, %46, %cst_29 {dimension_numbers = #tpu.dot_dimension_numbers<[1], [0], [0], [1], [0, 0, 1, 1], [], []>} : vector<16x16xf32>, vector<16x9xf32>, vector<16x9xf32> -> vector<16x9xf32>
    %49 = arith.subf %47, %48 : vector<16x9xf32>
    %50 = arith.index_cast %c1_i32 : i32 to index
    %c0_30 = arith.constant 0 : index
    %c0_31 = arith.constant 0 : index
    %51 = vector.load %arg7[%50, %c0_30, %c0_31] : memref<2x16x9xf32, #tpu.memory_space<vmem>>, vector<1x16x9xf32>
    %52 = vector.shape_cast %51 : vector<1x16x9xf32> to vector<16x9xf32>
    %53 = vector.shape_cast %49 : vector<16x9xf32> to vector<1x16x9xf32>
    tpu.vector_store %arg7[%50, %c0_30, %c0_31], %53 {strides = array<i32>} : memref<2x16x9xf32, #tpu.memory_space<vmem>>, vector<1x16x9xf32>,
    %cst_32 = arith.constant dense<0.000000e+00> : vector<16x9xf32>
    %54 = tpu.matmul %1, %46, %cst_32 {dimension_numbers = #tpu.dot_dimension_numbers<[1], [0], [0], [1], [0, 0, 1, 1], [], []>} : vector<16x16xf32>, vector<16x9xf32>, vector<16x9xf32> -> vector<16x9xf32>
    %cst_33 = arith.constant dense<0.000000e+00> : vector<16x9xf32>
    %55 = tpu.matmul %2, %45, %cst_33 {dimension_numbers = #tpu.dot_dimension_numbers<[1], [0], [0], [1], [0, 0, 1, 1], [], []>} : vector<16x16xf32>, vector<16x9xf32>, vector<16x9xf32> -> vector<16x9xf32>
    %56 = arith.addf %54, %55 : vector<16x9xf32>
    %57 = arith.index_cast %c1_i32 : i32 to index
    %c0_34 = arith.constant 0 : index
    %c0_35 = arith.constant 0 : index
    %58 = vector.load %arg8[%57, %c0_34, %c0_35] : memref<2x16x9xf32, #tpu.memory_space<vmem>>, vector<1x16x9xf32>
    %59 = vector.shape_cast %58 : vector<1x16x9xf32> to vector<16x9xf32>
    %60 = vector.shape_cast %56 : vector<16x9xf32> to vector<1x16x9xf32>
    tpu.vector_store %arg8[%57, %c0_34, %c0_35], %60 {strides = array<i32>} : memref<2x16x9xf32, #tpu.memory_space<vmem>>, vector<1x16x9xf32>,
    %c2_i32 = arith.constant 2 : i32
    return
  }
  func.func @transform_0(%arg0: i32) -> (i32, i32, i32) {
    %c0_i32 = arith.constant 0 : i32
    %c0_i32_0 = arith.constant 0 : i32
    %c0_i32_1 = arith.constant 0 : i32
    return %arg0, %c0_i32, %c0_i32_0 : i32, i32, i32
  }
  func.func @transform_1(%arg0: i32) -> (i32, i32) {
    %c0_i32 = arith.constant 0 : i32
    %c0_i32_0 = arith.constant 0 : i32
    %c0_i32_1 = arith.constant 0 : i32
    return %c0_i32, %c0_i32_0 : i32, i32
  }
  func.func @transform_2(%arg0: i32) -> (i32, i32) {
    %c0_i32 = arith.constant 0 : i32
    %c0_i32_0 = arith.constant 0 : i32
    %c0_i32_1 = arith.constant 0 : i32
    return %c0_i32, %c0_i32_0 : i32, i32
  }
  func.func @transform_3(%arg0: i32) -> (i32, i32) {
    %c0_i32 = arith.constant 0 : i32
    %c0_i32_0 = arith.constant 0 : i32
    %c0_i32_1 = arith.constant 0 : i32
    return %c0_i32, %c0_i32_0 : i32, i32
  }
  func.func @transform_4(%arg0: i32) -> (i32, i32) {
    %c0_i32 = arith.constant 0 : i32
    %c0_i32_0 = arith.constant 0 : i32
    %c0_i32_1 = arith.constant 0 : i32
    return %c0_i32, %c0_i32_0 : i32, i32
  }
  func.func @transform_5(%arg0: i32) -> (i32, i32) {
    %c0_i32 = arith.constant 0 : i32
    %c0_i32_0 = arith.constant 0 : i32
    %c0_i32_1 = arith.constant 0 : i32
    return %c0_i32, %c0_i32_0 : i32, i32
  }
  func.func @transform_6(%arg0: i32) -> (i32, i32, i32) {
    %c0_i32 = arith.constant 0 : i32
    %c0_i32_0 = arith.constant 0 : i32
    %c0_i32_1 = arith.constant 0 : i32
    return %arg0, %c0_i32, %c0_i32_0 : i32, i32, i32
  }
  func.func @transform_7(%arg0: i32) -> (i32, i32, i32) {
    %c0_i32 = arith.constant 0 : i32
    %c0_i32_0 = arith.constant 0 : i32
    %c0_i32_1 = arith.constant 0 : i32
    return %arg0, %c0_i32, %c0_i32_0 : i32, i32, i32
  }
}

</mosaic_0001>

<llo_original>
// kernel: tpu_custom_call.1
$region0: #{tpu_custom_call.1}
  #allocation0 [shape = 'u32[]', space=smem, size = 0x4, offset = 0x4, fixed_abs, tag = 'smem constant byte address 0x4 - core index']
  #allocation1 [shape = 'u32[144,128]{1,0:T(1,128)}', space=vmem, size = 0x12000, scoped, tag = 'internal scratch']
  %s0 = inlined_call_operand.hbm [shape: f32[8,128], index: 0, kind: input, shape index: {}]
  %s1 = inlined_call_operand.hbm [shape: f32[8,128], index: 1, kind: output, shape index: {}]
  %s2 = sld [smem:[#allocation0]]
  $region41: #{tpu_custom_call.1} parent=0
    _
  %s4 = ssub.s32 1, %s2
  %s5 = scalar_select 0, %s4, %s2
  $region1: #{tpu_custom_call.1} parent=0
    #allocation2 [shape = 'u8[4096]{0}', space=vmem, size = 0x1000, scoped, tag = 'input window, operand 0, single buffered']
    #allocation3 [shape = 's32[2]{0}', space=sflag, size = 0x8, scoped, tag = 'scoped memory for tpu_custom_call.1']
    #allocation4 [shape = 's32[2]{0}', space=sflag, size = 0x8, scoped, tag = 'scoped memory for tpu_custom_call.1']
    #allocation5 [shape = 'u8[4096]{0}', space=vmem, size = 0x1000, scoped, tag = 'output window, operand 0, single buffered']
    %6 = vsyncpa [#allocation3], 0
    %7 = vsyncpa [#allocation4], 0
    loop: start=0, step=1, limit=4
    $region2: #{tpu_custom_call.1} parent=1 // loop_pre_header
      _
    $region3: #{tpu_custom_call.1} parent=1 // loop_header
      %s9 = sphi 0, %s13
      %p10 = scmp.ge.s32.totalorder %s9, 4
      %s17 = sphi 0, %s17
      %s19 = sphi 0, %s17
      %s20 = sphi 0, %s19
      %s34 = sphi 0, %s20
      %s38 = sphi 0, %s38
      %s40 = sphi 0, %s38
      %s41 = sphi 0, %s40
      %s55 = sphi 0, %s41
    $region4: #{tpu_custom_call.1} parent=1 // loop_header_branch
      %12 = sbr.rel (%p10) target = $region8
    $region5: #{tpu_custom_call.1} parent=1 // loop_body
      %s14 = ssub.s32 %s9, 1
      %s15 = ssub.s32 %s9, 2
      %s16 = sadd.s32 %s9, 1
      %s18 = sadd.s32 %s17, 1
      %p21 = scmp.eq.s32.totalorder %s9, 1
      %p22 = scmp.ne.s32.totalorder %s17, %s19
      %p23 = scmp.eq.s32.totalorder %s9, 0
      %p24 = por %p22, %p23
      %p25 = scmp.ne.s32.totalorder %s17, %s19
      %p26 = scmp.eq.s32.totalorder %s14, 1
      %p27 = por %p25, %p26
      %p28 = scmp.ne.s32.totalorder %s19, %s20
      %p29 = scmp.eq.s32.totalorder %s14, 0
      %p30 = por %p28, %p29
      %p31 = scmp.ne.s32.totalorder %s19, %s20
      %p32 = scmp.eq.s32.totalorder %s15, 1
      %p33 = por %p31, %p32
      %p35 = scmp.ne.s32.totalorder %s20, %s34
      %p36 = scmp.eq.s32.totalorder %s15, 0
      %p37 = por %p35, %p36
      %s39 = sadd.s32 %s38, 1
      %p42 = scmp.eq.s32.totalorder %s9, 1
      %p43 = scmp.ne.s32.totalorder %s38, %s40
      %p44 = scmp.eq.s32.totalorder %s9, 0
      %p45 = por %p43, %p44
      %p46 = scmp.ne.s32.totalorder %s38, %s40
      %p47 = scmp.eq.s32.totalorder %s14, 1
      %p48 = por %p46, %p47
      %p49 = scmp.ne.s32.totalorder %s40, %s41
      %p50 = scmp.eq.s32.totalorder %s14, 0
      %p51 = por %p49, %p50
      %p52 = scmp.ne.s32.totalorder %s40, %s41
      %p53 = scmp.eq.s32.totalorder %s15, 1
      %p54 = por %p52, %p53
      %p56 = scmp.ne.s32.totalorder %s41, %s55
      %p57 = scmp.eq.s32.totalorder %s15, 0
      %p58 = por %p56, %p57
      %p59 = scmp.le.s32.totalorder 1, %s9
      %p60 = scmp.lt.s32.totalorder %s9, 3
      %p61 = pnand %p59, %p60
      %p62 = pneg %p61
      // Predicated region
      $region9: #{tpu_custom_call.1} parent=5 // pred_check
        _
      $region10: #{tpu_custom_call.1} parent=5 // pred_check_branch
        %64 = sbr.rel (%p61) target = $region12
      $region11: #{tpu_custom_call.1} parent=5 // pred_region
        %s65 = ssub.s32 %s9, 1
        // Predicated region
        $region13: #{tpu_custom_call.1} parent=11 // pred_check
          %p66 = pneg %p30
        $region14: #{tpu_custom_call.1} parent=11 // pred_check_branch
          %68 = sbr.rel (%p66) target = $region16
        $region15: #{tpu_custom_call.1} parent=11 // pred_region
          %s70 = ssub.s32 128, 128
          %71 = vsyncadd [#allocation3], %s70
          %s73 = sshll.u32 [#allocation2], 4
          %s74 = int_to_ptr.vmem [resolvable:$true] %s73
          %76 = dma.hbm_to_vmem [thread:$0]  %s0, 128, %s74, [#allocation3]
        $region16: #{tpu_custom_call.1} parent=11 // pred_fallthru
          _
      $region12: #{tpu_custom_call.1} parent=5 // pred_fallthru
        _
      %p77 = scmp.lt.s32.totalorder %s9, 2
      // Predicated region
      $region17: #{tpu_custom_call.1} parent=5 // pred_check
        %p78 = pneg %p77
      $region18: #{tpu_custom_call.1} parent=5 // pred_check_branch
        %80 = sbr.rel (%p78) target = $region20
      $region19: #{tpu_custom_call.1} parent=5 // pred_region
        _
      $region20: #{tpu_custom_call.1} parent=5 // pred_fallthru
        _
      %p81 = scmp.le.s32.totalorder 1, %s9
      %p82 = scmp.lt.s32.totalorder %s9, 3
      %p83 = pnand %p81, %p82
      %p84 = pneg %p83
      // Predicated region
      $region21: #{tpu_custom_call.1} parent=5 // pred_check
        _
      $region22: #{tpu_custom_call.1} parent=5 // pred_check_branch
        %86 = sbr.rel (%p83) target = $region24
      $region23: #{tpu_custom_call.1} parent=5 // pred_region
        %s87 = ssub.s32 %s9, 1
        // Predicated region
        $region25: #{tpu_custom_call.1} parent=23 // pred_check
          %p88 = pneg %p30
        $region26: #{tpu_custom_call.1} parent=23 // pred_check_branch
          %90 = sbr.rel (%p88) target = $region28
        $region27: #{tpu_custom_call.1} parent=23 // pred_region
          %91 = dma.done [#allocation3], 128
        $region28: #{tpu_custom_call.1} parent=23 // pred_fallthru
          _
        %p92 = pneg %p30
        %p93 = pneg %p27
        %p94 = pneg %p51
        %p95 = pneg %p48
        %v96 = vld [vmem:[#allocation2] sm:$0xff]
        %v97 = vadd.f32 %v96, 1.0
        %98 = vst [vmem:[#allocation5] sm:$0xff] %v97
        // Predicated region
        $region29: #{tpu_custom_call.1} parent=23 // pred_check
          %p99 = pneg %p48
        $region30: #{tpu_custom_call.1} parent=23 // pred_check_branch
          %101 = sbr.rel (%p99) target = $region32
        $region31: #{tpu_custom_call.1} parent=23 // pred_region
          %s103 = ssub.s32 128, 128
          %104 = vsyncadd [#allocation4], %s103
          %s106 = sshll.u32 [#allocation5], 4
          %s107 = int_to_ptr.vmem [resolvable:$true] %s106
          %109 = dma.vmem_to_hbm [thread:$0]  %s107, 128, %s1, [#allocation4]
        $region32: #{tpu_custom_call.1} parent=23 // pred_fallthru
          _
        // Predicated region
        $region33: #{tpu_custom_call.1} parent=23 // pred_check
          %p110 = pneg %p48
        $region34: #{tpu_custom_call.1} parent=23 // pred_check_branch
          %112 = sbr.rel (%p110) target = $region36
        $region35: #{tpu_custom_call.1} parent=23 // pred_region
          %113 = dma.done [#allocation4], 128
        $region36: #{tpu_custom_call.1} parent=23 // pred_fallthru
          _
      $region24: #{tpu_custom_call.1} parent=5 // pred_fallthru
        _
      %p114 = scmp.le.s32.totalorder 2, %s9
      // Predicated region
      $region37: #{tpu_custom_call.1} parent=5 // pred_check
        %p115 = pneg %p114
      $region38: #{tpu_custom_call.1} parent=5 // pred_check_branch
        %117 = sbr.rel (%p115) target = $region40
      $region39: #{tpu_custom_call.1} parent=5 // pred_region
        %s118 = ssub.s32 %s9, 2
      $region40: #{tpu_custom_call.1} parent=5 // pred_fallthru
        _
    $region6: #{tpu_custom_call.1} parent=1 // loop_footer
      %s13 = sadd.s32 1, %s9
    $region7: #{tpu_custom_call.1} parent=1 // loop_footer_branch
      %8 = sbr.rel target = $region3
    $region8: #{tpu_custom_call.1} parent=1 // loop_exit
      _
    %119 = vsyncpa [#allocation3], 1
    %s120 = scalar_lea.sflag [#allocation3], 1
    %121 = vsyncpa %s120, 1
    %122 = vsyncpa [#allocation4], 1
    %s123 = scalar_lea.sflag [#allocation4], 1
    %124 = vsyncpa %s123, 1

// kernel: tpu_custom_call.1
$region0: #{tpu_custom_call.1}
  #allocation0 [shape = 'u32[]', space=smem, size = 0x4, offset = 0x4, fixed_abs, tag = 'smem constant byte address 0x4 - core index']
  #allocation1 [shape = 'u32[144,128]{1,0:T(1,128)}', space=vmem, size = 0x12000, scoped, tag = 'internal scratch']
  %s0 = inlined_call_operand.hbm [shape: f32[128,128], index: 0, kind: input, shape index: {}]
  %s1 = inlined_call_operand.hbm [shape: f32[128,128], index: 1, kind: input, shape index: {}]
  %s2 = inlined_call_operand.hbm [shape: f32[128,128], index: 2, kind: output, shape index: {}]
  %s3 = sld [smem:[#allocation0]]
  $region26: #{tpu_custom_call.1} parent=0
    _
  %s5 = ssub.s32 1, %s3
  %s6 = scalar_select 0, %s5, %s3
  $region1: #{tpu_custom_call.1} parent=0
    #allocation2 [shape = 'u8[65536]{0}', space=vmem, size = 0x10000, scoped, tag = 'input window, operand 0, single buffered']
    #allocation3 [shape = 's32[1]{0}', space=sflag, size = 0x4, scoped, tag = 'scoped memory for tpu_custom_call.1']
    #allocation4 [shape = 's32[1]{0}', space=sflag, size = 0x4, scoped, tag = 'scoped memory for tpu_custom_call.1']
    #allocation5 [shape = 'u8[65536]{0}', space=vmem, size = 0x10000, scoped, tag = 'input window, operand 1, single buffered']
    #allocation6 [shape = 's32[1]{0}', space=sflag, size = 0x4, scoped, tag = 'scoped memory for tpu_custom_call.1']
    #allocation7 [shape = 'u8[65536]{0}', space=vmem, size = 0x10000, scoped, tag = 'output window, operand 0, single buffered']
    %7 = vsyncpa [#allocation3], 0
    %8 = vsyncpa [#allocation6], 0
    %9 = vsyncpa [#allocation4], 0
    // Predicated region
    $region2: #{tpu_custom_call.1} parent=1 // pred_check
      _
    $region3: #{tpu_custom_call.1} parent=1 // pred_check_branch
      %11 = sbr.rel (0) target = $region5
    $region4: #{tpu_custom_call.1} parent=1 // pred_region
      %s13 = ssub.s32 2048, 2048
      %14 = vsyncadd [#allocation3], %s13
      %s15 = sshll.u32 [#allocation2], 4
      %s16 = int_to_ptr.vmem [resolvable:$true] %s15
      %21 = dma.hbm_to_vmem [thread:$0]  %s0, 2048, %s16, [#allocation3], 128, 128, 8
    $region5: #{tpu_custom_call.1} parent=1 // pred_fallthru
      _
    // Predicated region
    $region6: #{tpu_custom_call.1} parent=1 // pred_check
      _
    $region7: #{tpu_custom_call.1} parent=1 // pred_check_branch
      %23 = sbr.rel (0) target = $region9
    $region8: #{tpu_custom_call.1} parent=1 // pred_region
      %s25 = ssub.s32 2048, 2048
      %26 = vsyncadd [#allocation6], %s25
      %s27 = sshll.u32 [#allocation5], 4
      %s28 = int_to_ptr.vmem [resolvable:$true] %s27
      %33 = dma.hbm_to_vmem [thread:$0]  %s1, 2048, %s28, [#allocation6], 128, 128, 8
    $region9: #{tpu_custom_call.1} parent=1 // pred_fallthru
      _
    // Predicated region
    $region10: #{tpu_custom_call.1} parent=1 // pred_check
      _
    $region11: #{tpu_custom_call.1} parent=1 // pred_check_branch
      %35 = sbr.rel (0) target = $region13
    $region12: #{tpu_custom_call.1} parent=1 // pred_region
      %36 = dma.done [#allocation3], 2048
    $region13: #{tpu_custom_call.1} parent=1 // pred_fallthru
      _
    // Predicated region
    $region14: #{tpu_custom_call.1} parent=1 // pred_check
      _
    $region15: #{tpu_custom_call.1} parent=1 // pred_check_branch
      %38 = sbr.rel (0) target = $region17
    $region16: #{tpu_custom_call.1} parent=1 // pred_region
      %39 = dma.done [#allocation6], 2048
    $region17: #{tpu_custom_call.1} parent=1 // pred_fallthru
      _
    %v40 = vld [vmem:[#allocation2] sm:$0xff]
    %v41 = vld [vmem:[#allocation2 + $0x8] sm:$0xff]
    %v42 = vld [vmem:[#allocation2 + $0x10] sm:$0xff]
    %v43 = vld [vmem:[#allocation2 + $0x18] sm:$0xff]
    %v44 = vld [vmem:[#allocation2 + $0x20] sm:$0xff]
    %v45 = vld [vmem:[#allocation2 + $0x28] sm:$0xff]
    %v46 = vld [vmem:[#allocation2 + $0x30] sm:$0xff]
    %v47 = vld [vmem:[#allocation2 + $0x38] sm:$0xff]
    %v48 = vld [vmem:[#allocation2 + $0x40] sm:$0xff]
    %v49 = vld [vmem:[#allocation2 + $0x48] sm:$0xff]
    %v50 = vld [vmem:[#allocation2 + $0x50] sm:$0xff]
    %v51 = vld [vmem:[#allocation2 + $0x58] sm:$0xff]
    %v52 = vld [vmem:[#allocation2 + $0x60] sm:$0xff]
    %v53 = vld [vmem:[#allocation2 + $0x68] sm:$0xff]
    %v54 = vld [vmem:[#allocation2 + $0x70] sm:$0xff]
    %v55 = vld [vmem:[#allocation2 + $0x78] sm:$0xff]
    %v56 = vld [vmem:[#allocation5] sm:$0xff]
    %v57 = vld [vmem:[#allocation5 + $0x8] sm:$0xff]
    %v58 = vld [vmem:[#allocation5 + $0x10] sm:$0xff]
    %v59 = vld [vmem:[#allocation5 + $0x18] sm:$0xff]
    %v60 = vld [vmem:[#allocation5 + $0x20] sm:$0xff]
    %v61 = vld [vmem:[#allocation5 + $0x28] sm:$0xff]
    %v62 = vld [vmem:[#allocation5 + $0x30] sm:$0xff]
    %v63 = vld [vmem:[#allocation5 + $0x38] sm:$0xff]
    %v64 = vld [vmem:[#allocation5 + $0x40] sm:$0xff]
    %v65 = vld [vmem:[#allocation5 + $0x48] sm:$0xff]
    %v66 = vld [vmem:[#allocation5 + $0x50] sm:$0xff]
    %v67 = vld [vmem:[#allocation5 + $0x58] sm:$0xff]
    %v68 = vld [vmem:[#allocation5 + $0x60] sm:$0xff]
    %v69 = vld [vmem:[#allocation5 + $0x68] sm:$0xff]
    %v70 = vld [vmem:[#allocation5 + $0x70] sm:$0xff]
    %v71 = vld [vmem:[#allocation5 + $0x78] sm:$0xff]
    %72 = vmatprep.subr.mxu0 0.0
    %v73 = vand.u32 %v56, 4294901760
    %74 = vmatpush1.msra.mxu0 %v73
    %75 = vmatprep.subr.mxu0 0.0
    %v76 = vand.u32 %v57, 4294901760
    %77 = vmatpush1.msra.mxu0 %v76
    %78 = vmatprep.subr.mxu0 0.0
    %v79 = vand.u32 %v58, 4294901760
    %80 = vmatpush1.msra.mxu0 %v79
    %81 = vmatprep.subr.mxu0 0.0
    %v82 = vand.u32 %v59, 4294901760
    %83 = vmatpush1.msra.mxu0 %v82
    %84 = vmatprep.subr.mxu0 0.0
    %v85 = vand.u32 %v60, 4294901760
    %86 = vmatpush1.msra.mxu0 %v85
    %87 = vmatprep.subr.mxu0 0.0
    %v88 = vand.u32 %v61, 4294901760
    %89 = vmatpush1.msra.mxu0 %v88
    %90 = vmatprep.subr.mxu0 0.0
    %v91 = vand.u32 %v62, 4294901760
    %92 = vmatpush1.msra.mxu0 %v91
    %93 = vmatprep.subr.mxu0 0.0
    %v94 = vand.u32 %v63, 4294901760
    %95 = vmatpush1.msra.mxu0 %v94
    %96 = vmatprep.subr.mxu0 0.0
    %v97 = vand.u32 %v64, 4294901760
    %98 = vmatpush1.msra.mxu0 %v97
    %99 = vmatprep.subr.mxu0 0.0
    %v100 = vand.u32 %v65, 4294901760
    %101 = vmatpush1.msra.mxu0 %v100
    %102 = vmatprep.subr.mxu0 0.0
    %v103 = vand.u32 %v66, 4294901760
    %104 = vmatpush1.msra.mxu0 %v103
    %105 = vmatprep.subr.mxu0 0.0
    %v106 = vand.u32 %v67, 4294901760
    %107 = vmatpush1.msra.mxu0 %v106
    %108 = vmatprep.subr.mxu0 0.0
    %v109 = vand.u32 %v68, 4294901760
    %110 = vmatpush1.msra.mxu0 %v109
    %111 = vmatprep.subr.mxu0 0.0
    %v112 = vand.u32 %v69, 4294901760
    %113 = vmatpush1.msra.mxu0 %v112
    %114 = vmatprep.subr.mxu0 0.0
    %v115 = vand.u32 %v70, 4294901760
    %116 = vmatpush1.msra.mxu0 %v115
    %117 = vmatprep.subr.mxu0 0.0
    %v118 = vand.u32 %v71, 4294901760
    %119 = vmatpush1.msra.mxu0 %v118
    %120 = vmatprep.subr.mxu0 0.0
    %121 = vmatpush1.msra.mxu0 0.0
    %122 = vmatprep.subr.mxu0 0.0
    %123 = vmatpush1.msra.mxu0 0.0
    %124 = vmatprep.subr.mxu0 0.0
    %125 = vmatpush1.msra.mxu0 0.0
    %126 = vmatprep.subr.mxu0 0.0
    %127 = vmatpush1.msra.mxu0 0.0
    %128 = vmatprep.subr.mxu0 0.0
    %129 = vmatpush1.msra.mxu0 0.0
    %130 = vmatprep.subr.mxu0 0.0
    %131 = vmatpush1.msra.mxu0 0.0
    %132 = vmatprep.subr.mxu0 0.0
    %133 = vmatpush1.msra.mxu0 0.0
    %134 = vmatprep.subr.mxu0 0.0
    %135 = vmatpush1.msra.mxu0 0.0
    %136 = vmatprep.subr.mxu0 0.0
    %137 = vmatpush1.msra.mxu0 0.0
    %138 = vmatprep.subr.mxu0 0.0
    %139 = vmatpush1.msra.mxu0 0.0
    %140 = vmatprep.subr.mxu0 0.0
    %141 = vmatpush1.msra.mxu0 0.0
    %142 = vmatprep.subr.mxu0 0.0
    %143 = vmatpush1.msra.mxu0 0.0
    %144 = vmatprep.subr.mxu0 0.0
    %145 = vmatpush1.msra.mxu0 0.0
    %146 = vmatprep.subr.mxu0 0.0
    %147 = vmatpush1.msra.mxu0 0.0
    %148 = vmatprep.subr.mxu0 0.0
    %149 = vmatpush1.msra.mxu0 0.0
    %150 = vmatprep.subr.mxu0 0.0
    %151 = vmatpush1.msra.mxu0 0.0
    %152 = vmatprep.mubr.f32.mxu0 0.0
    %v153 = vand.u32 %v40, 4294901760
    %v154 = vsub.f32 %v40, %v153
    %v155 = vand.u32 %v154, 4294901760
    %v156 = vsub.f32 %v154, %v155
    %v157 = vand.u32 %v156, 4294901760
    %158 = vmatmul.mubr.f32.gmra.mrb[0].mxu0 %v157
    %v159 = vpop.f32.mrb[0].mxu0
    %v160 = vadd.f32 0.0, %v159
    %v161 = vpop.f32.mrb[0].mxu0
    %162 = vmatprep.mubr.f32.mxu0 0.0
    %v163 = vand.u32 %v41, 4294901760
    %v164 = vsub.f32 %v41, %v163
    %v165 = vand.u32 %v164, 4294901760
    %v166 = vsub.f32 %v164, %v165
    %v167 = vand.u32 %v166, 4294901760
    %168 = vmatmul.mubr.f32.gmra.mrb[0].mxu0 %v167
    %v169 = vpop.f32.mrb[0].mxu0
    %v170 = vadd.f32 0.0, %v169
    %v171 = vpop.f32.mrb[0].mxu0
    %172 = vmatprep.mubr.f32.mxu0 0.0
    %v173 = vand.u32 %v42, 4294901760
    %v174 = vsub.f32 %v42, %v173
    %v175 = vand.u32 %v174, 4294901760
    %v176 = vsub.f32 %v174, %v175
    %v177 = vand.u32 %v176, 4294901760
    %178 = vmatmul.mubr.f32.gmra.mrb[0].mxu0 %v177
    %v179 = vpop.f32.mrb[0].mxu0
    %v180 = vadd.f32 0.0, %v179
    %v181 = vpop.f32.mrb[0].mxu0
    %182 = vmatprep.mubr.f32.mxu0 0.0
    %v183 = vand.u32 %v43, 4294901760
    %v184 = vsub.f32 %v43, %v183
    %v185 = vand.u32 %v184, 4294901760
    %v186 = vsub.f32 %v184, %v185
    %v187 = vand.u32 %v186, 4294901760
    %188 = vmatmul.mubr.f32.gmra.mrb[0].mxu0 %v187
    %v189 = vpop.f32.mrb[0].mxu0
    %v190 = vadd.f32 0.0, %v189
    %v191 = vpop.f32.mrb[0].mxu0
    %192 = vmatprep.mubr.f32.mxu0 0.0
    %v193 = vand.u32 %v44, 4294901760
    %v194 = vsub.f32 %v44, %v193
    %v195 = vand.u32 %v194, 4294901760
    %v196 = vsub.f32 %v194, %v195
    %v197 = vand.u32 %v196, 4294901760
    %198 = vmatmul.mubr.f32.gmra.mrb[0].mxu0 %v197
    %v199 = vpop.f32.mrb[0].mxu0
    %v200 = vadd.f32 0.0, %v199
    %v201 = vpop.f32.mrb[0].mxu0
    %202 = vmatprep.mubr.f32.mxu0 0.0
    %v203 = vand.u32 %v45, 4294901760
    %v204 = vsub.f32 %v45, %v203
    %v205 = vand.u32 %v204, 4294901760
    %v206 = vsub.f32 %v204, %v205
    %v207 = vand.u32 %v206, 4294901760
    %208 = vmatmul.mubr.f32.gmra.mrb[0].mxu0 %v207
    %v209 = vpop.f32.mrb[0].mxu0
    %v210 = vadd.f32 0.0, %v209
    %v211 = vpop.f32.mrb[0].mxu0
    %212 = vmatprep.mubr.f32.mxu0 0.0
    %v213 = vand.u32 %v46, 4294901760
    %v214 = vsub.f32 %v46, %v213
    %v215 = vand.u32 %v214, 4294901760
    %v216 = vsub.f32 %v214, %v215
    %v217 = vand.u32 %v216, 4294901760
    %218 = vmatmul.mubr.f32.gmra.mrb[0].mxu0 %v217
    %v219 = vpop.f32.mrb[0].mxu0
    %v220 = vadd.f32 0.0, %v219
    %v221 = vpop.f32.mrb[0].mxu0
    %222 = vmatprep.mubr.f32.mxu0 0.0
    %v223 = vand.u32 %v47, 4294901760
    %v224 = vsub.f32 %v47, %v223
    %v225 = vand.u32 %v224, 4294901760
    %v226 = vsub.f32 %v224, %v225
    %v227 = vand.u32 %v226, 4294901760
    %228 = vmatmul.mubr.f32.gmra.mrb[0].mxu0 %v227
    %v229 = vpop.f32.mrb[0].mxu0
    %v230 = vadd.f32 0.0, %v229
    %v231 = vpop.f32.mrb[0].mxu0
    %232 = vmatprep.mubr.f32.mxu0 0.0
    %v233 = vand.u32 %v48, 4294901760
    %v234 = vsub.f32 %v48, %v233
    %v235 = vand.u32 %v234, 4294901760
    %v236 = vsub.f32 %v234, %v235
    %v237 = vand.u32 %v236, 4294901760
    %238 = vmatmul.mubr.f32.gmra.mrb[0].mxu0 %v237
    %v239 = vpop.f32.mrb[0].mxu0
    %v240 = vadd.f32 0.0, %v239
    %v241 = vpop.f32.mrb[0].mxu0
    %242 = vmatprep.mubr.f32.mxu0 0.0
    %v243 = vand.u32 %v49, 4294901760
    %v244 = vsub.f32 %v49, %v243
    %v245 = vand.u32 %v244, 4294901760
    %v246 = vsub.f32 %v244, %v245
    %v247 = vand.u32 %v246, 4294901760
    %248 = vmatmul.mubr.f32.gmra.mrb[0].mxu0 %v247
    %v249 = vpop.f32.mrb[0].mxu0
    %v250 = vadd.f32 0.0, %v249
    %v251 = vpop.f32.mrb[0].mxu0
    %252 = vmatprep.mubr.f32.mxu0 0.0
    %v253 = vand.u32 %v50, 4294901760
    %v254 = vsub.f32 %v50, %v253
    %v255 = vand.u32 %v254, 4294901760
    %v256 = vsub.f32 %v254, %v255
    %v257 = vand.u32 %v256, 4294901760
    %258 = vmatmul.mubr.f32.gmra.mrb[0].mxu0 %v257
    %v259 = vpop.f32.mrb[0].mxu0
    %v260 = vadd.f32 0.0, %v259
    %v261 = vpop.f32.mrb[0].mxu0
    %262 = vmatprep.mubr.f32.mxu0 0.0
    %v263 = vand.u32 %v51, 4294901760
    %v264 = vsub.f32 %v51, %v263
    %v265 = vand.u32 %v264, 4294901760
    %v266 = vsub.f32 %v264, %v265
    %v267 = vand.u32 %v266, 4294901760
    %268 = vmatmul.mubr.f32.gmra.mrb[0].mxu0 %v267
    %v269 = vpop.f32.mrb[0].mxu0
    %v270 = vadd.f32 0.0, %v269
    %v271 = vpop.f32.mrb[0].mxu0
    %272 = vmatprep.mubr.f32.mxu0 0.0
    %v273 = vand.u32 %v52, 4294901760
    %v274 = vsub.f32 %v52, %v273
    %v275 = vand.u32 %v274, 4294901760
    %v276 = vsub.f32 %v274, %v275
    %v277 = vand.u32 %v276, 4294901760
    %278 = vmatmul.mubr.f32.gmra.mrb[0].mxu0 %v277
    %v279 = vpop.f32.mrb[0].mxu0
    %v280 = vadd.f32 0.0, %v279
    %v281 = vpop.f32.mrb[0].mxu0
    %282 = vmatprep.mubr.f32.mxu0 0.0
    %v283 = vand.u32 %v53, 4294901760
    %v284 = vsub.f32 %v53, %v283
    %v285 = vand.u32 %v284, 4294901760
    %v286 = vsub.f32 %v284, %v285
    %v287 = vand.u32 %v286, 4294901760
    %288 = vmatmul.mubr.f32.gmra.mrb[0].mxu0 %v287
    %v289 = vpop.f32.mrb[0].mxu0
    %v290 = vadd.f32 0.0, %v289
    %v291 = vpop.f32.mrb[0].mxu0
    %292 = vmatprep.mubr.f32.mxu0 0.0
    %v293 = vand.u32 %v54, 4294901760
    %v294 = vsub.f32 %v54, %v293
    %v295 = vand.u32 %v294, 4294901760
    %v296 = vsub.f32 %v294, %v295
    %v297 = vand.u32 %v296, 4294901760
    %298 = vmatmul.mubr.f32.gmra.mrb[0].mxu0 %v297
    %v299 = vpop.f32.mrb[0].mxu0
    %v300 = vadd.f32 0.0, %v299
    %v301 = vpop.f32.mrb[0].mxu0
    %302 = vmatprep.mubr.f32.mxu0 0.0
    %v303 = vand.u32 %v55, 4294901760
    %v304 = vsub.f32 %v55, %v303
    %v305 = vand.u32 %v304, 4294901760
    %v306 = vsub.f32 %v304, %v305
    %v307 = vand.u32 %v306, 4294901760
    %308 = vmatmul.mubr.f32.gmra.mrb[0].mxu0 %v307
    %v309 = vpop.f32.mrb[0].mxu0
    %v310 = vadd.f32 0.0, %v309
    %v311 = vpop.f32.mrb[0].mxu0
    %312 = vdwg.mxu0
    %313 = vmatprep.subr.mxu0 0.0
    %v314 = vand.u32 %v56, 4294901760
    %v315 = vsub.f32 %v56, %v314
    %v316 = vand.u32 %v315, 4294901760
    %v317 = vsub.f32 %v315, %v316
    %v318 = vand.u32 %v317, 4294901760
    %319 = vmatpush1.msra.mxu0 %v318
    %320 = vmatprep.subr.mxu0 0.0
    %v321 = vand.u32 %v57, 4294901760
    %v322 = vsub.f32 %v57, %v321
    %v323 = vand.u32 %v322, 4294901760
    %v324 = vsub.f32 %v322, %v323
    %v325 = vand.u32 %v324, 4294901760
    %326 = vmatpush1.msra.mxu0 %v325
    %327 = vmatprep.subr.mxu0 0.0
    %v328 = vand.u32 %v58, 4294901760
    %v329 = vsub.f32 %v58, %v328
    %v330 = vand.u32 %v329, 4294901760
    %v331 = vsub.f32 %v329, %v330
    %v332 = vand.u32 %v331, 4294901760
    %333 = vmatpush1.msra.mxu0 %v332
    %334 = vmatprep.subr.mxu0 0.0
    %v335 = vand.u32 %v59, 4294901760
    %v336 = vsub.f32 %v59, %v335
    %v337 = vand.u32 %v336, 4294901760
    %v338 = vsub.f32 %v336, %v337
    %v339 = vand.u32 %v338, 4294901760
    %340 = vmatpush1.msra.mxu0 %v339
    %341 = vmatprep.subr.mxu0 0.0
    %v342 = vand.u32 %v60, 4294901760
    %v343 = vsub.f32 %v60, %v342
    %v344 = vand.u32 %v343, 4294901760
    %v345 = vsub.f32 %v343, %v344
    %v346 = vand.u32 %v345, 4294901760
    %347 = vmatpush1.msra.mxu0 %v346
    %348 = vmatprep.subr.mxu0 0.0
    %v349 = vand.u32 %v61, 4294901760
    %v350 = vsub.f32 %v61, %v349
    %v351 = vand.u32 %v350, 4294901760
    %v352 = vsub.f32 %v350, %v351
    %v353 = vand.u32 %v352, 4294901760
    %354 = vmatpush1.msra.mxu0 %v353
    %355 = vmatprep.subr.mxu0 0.0
    %v356 = vand.u32 %v62, 4294901760
    %v357 = vsub.f32 %v62, %v356
    %v358 = vand.u32 %v357, 4294901760
    %v359 = vsub.f32 %v357, %v358
    %v360 = vand.u32 %v359, 4294901760
    %361 = vmatpush1.msra.mxu0 %v360
    %362 = vmatprep.subr.mxu0 0.0
    %v363 = vand.u32 %v63, 4294901760
    %v364 = vsub.f32 %v63, %v363
    %v365 = vand.u32 %v364, 4294901760
    %v366 = vsub.f32 %v364, %v365
    %v367 = vand.u32 %v366, 4294901760
    %368 = vmatpush1.msra.mxu0 %v367
    %369 = vmatprep.subr.mxu0 0.0
    %v370 = vand.u32 %v64, 4294901760
    %v371 = vsub.f32 %v64, %v370
    %v372 = vand.u32 %v371, 4294901760
    %v373 = vsub.f32 %v371, %v372
    %v374 = vand.u32 %v373, 4294901760
    %375 = vmatpush1.msra.mxu0 %v374
    %376 = vmatprep.subr.mxu0 0.0
    %v377 = vand.u32 %v65, 4294901760
    %v378 = vsub.f32 %v65, %v377
    %v379 = vand.u32 %v378, 4294901760
    %v380 = vsub.f32 %v378, %v379
    %v381 = vand.u32 %v380, 4294901760
    %382 = vmatpush1.msra.mxu0 %v381
    %383 = vmatprep.subr.mxu0 0.0
    %v384 = vand.u32 %v66, 4294901760
    %v385 = vsub.f32 %v66, %v384
    %v386 = vand.u32 %v385, 4294901760
    %v387 = vsub.f32 %v385, %v386
    %v388 = vand.u32 %v387, 4294901760
    %389 = vmatpush1.msra.mxu0 %v388
    %390 = vmatprep.subr.mxu0 0.0
    %v391 = vand.u32 %v67, 4294901760
    %v392 = vsub.f32 %v67, %v391
    %v393 = vand.u32 %v392, 4294901760
    %v394 = vsub.f32 %v392, %v393
    %v395 = vand.u32 %v394, 4294901760
    %396 = vmatpush1.msra.mxu0 %v395
    %397 = vmatprep.subr.mxu0 0.0
    %v398 = vand.u32 %v68, 4294901760
    %v399 = vsub.f32 %v68, %v398
    %v400 = vand.u32 %v399, 4294901760
    %v401 = vsub.f32 %v399, %v400
    %v402 = vand.u32 %v401, 4294901760
    %403 = vmatpush1.msra.mxu0 %v402
    %404 = vmatprep.subr.mxu0 0.0
    %v405 = vand.u32 %v69, 4294901760
    %v406 = vsub.f32 %v69, %v405
    %v407 = vand.u32 %v406, 4294901760
    %v408 = vsub.f32 %v406, %v407
    %v409 = vand.u32 %v408, 4294901760
    %410 = vmatpush1.msra.mxu0 %v409
    %411 = vmatprep.subr.mxu0 0.0
    %v412 = vand.u32 %v70, 4294901760
    %v413 = vsub.f32 %v70, %v412
    %v414 = vand.u32 %v413, 4294901760
    %v415 = vsub.f32 %v413, %v414
    %v416 = vand.u32 %v415, 4294901760
    %417 = vmatpush1.msra.mxu0 %v416
    %418 = vmatprep.subr.mxu0 0.0
    %v419 = vand.u32 %v71, 4294901760
    %v420 = vsub.f32 %v71, %v419
    %v421 = vand.u32 %v420, 4294901760
    %v422 = vsub.f32 %v420, %v421
    %v423 = vand.u32 %v422, 4294901760
    %424 = vmatpush1.msra.mxu0 %v423
    %425 = vmatprep.subr.mxu0 0.0
    %426 = vmatpush1.msra.mxu0 0.0
    %427 = vmatprep.subr.mxu0 0.0
    %428 = vmatpush1.msra.mxu0 0.0
    %429 = vmatprep.subr.mxu0 0.0
    %430 = vmatpush1.msra.mxu0 0.0
    %431 = vmatprep.subr.mxu0 0.0
    %432 = vmatpush1.msra.mxu0 0.0
    %433 = vmatprep.subr.mxu0 0.0
    %434 = vmatpush1.msra.mxu0 0.0
    %435 = vmatprep.subr.mxu0 0.0
    %436 = vmatpush1.msra.mxu0 0.0
    %437 = vmatprep.subr.mxu0 0.0
    %438 = vmatpush1.msra.mxu0 0.0
    %439 = vmatprep.subr.mxu0 0.0
    %440 = vmatpush1.msra.mxu0 0.0
    %441 = vmatprep.subr.mxu0 0.0
    %442 = vmatpush1.msra.mxu0 0.0
    %443 = vmatprep.subr.mxu0 0.0
    %444 = vmatpush1.msra.mxu0 0.0
    %445 = vmatprep.subr.mxu0 0.0
    %446 = vmatpush1.msra.mxu0 0.0
    %447 = vmatprep.subr.mxu0 0.0
    %448 = vmatpush1.msra.mxu0 0.0
    %449 = vmatprep.subr.mxu0 0.0
    %450 = vmatpush1.msra.mxu0 0.0
    %451 = vmatprep.subr.mxu0 0.0
    %452 = vmatpush1.msra.mxu0 0.0
    %453 = vmatprep.subr.mxu0 0.0
    %454 = vmatpush1.msra.mxu0 0.0
    %455 = vmatprep.subr.mxu0 0.0
    %456 = vmatpush1.msra.mxu0 0.0
    %457 = vmatprep.mubr.f32.mxu0 0.0
    %v458 = vand.u32 %v40, 4294901760
    %459 = vmatmul.mubr.f32.gmra.mrb[0].mxu0 %v458
    %v460 = vpop.f32.mrb[0].mxu0
    %v461 = vadd.f32 %v160, %v460
    %v462 = vpop.f32.mrb[0].mxu0
    %463 = vmatprep.mubr.f32.mxu0 0.0
    %v464 = vand.u32 %v41, 4294901760
    %465 = vmatmul.mubr.f32.gmra.mrb[0].mxu0 %v464
    %v466 = vpop.f32.mrb[0].mxu0
    %v467 = vadd.f32 %v170, %v466
    %v468 = vpop.f32.mrb[0].mxu0
    %469 = vmatprep.mubr.f32.mxu0 0.0
    %v470 = vand.u32 %v42, 4294901760
    %471 = vmatmul.mubr.f32.gmra.mrb[0].mxu0 %v470
    %v472 = vpop.f32.mrb[0].mxu0
    %v473 = vadd.f32 %v180, %v472
    %v474 = vpop.f32.mrb[0].mxu0
    %475 = vmatprep.mubr.f32.mxu0 0.0
    %v476 = vand.u32 %v43, 4294901760
    %477 = vmatmul.mubr.f32.gmra.mrb[0].mxu0 %v476
    %v478 = vpop.f32.mrb[0].mxu0
    %v479 = vadd.f32 %v190, %v478
    %v480 = vpop.f32.mrb[0].mxu0
    %481 = vmatprep.mubr.f32.mxu0 0.0
    %v482 = vand.u32 %v44, 4294901760
    %483 = vmatmul.mubr.f32.gmra.mrb[0].mxu0 %v482
    %v484 = vpop.f32.mrb[0].mxu0
    %v485 = vadd.f32 %v200, %v484
    %v486 = vpop.f32.mrb[0].mxu0
    %487 = vmatprep.mubr.f32.mxu0 0.0
    %v488 = vand.u32 %v45, 4294901760
    %489 = vmatmul.mubr.f32.gmra.mrb[0].mxu0 %v488
    %v490 = vpop.f32.mrb[0].mxu0
    %v491 = vadd.f32 %v210, %v490
    %v492 = vpop.f32.mrb[0].mxu0
    %493 = vmatprep.mubr.f32.mxu0 0.0
    %v494 = vand.u32 %v46, 4294901760
    %495 = vmatmul.mubr.f32.gmra.mrb[0].mxu0 %v494
    %v496 = vpop.f32.mrb[0].mxu0
    %v497 = vadd.f32 %v220, %v496
    %v498 = vpop.f32.mrb[0].mxu0
    %499 = vmatprep.mubr.f32.mxu0 0.0
    %v500 = vand.u32 %v47, 4294901760
    %501 = vmatmul.mubr.f32.gmra.mrb[0].mxu0 %v500
    %v502 = vpop.f32.mrb[0].mxu0
    %v503 = vadd.f32 %v230, %v502
    %v504 = vpop.f32.mrb[0].mxu0
    %505 = vmatprep.mubr.f32.mxu0 0.0
    %v506 = vand.u32 %v48, 4294901760
    %507 = vmatmul.mubr.f32.gmra.mrb[0].mxu0 %v506
    %v508 = vpop.f32.mrb[0].mxu0
    %v509 = vadd.f32 %v240, %v508
    %v510 = vpop.f32.mrb[0].mxu0
    %511 = vmatprep.mubr.f32.mxu0 0.0
    %v512 = vand.u32 %v49, 4294901760
    %513 = vmatmul.mubr.f32.gmra.mrb[0].mxu0 %v512
    %v514 = vpop.f32.mrb[0].mxu0
    %v515 = vadd.f32 %v250, %v514
    %v516 = vpop.f32.mrb[0].mxu0
    %517 = vmatprep.mubr.f32.mxu0 0.0
    %v518 = vand.u32 %v50, 4294901760
    %519 = vmatmul.mubr.f32.gmra.mrb[0].mxu0 %v518
    %v520 = vpop.f32.mrb[0].mxu0
    %v521 = vadd.f32 %v260, %v520
    %v522 = vpop.f32.mrb[0].mxu0
    %523 = vmatprep.mubr.f32.mxu0 0.0
    %v524 = vand.u32 %v51, 4294901760
    %525 = vmatmul.mubr.f32.gmra.mrb[0].mxu0 %v524
    %v526 = vpop.f32.mrb[0].mxu0
    %v527 = vadd.f32 %v270, %v526
    %v528 = vpop.f32.mrb[0].mxu0
    %529 = vmatprep.mubr.f32.mxu0 0.0
    %v530 = vand.u32 %v52, 4294901760
    %531 = vmatmul.mubr.f32.gmra.mrb[0].mxu0 %v530
    %v532 = vpop.f32.mrb[0].mxu0
    %v533 = vadd.f32 %v280, %v532
    %v534 = vpop.f32.mrb[0].mxu0
    %535 = vmatprep.mubr.f32.mxu0 0.0
    %v536 = vand.u32 %v53, 4294901760
    %537 = vmatmul.mubr.f32.gmra.mrb[0].mxu0 %v536
    %v538 = vpop.f32.mrb[0].mxu0
    %v539 = vadd.f32 %v290, %v538
    %v540 = vpop.f32.mrb[0].mxu0
    %541 = vmatprep.mubr.f32.mxu0 0.0
    %v542 = vand.u32 %v54, 4294901760
    %543 = vmatmul.mubr.f32.gmra.mrb[0].mxu0 %v542
    %v544 = vpop.f32.mrb[0].mxu0
    %v545 = vadd.f32 %v300, %v544
    %v546 = vpop.f32.mrb[0].mxu0
    %547 = vmatprep.mubr.f32.mxu0 0.0
    %v548 = vand.u32 %v55, 4294901760
    %549 = vmatmul.mubr.f32.gmra.mrb[0].mxu0 %v548
    %v550 = vpop.f32.mrb[0].mxu0
    %v551 = vadd.f32 %v310, %v550
    %v552 = vpop.f32.mrb[0].mxu0
    %553 = vdwg.mxu0
    %554 = vmatprep.subr.mxu0 0.0
    %v555 = vand.u32 %v56, 4294901760
    %v556 = vsub.f32 %v56, %v555
    %557 = vmatpush1.msra.mxu0 %v556
    %558 = vmatprep.subr.mxu0 0.0
    %v559 = vand.u32 %v57, 4294901760
    %v560 = vsub.f32 %v57, %v559
    %561 = vmatpush1.msra.mxu0 %v560
    %562 = vmatprep.subr.mxu0 0.0
    %v563 = vand.u32 %v58, 4294901760
    %v564 = vsub.f32 %v58, %v563
    %565 = vmatpush1.msra.mxu0 %v564
    %566 = vmatprep.subr.mxu0 0.0
    %v567 = vand.u32 %v59, 4294901760
    %v568 = vsub.f32 %v59, %v567
    %569 = vmatpush1.msra.mxu0 %v568
    %570 = vmatprep.subr.mxu0 0.0
    %v571 = vand.u32 %v60, 4294901760
    %v572 = vsub.f32 %v60, %v571
    %573 = vmatpush1.msra.mxu0 %v572
    %574 = vmatprep.subr.mxu0 0.0
    %v575 = vand.u32 %v61, 4294901760
    %v576 = vsub.f32 %v61, %v575
    %577 = vmatpush1.msra.mxu0 %v576
    %578 = vmatprep.subr.mxu0 0.0
    %v579 = vand.u32 %v62, 4294901760
    %v580 = vsub.f32 %v62, %v579
    %581 = vmatpush1.msra.mxu0 %v580
    %582 = vmatprep.subr.mxu0 0.0
    %v583 = vand.u32 %v63, 4294901760
    %v584 = vsub.f32 %v63, %v583
    %585 = vmatpush1.msra.mxu0 %v584
    %586 = vmatprep.subr.mxu0 0.0
    %v587 = vand.u32 %v64, 4294901760
    %v588 = vsub.f32 %v64, %v587
    %589 = vmatpush1.msra.mxu0 %v588
    %590 = vmatprep.subr.mxu0 0.0
    %v591 = vand.u32 %v65, 4294901760
    %v592 = vsub.f32 %v65, %v591
    %593 = vmatpush1.msra.mxu0 %v592
    %594 = vmatprep.subr.mxu0 0.0
    %v595 = vand.u32 %v66, 4294901760
    %v596 = vsub.f32 %v66, %v595
    %597 = vmatpush1.msra.mxu0 %v596
    %598 = vmatprep.subr.mxu0 0.0
    %v599 = vand.u32 %v67, 4294901760
    %v600 = vsub.f32 %v67, %v599
    %601 = vmatpush1.msra.mxu0 %v600
    %602 = vmatprep.subr.mxu0 0.0
    %v603 = vand.u32 %v68, 4294901760
    %v604 = vsub.f32 %v68, %v603
    %605 = vmatpush1.msra.mxu0 %v604
    %606 = vmatprep.subr.mxu0 0.0
    %v607 = vand.u32 %v69, 4294901760
    %v608 = vsub.f32 %v69, %v607
    %609 = vmatpush1.msra.mxu0 %v608
    %610 = vmatprep.subr.mxu0 0.0
    %v611 = vand.u32 %v70, 4294901760
    %v612 = vsub.f32 %v70, %v611
    %613 = vmatpush1.msra.mxu0 %v612
    %614 = vmatprep.subr.mxu0 0.0
    %v615 = vand.u32 %v71, 4294901760
    %v616 = vsub.f32 %v71, %v615
    %617 = vmatpush1.msra.mxu0 %v616
    %618 = vmatprep.subr.mxu0 0.0
    %619 = vmatpush1.msra.mxu0 0.0
    %620 = vmatprep.subr.mxu0 0.0
    %621 = vmatpush1.msra.mxu0 0.0
    %622 = vmatprep.subr.mxu0 0.0
    %623 = vmatpush1.msra.mxu0 0.0
    %624 = vmatprep.subr.mxu0 0.0
    %625 = vmatpush1.msra.mxu0 0.0
    %626 = vmatprep.subr.mxu0 0.0
    %627 = vmatpush1.msra.mxu0 0.0
    %628 = vmatprep.subr.mxu0 0.0
    %629 = vmatpush1.msra.mxu0 0.0
    %630 = vmatprep.subr.mxu0 0.0
    %631 = vmatpush1.msra.mxu0 0.0
    %632 = vmatprep.subr.mxu0 0.0
    %633 = vmatpush1.msra.mxu0 0.0
    %634 = vmatprep.subr.mxu0 0.0
    %635 = vmatpush1.msra.mxu0 0.0
    %636 = vmatprep.subr.mxu0 0.0
    %637 = vmatpush1.msra.mxu0 0.0
    %638 = vmatprep.subr.mxu0 0.0
    %639 = vmatpush1.msra.mxu0 0.0
    %640 = vmatprep.subr.mxu0 0.0
    %641 = vmatpush1.msra.mxu0 0.0
    %642 = vmatprep.subr.mxu0 0.0
    %643 = vmatpush1.msra.mxu0 0.0
    %644 = vmatprep.subr.mxu0 0.0
    %645 = vmatpush1.msra.mxu0 0.0
    %646 = vmatprep.subr.mxu0 0.0
    %647 = vmatpush1.msra.mxu0 0.0
    %648 = vmatprep.subr.mxu0 0.0
    %649 = vmatpush1.msra.mxu0 0.0
    %650 = vmatprep.mubr.f32.mxu0 0.0
    %v651 = vand.u32 %v40, 4294901760
    %v652 = vsub.f32 %v40, %v651
    %653 = vmatmul.mubr.f32.gmra.mrb[0].mxu0 %v652
    %v654 = vpop.f32.mrb[0].mxu0
    %v655 = vadd.f32 %v461, %v654
    %v656 = vpop.f32.mrb[0].mxu0
    %657 = vmatprep.mubr.f32.mxu0 0.0
    %v658 = vand.u32 %v41, 4294901760
    %v659 = vsub.f32 %v41, %v658
    %660 = vmatmul.mubr.f32.gmra.mrb[0].mxu0 %v659
    %v661 = vpop.f32.mrb[0].mxu0
    %v662 = vadd.f32 %v467, %v661
    %v663 = vpop.f32.mrb[0].mxu0
    %664 = vmatprep.mubr.f32.mxu0 0.0
    %v665 = vand.u32 %v42, 4294901760
    %v666 = vsub.f32 %v42, %v665
    %667 = vmatmul.mubr.f32.gmra.mrb[0].mxu0 %v666
    %v668 = vpop.f32.mrb[0].mxu0
    %v669 = vadd.f32 %v473, %v668
    %v670 = vpop.f32.mrb[0].mxu0
    %671 = vmatprep.mubr.f32.mxu0 0.0
    %v672 = vand.u32 %v43, 4294901760
    %v673 = vsub.f32 %v43, %v672
    %674 = vmatmul.mubr.f32.gmra.mrb[0].mxu0 %v673
    %v675 = vpop.f32.mrb[0].mxu0
    %v676 = vadd.f32 %v479, %v675
    %v677 = vpop.f32.mrb[0].mxu0
    %678 = vmatprep.mubr.f32.mxu0 0.0
    %v679 = vand.u32 %v44, 4294901760
    %v680 = vsub.f32 %v44, %v679
    %681 = vmatmul.mubr.f32.gmra.mrb[0].mxu0 %v680
    %v682 = vpop.f32.mrb[0].mxu0
    %v683 = vadd.f32 %v485, %v682
    %v684 = vpop.f32.mrb[0].mxu0
    %685 = vmatprep.mubr.f32.mxu0 0.0
    %v686 = vand.u32 %v45, 4294901760
    %v687 = vsub.f32 %v45, %v686
    %688 = vmatmul.mubr.f32.gmra.mrb[0].mxu0 %v687
    %v689 = vpop.f32.mrb[0].mxu0
    %v690 = vadd.f32 %v491, %v689
    %v691 = vpop.f32.mrb[0].mxu0
    %692 = vmatprep.mubr.f32.mxu0 0.0
    %v693 = vand.u32 %v46, 4294901760
    %v694 = vsub.f32 %v46, %v693
    %695 = vmatmul.mubr.f32.gmra.mrb[0].mxu0 %v694
    %v696 = vpop.f32.mrb[0].mxu0
    %v697 = vadd.f32 %v497, %v696
    %v698 = vpop.f32.mrb[0].mxu0
    %699 = vmatprep.mubr.f32.mxu0 0.0
    %v700 = vand.u32 %v47, 4294901760
    %v701 = vsub.f32 %v47, %v700
    %702 = vmatmul.mubr.f32.gmra.mrb[0].mxu0 %v701
    %v703 = vpop.f32.mrb[0].mxu0
    %v704 = vadd.f32 %v503, %v703
    %v705 = vpop.f32.mrb[0].mxu0
    %706 = vmatprep.mubr.f32.mxu0 0.0
    %v707 = vand.u32 %v48, 4294901760
    %v708 = vsub.f32 %v48, %v707
    %709 = vmatmul.mubr.f32.gmra.mrb[0].mxu0 %v708
    %v710 = vpop.f32.mrb[0].mxu0
    %v711 = vadd.f32 %v509, %v710
    %v712 = vpop.f32.mrb[0].mxu0
    %713 = vmatprep.mubr.f32.mxu0 0.0
    %v714 = vand.u32 %v49, 4294901760
    %v715 = vsub.f32 %v49, %v714
    %716 = vmatmul.mubr.f32.gmra.mrb[0].mxu0 %v715
    %v717 = vpop.f32.mrb[0].mxu0
    %v718 = vadd.f32 %v515, %v717
    %v719 = vpop.f32.mrb[0].mxu0
    %720 = vmatprep.mubr.f32.mxu0 0.0
    %v721 = vand.u32 %v50, 4294901760
    %v722 = vsub.f32 %v50, %v721
    %723 = vmatmul.mubr.f32.gmra.mrb[0].mxu0 %v722
    %v724 = vpop.f32.mrb[0].mxu0
    %v725 = vadd.f32 %v521, %v724
    %v726 = vpop.f32.mrb[0].mxu0
    %727 = vmatprep.mubr.f32.mxu0 0.0
    %v728 = vand.u32 %v51, 4294901760
    %v729 = vsub.f32 %v51, %v728
    %730 = vmatmul.mubr.f32.gmra.mrb[0].mxu0 %v729
    %v731 = vpop.f32.mrb[0].mxu0
    %v732 = vadd.f32 %v527, %v731
    %v733 = vpop.f32.mrb[0].mxu0
    %734 = vmatprep.mubr.f32.mxu0 0.0
    %v735 = vand.u32 %v52, 4294901760
    %v736 = vsub.f32 %v52, %v735
    %737 = vmatmul.mubr.f32.gmra.mrb[0].mxu0 %v736
    %v738 = vpop.f32.mrb[0].mxu0
    %v739 = vadd.f32 %v533, %v738
    %v740 = vpop.f32.mrb[0].mxu0
    %741 = vmatprep.mubr.f32.mxu0 0.0
    %v742 = vand.u32 %v53, 4294901760
    %v743 = vsub.f32 %v53, %v742
    %744 = vmatmul.mubr.f32.gmra.mrb[0].mxu0 %v743
    %v745 = vpop.f32.mrb[0].mxu0
    %v746 = vadd.f32 %v539, %v745
    %v747 = vpop.f32.mrb[0].mxu0
    %748 = vmatprep.mubr.f32.mxu0 0.0
    %v749 = vand.u32 %v54, 4294901760
    %v750 = vsub.f32 %v54, %v749
    %751 = vmatmul.mubr.f32.gmra.mrb[0].mxu0 %v750
    %v752 = vpop.f32.mrb[0].mxu0
    %v753 = vadd.f32 %v545, %v752
    %v754 = vpop.f32.mrb[0].mxu0
    %755 = vmatprep.mubr.f32.mxu0 0.0
    %v756 = vand.u32 %v55, 4294901760
    %v757 = vsub.f32 %v55, %v756
    %758 = vmatmul.mubr.f32.gmra.mrb[0].mxu0 %v757
    %v759 = vpop.f32.mrb[0].mxu0
    %v760 = vadd.f32 %v551, %v759
    %v761 = vpop.f32.mrb[0].mxu0
    %762 = vdwg.mxu0
    %763 = vmatprep.subr.mxu0 0.0
    %v764 = vand.u32 %v56, 4294901760
    %765 = vmatpush1.msra.mxu0 %v764
    %766 = vmatprep.subr.mxu0 0.0
    %v767 = vand.u32 %v57, 4294901760
    %768 = vmatpush1.msra.mxu0 %v767
    %769 = vmatprep.subr.mxu0 0.0
    %v770 = vand.u32 %v58, 4294901760
    %771 = vmatpush1.msra.mxu0 %v770
    %772 = vmatprep.subr.mxu0 0.0
    %v773 = vand.u32 %v59, 4294901760
    %774 = vmatpush1.msra.mxu0 %v773
    %775 = vmatprep.subr.mxu0 0.0
    %v776 = vand.u32 %v60, 4294901760
    %777 = vmatpush1.msra.mxu0 %v776
    %778 = vmatprep.subr.mxu0 0.0
    %v779 = vand.u32 %v61, 4294901760
    %780 = vmatpush1.msra.mxu0 %v779
    %781 = vmatprep.subr.mxu0 0.0
    %v782 = vand.u32 %v62, 4294901760
    %783 = vmatpush1.msra.mxu0 %v782
    %784 = vmatprep.subr.mxu0 0.0
    %v785 = vand.u32 %v63, 4294901760
    %786 = vmatpush1.msra.mxu0 %v785
    %787 = vmatprep.subr.mxu0 0.0
    %v788 = vand.u32 %v64, 4294901760
    %789 = vmatpush1.msra.mxu0 %v788
    %790 = vmatprep.subr.mxu0 0.0
    %v791 = vand.u32 %v65, 4294901760
    %792 = vmatpush1.msra.mxu0 %v791
    %793 = vmatprep.subr.mxu0 0.0
    %v794 = vand.u32 %v66, 4294901760
    %795 = vmatpush1.msra.mxu0 %v794
    %796 = vmatprep.subr.mxu0 0.0
    %v797 = vand.u32 %v67, 4294901760
    %798 = vmatpush1.msra.mxu0 %v797
    %799 = vmatprep.subr.mxu0 0.0
    %v800 = vand.u32 %v68, 4294901760
    %801 = vmatpush1.msra.mxu0 %v800
    %802 = vmatprep.subr.mxu0 0.0
    %v803 = vand.u32 %v69, 4294901760
    %804 = vmatpush1.msra.mxu0 %v803
    %805 = vmatprep.subr.mxu0 0.0
    %v806 = vand.u32 %v70, 4294901760
    %807 = vmatpush1.msra.mxu0 %v806
    %808 = vmatprep.subr.mxu0 0.0
    %v809 = vand.u32 %v71, 4294901760
    %810 = vmatpush1.msra.mxu0 %v809
    %811 = vmatprep.subr.mxu0 0.0
    %812 = vmatpush1.msra.mxu0 0.0
    %813 = vmatprep.subr.mxu0 0.0
    %814 = vmatpush1.msra.mxu0 0.0
    %815 = vmatprep.subr.mxu0 0.0
    %816 = vmatpush1.msra.mxu0 0.0
    %817 = vmatprep.subr.mxu0 0.0
    %818 = vmatpush1.msra.mxu0 0.0
    %819 = vmatprep.subr.mxu0 0.0
    %820 = vmatpush1.msra.mxu0 0.0
    %821 = vmatprep.subr.mxu0 0.0
    %822 = vmatpush1.msra.mxu0 0.0
    %823 = vmatprep.subr.mxu0 0.0
    %824 = vmatpush1.msra.mxu0 0.0
    %825 = vmatprep.subr.mxu0 0.0
    %826 = vmatpush1.msra.mxu0 0.0
    %827 = vmatprep.subr.mxu0 0.0
    %828 = vmatpush1.msra.mxu0 0.0
    %829 = vmatprep.subr.mxu0 0.0
    %830 = vmatpush1.msra.mxu0 0.0
    %831 = vmatprep.subr.mxu0 0.0
    %832 = vmatpush1.msra.mxu0 0.0
    %833 = vmatprep.subr.mxu0 0.0
    %834 = vmatpush1.msra.mxu0 0.0
    %835 = vmatprep.subr.mxu0 0.0
    %836 = vmatpush1.msra.mxu0 0.0
    %837 = vmatprep.subr.mxu0 0.0
    %838 = vmatpush1.msra.mxu0 0.0
    %839 = vmatprep.subr.mxu0 0.0
    %840 = vmatpush1.msra.mxu0 0.0
    %841 = vmatprep.subr.mxu0 0.0
    %842 = vmatpush1.msra.mxu0 0.0
    %843 = vmatprep.mubr.f32.mxu0 0.0
    %v844 = vand.u32 %v40, 4294901760
    %v845 = vsub.f32 %v40, %v844
    %v846 = vand.u32 %v845, 4294901760
    %847 = vmatmul.mubr.f32.gmra.mrb[0].mxu0 %v846
    %v848 = vpop.f32.mrb[0].mxu0
    %v849 = vadd.f32 %v655, %v848
    %v850 = vpop.f32.mrb[0].mxu0
    %851 = vmatprep.mubr.f32.mxu0 0.0
    %v852 = vand.u32 %v41, 4294901760
    %v853 = vsub.f32 %v41, %v852
    %v854 = vand.u32 %v853, 4294901760
    %855 = vmatmul.mubr.f32.gmra.mrb[0].mxu0 %v854
    %v856 = vpop.f32.mrb[0].mxu0
    %v857 = vadd.f32 %v662, %v856
    %v858 = vpop.f32.mrb[0].mxu0
    %859 = vmatprep.mubr.f32.mxu0 0.0
    %v860 = vand.u32 %v42, 4294901760
    %v861 = vsub.f32 %v42, %v860
    %v862 = vand.u32 %v861, 4294901760
    %863 = vmatmul.mubr.f32.gmra.mrb[0].mxu0 %v862
    %v864 = vpop.f32.mrb[0].mxu0
    %v865 = vadd.f32 %v669, %v864
    %v866 = vpop.f32.mrb[0].mxu0
    %867 = vmatprep.mubr.f32.mxu0 0.0
    %v868 = vand.u32 %v43, 4294901760
    %v869 = vsub.f32 %v43, %v868
    %v870 = vand.u32 %v869, 4294901760
    %871 = vmatmul.mubr.f32.gmra.mrb[0].mxu0 %v870
    %v872 = vpop.f32.mrb[0].mxu0
    %v873 = vadd.f32 %v676, %v872
    %v874 = vpop.f32.mrb[0].mxu0
    %875 = vmatprep.mubr.f32.mxu0 0.0
    %v876 = vand.u32 %v44, 4294901760
    %v877 = vsub.f32 %v44, %v876
    %v878 = vand.u32 %v877, 4294901760
    %879 = vmatmul.mubr.f32.gmra.mrb[0].mxu0 %v878
    %v880 = vpop.f32.mrb[0].mxu0
    %v881 = vadd.f32 %v683, %v880
    %v882 = vpop.f32.mrb[0].mxu0
    %883 = vmatprep.mubr.f32.mxu0 0.0
    %v884 = vand.u32 %v45, 4294901760
    %v885 = vsub.f32 %v45, %v884
    %v886 = vand.u32 %v885, 4294901760
    %887 = vmatmul.mubr.f32.gmra.mrb[0].mxu0 %v886
    %v888 = vpop.f32.mrb[0].mxu0
    %v889 = vadd.f32 %v690, %v888
    %v890 = vpop.f32.mrb[0].mxu0
    %891 = vmatprep.mubr.f32.mxu0 0.0
    %v892 = vand.u32 %v46, 4294901760
    %v893 = vsub.f32 %v46, %v892
    %v894 = vand.u32 %v893, 4294901760
    %895 = vmatmul.mubr.f32.gmra.mrb[0].mxu0 %v894
    %v896 = vpop.f32.mrb[0].mxu0
    %v897 = vadd.f32 %v697, %v896
    %v898 = vpop.f32.mrb[0].mxu0
    %899 = vmatprep.mubr.f32.mxu0 0.0
    %v900 = vand.u32 %v47, 4294901760
    %v901 = vsub.f32 %v47, %v900
    %v902 = vand.u32 %v901, 4294901760
    %903 = vmatmul.mubr.f32.gmra.mrb[0].mxu0 %v902
    %v904 = vpop.f32.mrb[0].mxu0
    %v905 = vadd.f32 %v704, %v904
    %v906 = vpop.f32.mrb[0].mxu0
    %907 = vmatprep.mubr.f32.mxu0 0.0
    %v908 = vand.u32 %v48, 4294901760
    %v909 = vsub.f32 %v48, %v908
    %v910 = vand.u32 %v909, 4294901760
    %911 = vmatmul.mubr.f32.gmra.mrb[0].mxu0 %v910
    %v912 = vpop.f32.mrb[0].mxu0
    %v913 = vadd.f32 %v711, %v912
    %v914 = vpop.f32.mrb[0].mxu0
    %915 = vmatprep.mubr.f32.mxu0 0.0
    %v916 = vand.u32 %v49, 4294901760
    %v917 = vsub.f32 %v49, %v916
    %v918 = vand.u32 %v917, 4294901760
    %919 = vmatmul.mubr.f32.gmra.mrb[0].mxu0 %v918
    %v920 = vpop.f32.mrb[0].mxu0
    %v921 = vadd.f32 %v718, %v920
    %v922 = vpop.f32.mrb[0].mxu0
    %923 = vmatprep.mubr.f32.mxu0 0.0
    %v924 = vand.u32 %v50, 4294901760
    %v925 = vsub.f32 %v50, %v924
    %v926 = vand.u32 %v925, 4294901760
    %927 = vmatmul.mubr.f32.gmra.mrb[0].mxu0 %v926
    %v928 = vpop.f32.mrb[0].mxu0
    %v929 = vadd.f32 %v725, %v928
    %v930 = vpop.f32.mrb[0].mxu0
    %931 = vmatprep.mubr.f32.mxu0 0.0
    %v932 = vand.u32 %v51, 4294901760
    %v933 = vsub.f32 %v51, %v932
    %v934 = vand.u32 %v933, 4294901760
    %935 = vmatmul.mubr.f32.gmra.mrb[0].mxu0 %v934
    %v936 = vpop.f32.mrb[0].mxu0
    %v937 = vadd.f32 %v732, %v936
    %v938 = vpop.f32.mrb[0].mxu0
    %939 = vmatprep.mubr.f32.mxu0 0.0
    %v940 = vand.u32 %v52, 4294901760
    %v941 = vsub.f32 %v52, %v940
    %v942 = vand.u32 %v941, 4294901760
    %943 = vmatmul.mubr.f32.gmra.mrb[0].mxu0 %v942
    %v944 = vpop.f32.mrb[0].mxu0
    %v945 = vadd.f32 %v739, %v944
    %v946 = vpop.f32.mrb[0].mxu0
    %947 = vmatprep.mubr.f32.mxu0 0.0
    %v948 = vand.u32 %v53, 4294901760
    %v949 = vsub.f32 %v53, %v948
    %v950 = vand.u32 %v949, 4294901760
    %951 = vmatmul.mubr.f32.gmra.mrb[0].mxu0 %v950
    %v952 = vpop.f32.mrb[0].mxu0
    %v953 = vadd.f32 %v746, %v952
    %v954 = vpop.f32.mrb[0].mxu0
    %955 = vmatprep.mubr.f32.mxu0 0.0
    %v956 = vand.u32 %v54, 4294901760
    %v957 = vsub.f32 %v54, %v956
    %v958 = vand.u32 %v957, 4294901760
    %959 = vmatmul.mubr.f32.gmra.mrb[0].mxu0 %v958
    %v960 = vpop.f32.mrb[0].mxu0
    %v961 = vadd.f32 %v753, %v960
    %v962 = vpop.f32.mrb[0].mxu0
    %963 = vmatprep.mubr.f32.mxu0 0.0
    %v964 = vand.u32 %v55, 4294901760
    %v965 = vsub.f32 %v55, %v964
    %v966 = vand.u32 %v965, 4294901760
    %967 = vmatmul.mubr.f32.gmra.mrb[0].mxu0 %v966
    %v968 = vpop.f32.mrb[0].mxu0
    %v969 = vadd.f32 %v760, %v968
    %v970 = vpop.f32.mrb[0].mxu0
    %971 = vdwg.mxu0
    %972 = vmatprep.subr.mxu0 0.0
    %v973 = vand.u32 %v56, 4294901760
    %v974 = vsub.f32 %v56, %v973
    %v975 = vand.u32 %v974, 4294901760
    %976 = vmatpush1.msra.mxu0 %v975
    %977 = vmatprep.subr.mxu0 0.0
    %v978 = vand.u32 %v57, 4294901760
    %v979 = vsub.f32 %v57, %v978
    %v980 = vand.u32 %v979, 4294901760
    %981 = vmatpush1.msra.mxu0 %v980
    %982 = vmatprep.subr.mxu0 0.0
    %v983 = vand.u32 %v58, 4294901760
    %v984 = vsub.f32 %v58, %v983
    %v985 = vand.u32 %v984, 4294901760
    %986 = vmatpush1.msra.mxu0 %v985
    %987 = vmatprep.subr.mxu0 0.0
    %v988 = vand.u32 %v59, 4294901760
    %v989 = vsub.f32 %v59, %v988
    %v990 = vand.u32 %v989, 4294901760
    %991 = vmatpush1.msra.mxu0 %v990
    %992 = vmatprep.subr.mxu0 0.0
    %v993 = vand.u32 %v60, 4294901760
    %v994 = vsub.f32 %v60, %v993
    %v995 = vand.u32 %v994, 4294901760
    %996 = vmatpush1.msra.mxu0 %v995
    %997 = vmatprep.subr.mxu0 0.0
    %v998 = vand.u32 %v61, 4294901760
    %v999 = vsub.f32 %v61, %v998
    %v1000 = vand.u32 %v999, 4294901760
    %1001 = vmatpush1.msra.mxu0 %v1000
    %1002 = vmatprep.subr.mxu0 0.0
    %v1003 = vand.u32 %v62, 4294901760
    %v1004 = vsub.f32 %v62, %v1003
    %v1005 = vand.u32 %v1004, 4294901760
    %1006 = vmatpush1.msra.mxu0 %v1005
    %1007 = vmatprep.subr.mxu0 0.0
    %v1008 = vand.u32 %v63, 4294901760
    %v1009 = vsub.f32 %v63, %v1008
    %v1010 = vand.u32 %v1009, 4294901760
    %1011 = vmatpush1.msra.mxu0 %v1010
    %1012 = vmatprep.subr.mxu0 0.0
    %v1013 = vand.u32 %v64, 4294901760
    %v1014 = vsub.f32 %v64, %v1013
    %v1015 = vand.u32 %v1014, 4294901760
    %1016 = vmatpush1.msra.mxu0 %v1015
    %1017 = vmatprep.subr.mxu0 0.0
    %v1018 = vand.u32 %v65, 4294901760
    %v1019 = vsub.f32 %v65, %v1018
    %v1020 = vand.u32 %v1019, 4294901760
    %1021 = vmatpush1.msra.mxu0 %v1020
    %1022 = vmatprep.subr.mxu0 0.0
    %v1023 = vand.u32 %v66, 4294901760
    %v1024 = vsub.f32 %v66, %v1023
    %v1025 = vand.u32 %v1024, 4294901760
    %1026 = vmatpush1.msra.mxu0 %v1025
    %1027 = vmatprep.subr.mxu0 0.0
    %v1028 = vand.u32 %v67, 4294901760
    %v1029 = vsub.f32 %v67, %v1028
    %v1030 = vand.u32 %v1029, 4294901760
    %1031 = vmatpush1.msra.mxu0 %v1030
    %1032 = vmatprep.subr.mxu0 0.0
    %v1033 = vand.u32 %v68, 4294901760
    %v1034 = vsub.f32 %v68, %v1033
    %v1035 = vand.u32 %v1034, 4294901760
    %1036 = vmatpush1.msra.mxu0 %v1035
    %1037 = vmatprep.subr.mxu0 0.0
    %v1038 = vand.u32 %v69, 4294901760
    %v1039 = vsub.f32 %v69, %v1038
    %v1040 = vand.u32 %v1039, 4294901760
    %1041 = vmatpush1.msra.mxu0 %v1040
    %1042 = vmatprep.subr.mxu0 0.0
    %v1043 = vand.u32 %v70, 4294901760
    %v1044 = vsub.f32 %v70, %v1043
    %v1045 = vand.u32 %v1044, 4294901760
    %1046 = vmatpush1.msra.mxu0 %v1045
    %1047 = vmatprep.subr.mxu0 0.0
    %v1048 = vand.u32 %v71, 4294901760
    %v1049 = vsub.f32 %v71, %v1048
    %v1050 = vand.u32 %v1049, 4294901760
    %1051 = vmatpush1.msra.mxu0 %v1050
    %1052 = vmatprep.subr.mxu0 0.0
    %1053 = vmatpush1.msra.mxu0 0.0
    %1054 = vmatprep.subr.mxu0 0.0
    %1055 = vmatpush1.msra.mxu0 0.0
    %1056 = vmatprep.subr.mxu0 0.0
    %1057 = vmatpush1.msra.mxu0 0.0
    %1058 = vmatprep.subr.mxu0 0.0
    %1059 = vmatpush1.msra.mxu0 0.0
    %1060 = vmatprep.subr.mxu0 0.0
    %1061 = vmatpush1.msra.mxu0 0.0
    %1062 = vmatprep.subr.mxu0 0.0
    %1063 = vmatpush1.msra.mxu0 0.0
    %1064 = vmatprep.subr.mxu0 0.0
    %1065 = vmatpush1.msra.mxu0 0.0
    %1066 = vmatprep.subr.mxu0 0.0
    %1067 = vmatpush1.msra.mxu0 0.0
    %1068 = vmatprep.subr.mxu0 0.0
    %1069 = vmatpush1.msra.mxu0 0.0
    %1070 = vmatprep.subr.mxu0 0.0
    %1071 = vmatpush1.msra.mxu0 0.0
    %1072 = vmatprep.subr.mxu0 0.0
    %1073 = vmatpush1.msra.mxu0 0.0
    %1074 = vmatprep.subr.mxu0 0.0
    %1075 = vmatpush1.msra.mxu0 0.0
    %1076 = vmatprep.subr.mxu0 0.0
    %1077 = vmatpush1.msra.mxu0 0.0
    %1078 = vmatprep.subr.mxu0 0.0
    %1079 = vmatpush1.msra.mxu0 0.0
    %1080 = vmatprep.subr.mxu0 0.0
    %1081 = vmatpush1.msra.mxu0 0.0
    %1082 = vmatprep.subr.mxu0 0.0
    %1083 = vmatpush1.msra.mxu0 0.0
    %1084 = vmatprep.mubr.f32.mxu0 0.0
    %v1085 = vand.u32 %v40, 4294901760
    %1086 = vmatmul.mubr.f32.gmra.mrb[0].mxu0 %v1085
    %v1087 = vpop.f32.mrb[0].mxu0
    %v1088 = vadd.f32 %v849, %v1087
    %v1089 = vpop.f32.mrb[0].mxu0
    %1090 = vmatprep.mubr.f32.mxu0 0.0
    %v1091 = vand.u32 %v41, 4294901760
    %1092 = vmatmul.mubr.f32.gmra.mrb[0].mxu0 %v1091
    %v1093 = vpop.f32.mrb[0].mxu0
    %v1094 = vadd.f32 %v857, %v1093
    %v1095 = vpop.f32.mrb[0].mxu0
    %1096 = vmatprep.mubr.f32.mxu0 0.0
    %v1097 = vand.u32 %v42, 4294901760
    %1098 = vmatmul.mubr.f32.gmra.mrb[0].mxu0 %v1097
    %v1099 = vpop.f32.mrb[0].mxu0
    %v1100 = vadd.f32 %v865, %v1099
    %v1101 = vpop.f32.mrb[0].mxu0
    %1102 = vmatprep.mubr.f32.mxu0 0.0
    %v1103 = vand.u32 %v43, 4294901760
    %1104 = vmatmul.mubr.f32.gmra.mrb[0].mxu0 %v1103
    %v1105 = vpop.f32.mrb[0].mxu0
    %v1106 = vadd.f32 %v873, %v1105
    %v1107 = vpop.f32.mrb[0].mxu0
    %1108 = vmatprep.mubr.f32.mxu0 0.0
    %v1109 = vand.u32 %v44, 4294901760
    %1110 = vmatmul.mubr.f32.gmra.mrb[0].mxu0 %v1109
    %v1111 = vpop.f32.mrb[0].mxu0
    %v1112 = vadd.f32 %v881, %v1111
    %v1113 = vpop.f32.mrb[0].mxu0
    %1114 = vmatprep.mubr.f32.mxu0 0.0
    %v1115 = vand.u32 %v45, 4294901760
    %1116 = vmatmul.mubr.f32.gmra.mrb[0].mxu0 %v1115
    %v1117 = vpop.f32.mrb[0].mxu0
    %v1118 = vadd.f32 %v889, %v1117
    %v1119 = vpop.f32.mrb[0].mxu0
    %1120 = vmatprep.mubr.f32.mxu0 0.0
    %v1121 = vand.u32 %v46, 4294901760
    %1122 = vmatmul.mubr.f32.gmra.mrb[0].mxu0 %v1121
    %v1123 = vpop.f32.mrb[0].mxu0
    %v1124 = vadd.f32 %v897, %v1123
    %v1125 = vpop.f32.mrb[0].mxu0
    %1126 = vmatprep.mubr.f32.mxu0 0.0
    %v1127 = vand.u32 %v47, 4294901760
    %1128 = vmatmul.mubr.f32.gmra.mrb[0].mxu0 %v1127
    %v1129 = vpop.f32.mrb[0].mxu0
    %v1130 = vadd.f32 %v905, %v1129
    %v1131 = vpop.f32.mrb[0].mxu0
    %1132 = vmatprep.mubr.f32.mxu0 0.0
    %v1133 = vand.u32 %v48, 4294901760
    %1134 = vmatmul.mubr.f32.gmra.mrb[0].mxu0 %v1133
    %v1135 = vpop.f32.mrb[0].mxu0
    %v1136 = vadd.f32 %v913, %v1135
    %v1137 = vpop.f32.mrb[0].mxu0
    %1138 = vmatprep.mubr.f32.mxu0 0.0
    %v1139 = vand.u32 %v49, 4294901760
    %1140 = vmatmul.mubr.f32.gmra.mrb[0].mxu0 %v1139
    %v1141 = vpop.f32.mrb[0].mxu0
    %v1142 = vadd.f32 %v921, %v1141
    %v1143 = vpop.f32.mrb[0].mxu0
    %1144 = vmatprep.mubr.f32.mxu0 0.0
    %v1145 = vand.u32 %v50, 4294901760
    %1146 = vmatmul.mubr.f32.gmra.mrb[0].mxu0 %v1145
    %v1147 = vpop.f32.mrb[0].mxu0
    %v1148 = vadd.f32 %v929, %v1147
    %v1149 = vpop.f32.mrb[0].mxu0
    %1150 = vmatprep.mubr.f32.mxu0 0.0
    %v1151 = vand.u32 %v51, 4294901760
    %1152 = vmatmul.mubr.f32.gmra.mrb[0].mxu0 %v1151
    %v1153 = vpop.f32.mrb[0].mxu0
    %v1154 = vadd.f32 %v937, %v1153
    %v1155 = vpop.f32.mrb[0].mxu0
    %1156 = vmatprep.mubr.f32.mxu0 0.0
    %v1157 = vand.u32 %v52, 4294901760
    %1158 = vmatmul.mubr.f32.gmra.mrb[0].mxu0 %v1157
    %v1159 = vpop.f32.mrb[0].mxu0
    %v1160 = vadd.f32 %v945, %v1159
    %v1161 = vpop.f32.mrb[0].mxu0
    %1162 = vmatprep.mubr.f32.mxu0 0.0
    %v1163 = vand.u32 %v53, 4294901760
    %1164 = vmatmul.mubr.f32.gmra.mrb[0].mxu0 %v1163
    %v1165 = vpop.f32.mrb[0].mxu0
    %v1166 = vadd.f32 %v953, %v1165
    %v1167 = vpop.f32.mrb[0].mxu0
    %1168 = vmatprep.mubr.f32.mxu0 0.0
    %v1169 = vand.u32 %v54, 4294901760
    %1170 = vmatmul.mubr.f32.gmra.mrb[0].mxu0 %v1169
    %v1171 = vpop.f32.mrb[0].mxu0
    %v1172 = vadd.f32 %v961, %v1171
    %v1173 = vpop.f32.mrb[0].mxu0
    %1174 = vmatprep.mubr.f32.mxu0 0.0
    %v1175 = vand.u32 %v55, 4294901760
    %1176 = vmatmul.mubr.f32.gmra.mrb[0].mxu0 %v1175
    %v1177 = vpop.f32.mrb[0].mxu0
    %v1178 = vadd.f32 %v969, %v1177
    %v1179 = vpop.f32.mrb[0].mxu0
    %1180 = vdwg.mxu0
    %1181 = vmatprep.subr.mxu0 0.0
    %v1182 = vand.u32 %v56, 4294901760
    %1183 = vmatpush1.msra.mxu0 %v1182
    %1184 = vmatprep.subr.mxu0 0.0
    %v1185 = vand.u32 %v57, 4294901760
    %1186 = vmatpush1.msra.mxu0 %v1185
    %1187 = vmatprep.subr.mxu0 0.0
    %v1188 = vand.u32 %v58, 4294901760
    %1189 = vmatpush1.msra.mxu0 %v1188
    %1190 = vmatprep.subr.mxu0 0.0
    %v1191 = vand.u32 %v59, 4294901760
    %1192 = vmatpush1.msra.mxu0 %v1191
    %1193 = vmatprep.subr.mxu0 0.0
    %v1194 = vand.u32 %v60, 4294901760
    %1195 = vmatpush1.msra.mxu0 %v1194
    %1196 = vmatprep.subr.mxu0 0.0
    %v1197 = vand.u32 %v61, 4294901760
    %1198 = vmatpush1.msra.mxu0 %v1197
    %1199 = vmatprep.subr.mxu0 0.0
    %v1200 = vand.u32 %v62, 4294901760
    %1201 = vmatpush1.msra.mxu0 %v1200
    %1202 = vmatprep.subr.mxu0 0.0
    %v1203 = vand.u32 %v63, 4294901760
    %1204 = vmatpush1.msra.mxu0 %v1203
    %1205 = vmatprep.subr.mxu0 0.0
    %v1206 = vand.u32 %v64, 4294901760
    %1207 = vmatpush1.msra.mxu0 %v1206
    %1208 = vmatprep.subr.mxu0 0.0
    %v1209 = vand.u32 %v65, 4294901760
    %1210 = vmatpush1.msra.mxu0 %v1209
    %1211 = vmatprep.subr.mxu0 0.0
    %v1212 = vand.u32 %v66, 4294901760
    %1213 = vmatpush1.msra.mxu0 %v1212
    %1214 = vmatprep.subr.mxu0 0.0
    %v1215 = vand.u32 %v67, 4294901760
    %1216 = vmatpush1.msra.mxu0 %v1215
    %1217 = vmatprep.subr.mxu0 0.0
    %v1218 = vand.u32 %v68, 4294901760
    %1219 = vmatpush1.msra.mxu0 %v1218
    %1220 = vmatprep.subr.mxu0 0.0
    %v1221 = vand.u32 %v69, 4294901760
    %1222 = vmatpush1.msra.mxu0 %v1221
    %1223 = vmatprep.subr.mxu0 0.0
    %v1224 = vand.u32 %v70, 4294901760
    %1225 = vmatpush1.msra.mxu0 %v1224
    %1226 = vmatprep.subr.mxu0 0.0
    %v1227 = vand.u32 %v71, 4294901760
    %1228 = vmatpush1.msra.mxu0 %v1227
    %1229 = vmatprep.subr.mxu0 0.0
    %1230 = vmatpush1.msra.mxu0 0.0
    %1231 = vmatprep.subr.mxu0 0.0
    %1232 = vmatpush1.msra.mxu0 0.0
    %1233 = vmatprep.subr.mxu0 0.0
    %1234 = vmatpush1.msra.mxu0 0.0
    %1235 = vmatprep.subr.mxu0 0.0
    %1236 = vmatpush1.msra.mxu0 0.0
    %1237 = vmatprep.subr.mxu0 0.0
    %1238 = vmatpush1.msra.mxu0 0.0
    %1239 = vmatprep.subr.mxu0 0.0
    %1240 = vmatpush1.msra.mxu0 0.0
    %1241 = vmatprep.subr.mxu0 0.0
    %1242 = vmatpush1.msra.mxu0 0.0
    %1243 = vmatprep.subr.mxu0 0.0
    %1244 = vmatpush1.msra.mxu0 0.0
    %1245 = vmatprep.subr.mxu0 0.0
    %1246 = vmatpush1.msra.mxu0 0.0
    %1247 = vmatprep.subr.mxu0 0.0
    %1248 = vmatpush1.msra.mxu0 0.0
    %1249 = vmatprep.subr.mxu0 0.0
    %1250 = vmatpush1.msra.mxu0 0.0
    %1251 = vmatprep.subr.mxu0 0.0
    %1252 = vmatpush1.msra.mxu0 0.0
    %1253 = vmatprep.subr.mxu0 0.0
    %1254 = vmatpush1.msra.mxu0 0.0
    %1255 = vmatprep.subr.mxu0 0.0
    %1256 = vmatpush1.msra.mxu0 0.0
    %1257 = vmatprep.subr.mxu0 0.0
    %1258 = vmatpush1.msra.mxu0 0.0
    %1259 = vmatprep.subr.mxu0 0.0
    %1260 = vmatpush1.msra.mxu0 0.0
    %1261 = vmatprep.mubr.f32.mxu0 0.0
    %v1262 = vand.u32 %v40, 4294901760
    %1263 = vmatmul.mubr.f32.gmra.mrb[0].mxu0 %v1262
    %v1264 = vpop.f32.mrb[0].mxu0
    %v1265 = vadd.f32 %v1088, %v1264
    %v1266 = vpop.f32.mrb[0].mxu0
    %1267 = vmatprep.mubr.f32.mxu0 0.0
    %v1268 = vand.u32 %v41, 4294901760
    %1269 = vmatmul.mubr.f32.gmra.mrb[0].mxu0 %v1268
    %v1270 = vpop.f32.mrb[0].mxu0
    %v1271 = vadd.f32 %v1094, %v1270
    %v1272 = vpop.f32.mrb[0].mxu0
    %1273 = vmatprep.mubr.f32.mxu0 0.0
    %v1274 = vand.u32 %v42, 4294901760
    %1275 = vmatmul.mubr.f32.gmra.mrb[0].mxu0 %v1274
    %v1276 = vpop.f32.mrb[0].mxu0
    %v1277 = vadd.f32 %v1100, %v1276
    %v1278 = vpop.f32.mrb[0].mxu0
    %1279 = vmatprep.mubr.f32.mxu0 0.0
    %v1280 = vand.u32 %v43, 4294901760
    %1281 = vmatmul.mubr.f32.gmra.mrb[0].mxu0 %v1280
    %v1282 = vpop.f32.mrb[0].mxu0
    %v1283 = vadd.f32 %v1106, %v1282
    %v1284 = vpop.f32.mrb[0].mxu0
    %1285 = vmatprep.mubr.f32.mxu0 0.0
    %v1286 = vand.u32 %v44, 4294901760
    %1287 = vmatmul.mubr.f32.gmra.mrb[0].mxu0 %v1286
    %v1288 = vpop.f32.mrb[0].mxu0
    %v1289 = vadd.f32 %v1112, %v1288
    %v1290 = vpop.f32.mrb[0].mxu0
    %1291 = vmatprep.mubr.f32.mxu0 0.0
    %v1292 = vand.u32 %v45, 4294901760
    %1293 = vmatmul.mubr.f32.gmra.mrb[0].mxu0 %v1292
    %v1294 = vpop.f32.mrb[0].mxu0
    %v1295 = vadd.f32 %v1118, %v1294
    %v1296 = vpop.f32.mrb[0].mxu0
    %1297 = vmatprep.mubr.f32.mxu0 0.0
    %v1298 = vand.u32 %v46, 4294901760
    %1299 = vmatmul.mubr.f32.gmra.mrb[0].mxu0 %v1298
    %v1300 = vpop.f32.mrb[0].mxu0
    %v1301 = vadd.f32 %v1124, %v1300
    %v1302 = vpop.f32.mrb[0].mxu0
    %1303 = vmatprep.mubr.f32.mxu0 0.0
    %v1304 = vand.u32 %v47, 4294901760
    %1305 = vmatmul.mubr.f32.gmra.mrb[0].mxu0 %v1304
    %v1306 = vpop.f32.mrb[0].mxu0
    %v1307 = vadd.f32 %v1130, %v1306
    %v1308 = vpop.f32.mrb[0].mxu0
    %1309 = vmatprep.mubr.f32.mxu0 0.0
    %v1310 = vand.u32 %v48, 4294901760
    %1311 = vmatmul.mubr.f32.gmra.mrb[0].mxu0 %v1310
    %v1312 = vpop.f32.mrb[0].mxu0
    %v1313 = vadd.f32 %v1136, %v1312
    %v1314 = vpop.f32.mrb[0].mxu0
    %1315 = vmatprep.mubr.f32.mxu0 0.0
    %v1316 = vand.u32 %v49, 4294901760
    %1317 = vmatmul.mubr.f32.gmra.mrb[0].mxu0 %v1316
    %v1318 = vpop.f32.mrb[0].mxu0
    %v1319 = vadd.f32 %v1142, %v1318
    %v1320 = vpop.f32.mrb[0].mxu0
    %1321 = vmatprep.mubr.f32.mxu0 0.0
    %v1322 = vand.u32 %v50, 4294901760
    %1323 = vmatmul.mubr.f32.gmra.mrb[0].mxu0 %v1322
    %v1324 = vpop.f32.mrb[0].mxu0
    %v1325 = vadd.f32 %v1148, %v1324
    %v1326 = vpop.f32.mrb[0].mxu0
    %1327 = vmatprep.mubr.f32.mxu0 0.0
    %v1328 = vand.u32 %v51, 4294901760
    %1329 = vmatmul.mubr.f32.gmra.mrb[0].mxu0 %v1328
    %v1330 = vpop.f32.mrb[0].mxu0
    %v1331 = vadd.f32 %v1154, %v1330
    %v1332 = vpop.f32.mrb[0].mxu0
    %1333 = vmatprep.mubr.f32.mxu0 0.0
    %v1334 = vand.u32 %v52, 4294901760
    %1335 = vmatmul.mubr.f32.gmra.mrb[0].mxu0 %v1334
    %v1336 = vpop.f32.mrb[0].mxu0
    %v1337 = vadd.f32 %v1160, %v1336
    %v1338 = vpop.f32.mrb[0].mxu0
    %1339 = vmatprep.mubr.f32.mxu0 0.0
    %v1340 = vand.u32 %v53, 4294901760
    %1341 = vmatmul.mubr.f32.gmra.mrb[0].mxu0 %v1340
    %v1342 = vpop.f32.mrb[0].mxu0
    %v1343 = vadd.f32 %v1166, %v1342
    %v1344 = vpop.f32.mrb[0].mxu0
    %1345 = vmatprep.mubr.f32.mxu0 0.0
    %v1346 = vand.u32 %v54, 4294901760
    %1347 = vmatmul.mubr.f32.gmra.mrb[0].mxu0 %v1346
    %v1348 = vpop.f32.mrb[0].mxu0
    %v1349 = vadd.f32 %v1172, %v1348
    %v1350 = vpop.f32.mrb[0].mxu0
    %1351 = vmatprep.mubr.f32.mxu0 0.0
    %v1352 = vand.u32 %v55, 4294901760
    %1353 = vmatmul.mubr.f32.gmra.mrb[0].mxu0 %v1352
    %v1354 = vpop.f32.mrb[0].mxu0
    %v1355 = vadd.f32 %v1178, %v1354
    %v1356 = vpop.f32.mrb[0].mxu0
    %1357 = vdwg.mxu0
    %1358 = vst [vmem:[#allocation7] sm:$0xff] %v1265
    %1359 = vst [vmem:[#allocation7 + $0x8] sm:$0xff] %v1271
    %1360 = vst [vmem:[#allocation7 + $0x10] sm:$0xff] %v1277
    %1361 = vst [vmem:[#allocation7 + $0x18] sm:$0xff] %v1283
    %1362 = vst [vmem:[#allocation7 + $0x20] sm:$0xff] %v1289
    %1363 = vst [vmem:[#allocation7 + $0x28] sm:$0xff] %v1295
    %1364 = vst [vmem:[#allocation7 + $0x30] sm:$0xff] %v1301
    %1365 = vst [vmem:[#allocation7 + $0x38] sm:$0xff] %v1307
    %1366 = vst [vmem:[#allocation7 + $0x40] sm:$0xff] %v1313
    %1367 = vst [vmem:[#allocation7 + $0x48] sm:$0xff] %v1319
    %1368 = vst [vmem:[#allocation7 + $0x50] sm:$0xff] %v1325
    %1369 = vst [vmem:[#allocation7 + $0x58] sm:$0xff] %v1331
    %1370 = vst [vmem:[#allocation7 + $0x60] sm:$0xff] %v1337
    %1371 = vst [vmem:[#allocation7 + $0x68] sm:$0xff] %v1343
    %1372 = vst [vmem:[#allocation7 + $0x70] sm:$0xff] %v1349
    %1373 = vst [vmem:[#allocation7 + $0x78] sm:$0xff] %v1355
    // Predicated region
    $region18: #{tpu_custom_call.1} parent=1 // pred_check
      _
    $region19: #{tpu_custom_call.1} parent=1 // pred_check_branch
      %1375 = sbr.rel (0) target = $region21
    $region20: #{tpu_custom_call.1} parent=1 // pred_region
      %s1377 = ssub.s32 2048, 2048
      %1378 = vsyncadd [#allocation4], %s1377
      %s1379 = sshll.u32 [#allocation7], 4
      %s1380 = int_to_ptr.vmem [resolvable:$true] %s1379
      %1385 = dma.vmem_to_hbm [thread:$0]  %s1380, 2048, %s2, [#allocation4], 128, 128, 8
    $region21: #{tpu_custom_call.1} parent=1 // pred_fallthru
      _
    // Predicated region
    $region22: #{tpu_custom_call.1} parent=1 // pred_check
      _
    $region23: #{tpu_custom_call.1} parent=1 // pred_check_branch
      %1387 = sbr.rel (0) target = $region25
    $region24: #{tpu_custom_call.1} parent=1 // pred_region
      %1388 = dma.done [#allocation4], 2048
    $region25: #{tpu_custom_call.1} parent=1 // pred_fallthru
      _
    %1389 = vsyncpa [#allocation3], 1
    %1390 = vsyncpa [#allocation6], 1
    %1391 = vsyncpa [#allocation4], 1

// kernel: tpu_custom_call.1
$region0: #{tpu_custom_call.1}
  #allocation0 [shape = 'u32[]', space=smem, size = 0x4, offset = 0x4, fixed_abs, tag = 'smem constant byte address 0x4 - core index']
  #allocation1 [shape = 'u32[144,128]{1,0:T(1,128)}', space=vmem, size = 0x12000, scoped, tag = 'internal scratch']
  %s0 = inlined_call_operand.hbm [shape: f32[4,16,16], index: 0, kind: input, shape index: {}]
  %s1 = inlined_call_operand.hbm [shape: f32[16,16], index: 1, kind: input, shape index: {}]
  %s2 = inlined_call_operand.hbm [shape: f32[16,16], index: 2, kind: input, shape index: {}]
  %s3 = inlined_call_operand.hbm [shape: f32[16,16], index: 3, kind: input, shape index: {}]
  %s4 = inlined_call_operand.hbm [shape: f32[16,9], index: 4, kind: input, shape index: {}]
  %s5 = inlined_call_operand.vmem [shape: f32[16,9], index: 5, kind: input, shape index: {}]
  %s6 = inlined_call_operand.vmem [shape: f32[4,16,9], index: 6, kind: output, shape index: {0}]
  %s7 = inlined_call_operand.vmem [shape: f32[4,16,9], index: 7, kind: output, shape index: {1}]
  %8 = xla_tuple %s6, %s7
  %s9 = sld [smem:[#allocation0]]
  $region85: #{tpu_custom_call.1} parent=0
    _
  %s11 = ssub.s32 1, %s9
  %s12 = scalar_select 0, %s11, %s9
  $region1: #{tpu_custom_call.1} parent=0
    #allocation2 [shape = 'u8[32768]{0}', space=vmem, size = 0x8000, scoped, tag = 'input window, operand 0']
    #allocation3 [shape = 's32[2]{0}', space=sflag, size = 0x8, scoped, tag = 'scoped memory for tpu_custom_call.1']
    #allocation4 [shape = 'u8[8192]{0}', space=vmem, size = 0x2000, scoped, tag = 'input window, operand 1, single buffered']
    #allocation5 [shape = 's32[1]{0}', space=sflag, size = 0x4, scoped, tag = 'scoped memory for tpu_custom_call.1']
    #allocation6 [shape = 'u8[8192]{0}', space=vmem, size = 0x2000, scoped, tag = 'input window, operand 2, single buffered']
    #allocation7 [shape = 'u8[8192]{0}', space=vmem, size = 0x2000, scoped, tag = 'input window, operand 3, single buffered']
    #allocation8 [shape = 's32[1]{0}', space=sflag, size = 0x4, scoped, tag = 'scoped memory for tpu_custom_call.1']
    #allocation9 [shape = 'u8[8192]{0}', space=vmem, size = 0x2000, scoped, tag = 'input window, operand 4, single buffered']
    %13 = vsyncpa [#allocation3], 0
    %s14 = scalar_lea.sflag [#allocation3], 1
    %15 = vsyncpa %s14, 0
    %16 = vsyncpa [#allocation5], 0
    %17 = vsyncpa [#allocation8], 0
    loop: start=0, step=1, limit=4
    $region2: #{tpu_custom_call.1} parent=1 // loop_pre_header
      _
    $region3: #{tpu_custom_call.1} parent=1 // loop_header
      %s19 = sphi 0, %s23
      %p20 = scmp.ge.s32.totalorder %s19, 4
      %s29 = sphi 0, %s31
      %s32 = sphi 0, %s29
      %s33 = sphi 0, %s32
      %s49 = sphi 0, %s33
      %s53 = sphi 0, %s53
      %s55 = sphi 0, %s53
      %s56 = sphi 0, %s55
      %s70 = sphi 0, %s56
      %s74 = sphi 0, %s74
      %s76 = sphi 0, %s74
      %s77 = sphi 0, %s76
      %s91 = sphi 0, %s77
      %s95 = sphi 0, %s95
      %s97 = sphi 0, %s95
      %s98 = sphi 0, %s97
      %s112 = sphi 0, %s98
      %s116 = sphi 0, %s116
      %s118 = sphi 0, %s116
      %s119 = sphi 0, %s118
      %s133 = sphi 0, %s119
      %s137 = sphi 0, %s137
      %s139 = sphi 0, %s137
      %s140 = sphi 0, %s139
      %s154 = sphi 0, %s140
      %s160 = sphi 0, %s162
      %s163 = sphi 0, %s160
      %s164 = sphi 0, %s163
      %s180 = sphi 0, %s164
      %s186 = sphi 0, %s188
      %s189 = sphi 0, %s186
      %s190 = sphi 0, %s189
      %s206 = sphi 0, %s190
    $region4: #{tpu_custom_call.1} parent=1 // loop_header_branch
      %22 = sbr.rel (%p20) target = $region8
    $region5: #{tpu_custom_call.1} parent=1 // loop_body
      %s24 = ssub.s32 %s19, 1
      %s25 = ssub.s32 %s19, 2
      %s26 = sadd.s32 %s19, 1
      %s27 = ssub.s32 %s19, %s26
      %p28 = scmp.eq.s32.totalorder %s27, 0
      %s30 = sadd.s32 %s29, 1
      %s31 = scalar_select %p28, %s29, %s30
      %p34 = pneg %p28
      %p35 = scmp.eq.s32.totalorder %s19, 1
      %p36 = por %p34, %p35
      %p37 = scmp.ne.s32.totalorder %s29, %s32
      %p38 = scmp.eq.s32.totalorder %s19, 0
      %p39 = por %p37, %p38
      %p40 = scmp.ne.s32.totalorder %s29, %s32
      %p41 = scmp.eq.s32.totalorder %s24, 1
      %p42 = por %p40, %p41
      %p43 = scmp.ne.s32.totalorder %s32, %s33
      %p44 = scmp.eq.s32.totalorder %s24, 0
      %p45 = por %p43, %p44
      %p46 = scmp.ne.s32.totalorder %s32, %s33
      %p47 = scmp.eq.s32.totalorder %s25, 1
      %p48 = por %p46, %p47
      %p50 = scmp.ne.s32.totalorder %s33, %s49
      %p51 = scmp.eq.s32.totalorder %s25, 0
      %p52 = por %p50, %p51
      %s54 = sadd.s32 %s53, 1
      %p57 = scmp.eq.s32.totalorder %s19, 1
      %p58 = scmp.ne.s32.totalorder %s53, %s55
      %p59 = scmp.eq.s32.totalorder %s19, 0
      %p60 = por %p58, %p59
      %p61 = scmp.ne.s32.totalorder %s53, %s55
      %p62 = scmp.eq.s32.totalorder %s24, 1
      %p63 = por %p61, %p62
      %p64 = scmp.ne.s32.totalorder %s55, %s56
      %p65 = scmp.eq.s32.totalorder %s24, 0
      %p66 = por %p64, %p65
      %p67 = scmp.ne.s32.totalorder %s55, %s56
      %p68 = scmp.eq.s32.totalorder %s25, 1
      %p69 = por %p67, %p68
      %p71 = scmp.ne.s32.totalorder %s56, %s70
      %p72 = scmp.eq.s32.totalorder %s25, 0
      %p73 = por %p71, %p72
      %s75 = sadd.s32 %s74, 1
      %p78 = scmp.eq.s32.totalorder %s19, 1
      %p79 = scmp.ne.s32.totalorder %s74, %s76
      %p80 = scmp.eq.s32.totalorder %s19, 0
      %p81 = por %p79, %p80
      %p82 = scmp.ne.s32.totalorder %s74, %s76
      %p83 = scmp.eq.s32.totalorder %s24, 1
      %p84 = por %p82, %p83
      %p85 = scmp.ne.s32.totalorder %s76, %s77
      %p86 = scmp.eq.s32.totalorder %s24, 0
      %p87 = por %p85, %p86
      %p88 = scmp.ne.s32.totalorder %s76, %s77
      %p89 = scmp.eq.s32.totalorder %s25, 1
      %p90 = por %p88, %p89
      %p92 = scmp.ne.s32.totalorder %s77, %s91
      %p93 = scmp.eq.s32.totalorder %s25, 0
      %p94 = por %p92, %p93
      %s96 = sadd.s32 %s95, 1
      %p99 = scmp.eq.s32.totalorder %s19, 1
      %p100 = scmp.ne.s32.totalorder %s95, %s97
      %p101 = scmp.eq.s32.totalorder %s19, 0
      %p102 = por %p100, %p101
      %p103 = scmp.ne.s32.totalorder %s95, %s97
      %p104 = scmp.eq.s32.totalorder %s24, 1
      %p105 = por %p103, %p104
      %p106 = scmp.ne.s32.totalorder %s97, %s98
      %p107 = scmp.eq.s32.totalorder %s24, 0
      %p108 = por %p106, %p107
      %p109 = scmp.ne.s32.totalorder %s97, %s98
      %p110 = scmp.eq.s32.totalorder %s25, 1
      %p111 = por %p109, %p110
      %p113 = scmp.ne.s32.totalorder %s98, %s112
      %p114 = scmp.eq.s32.totalorder %s25, 0
      %p115 = por %p113, %p114
      %s117 = sadd.s32 %s116, 1
      %p120 = scmp.eq.s32.totalorder %s19, 1
      %p121 = scmp.ne.s32.totalorder %s116, %s118
      %p122 = scmp.eq.s32.totalorder %s19, 0
      %p123 = por %p121, %p122
      %p124 = scmp.ne.s32.totalorder %s116, %s118
      %p125 = scmp.eq.s32.totalorder %s24, 1
      %p126 = por %p124, %p125
      %p127 = scmp.ne.s32.totalorder %s118, %s119
      %p128 = scmp.eq.s32.totalorder %s24, 0
      %p129 = por %p127, %p128
      %p130 = scmp.ne.s32.totalorder %s118, %s119
      %p131 = scmp.eq.s32.totalorder %s25, 1
      %p132 = por %p130, %p131
      %p134 = scmp.ne.s32.totalorder %s119, %s133
      %p135 = scmp.eq.s32.totalorder %s25, 0
      %p136 = por %p134, %p135
      %s138 = sadd.s32 %s137, 1
      %p141 = scmp.eq.s32.totalorder %s19, 1
      %p142 = scmp.ne.s32.totalorder %s137, %s139
      %p143 = scmp.eq.s32.totalorder %s19, 0
      %p144 = por %p142, %p143
      %p145 = scmp.ne.s32.totalorder %s137, %s139
      %p146 = scmp.eq.s32.totalorder %s24, 1
      %p147 = por %p145, %p146
      %p148 = scmp.ne.s32.totalorder %s139, %s140
      %p149 = scmp.eq.s32.totalorder %s24, 0
      %p150 = por %p148, %p149
      %p151 = scmp.ne.s32.totalorder %s139, %s140
      %p152 = scmp.eq.s32.totalorder %s25, 1
      %p153 = por %p151, %p152
      %p155 = scmp.ne.s32.totalorder %s140, %s154
      %p156 = scmp.eq.s32.totalorder %s25, 0
      %p157 = por %p155, %p156
      %s158 = ssub.s32 %s19, %s26
      %p159 = scmp.eq.s32.totalorder %s158, 0
      %s161 = sadd.s32 %s160, 1
      %s162 = scalar_select %p159, %s160, %s161
      %p165 = pneg %p159
      %p166 = scmp.eq.s32.totalorder %s19, 1
      %p167 = por %p165, %p166
      %p168 = scmp.ne.s32.totalorder %s160, %s163
      %p169 = scmp.eq.s32.totalorder %s19, 0
      %p170 = por %p168, %p169
      %p171 = scmp.ne.s32.totalorder %s160, %s163
      %p172 = scmp.eq.s32.totalorder %s24, 1
      %p173 = por %p171, %p172
      %p174 = scmp.ne.s32.totalorder %s163, %s164
      %p175 = scmp.eq.s32.totalorder %s24, 0
      %p176 = por %p174, %p175
      %p177 = scmp.ne.s32.totalorder %s163, %s164
      %p178 = scmp.eq.s32.totalorder %s25, 1
      %p179 = por %p177, %p178
      %p181 = scmp.ne.s32.totalorder %s164, %s180
      %p182 = scmp.eq.s32.totalorder %s25, 0
      %p183 = por %p181, %p182
      %s184 = ssub.s32 %s19, %s26
      %p185 = scmp.eq.s32.totalorder %s184, 0
      %s187 = sadd.s32 %s186, 1
      %s188 = scalar_select %p185, %s186, %s187
      %p191 = pneg %p185
      %p192 = scmp.eq.s32.totalorder %s19, 1
      %p193 = por %p191, %p192
      %p194 = scmp.ne.s32.totalorder %s186, %s189
      %p195 = scmp.eq.s32.totalorder %s19, 0
      %p196 = por %p194, %p195
      %p197 = scmp.ne.s32.totalorder %s186, %s189
      %p198 = scmp.eq.s32.totalorder %s24, 1
      %p199 = por %p197, %p198
      %p200 = scmp.ne.s32.totalorder %s189, %s190
      %p201 = scmp.eq.s32.totalorder %s24, 0
      %p202 = por %p200, %p201
      %p203 = scmp.ne.s32.totalorder %s189, %s190
      %p204 = scmp.eq.s32.totalorder %s25, 1
      %p205 = por %p203, %p204
      %p207 = scmp.ne.s32.totalorder %s190, %s206
      %p208 = scmp.eq.s32.totalorder %s25, 0
      %p209 = por %p207, %p208
      %p210 = scmp.le.s32.totalorder 1, %s19
      %p211 = scmp.lt.s32.totalorder %s19, 3
      %p212 = pnand %p210, %p211
      %p213 = pneg %p212
      // Predicated region
      $region9: #{tpu_custom_call.1} parent=5 // pred_check
        _
      $region10: #{tpu_custom_call.1} parent=5 // pred_check_branch
        %215 = sbr.rel (%p212) target = $region12
      $region11: #{tpu_custom_call.1} parent=5 // pred_region
        %s216 = ssub.s32 %s19, 1
        // Predicated region
        $region13: #{tpu_custom_call.1} parent=11 // pred_check
          %p217 = pneg %p66
        $region14: #{tpu_custom_call.1} parent=11 // pred_check_branch
          %219 = sbr.rel (%p217) target = $region16
        $region15: #{tpu_custom_call.1} parent=11 // pred_region
          %s221 = ssub.s32 256, 256
          %222 = vsyncadd [#allocation5], %s221
          %s223 = sshll.u32 [#allocation4], 4
          %s224 = int_to_ptr.vmem [resolvable:$true] %s223
          %229 = dma.hbm_to_vmem [thread:$0]  %s1, 256, %s224, [#allocation5], 128, 128, 8
        $region16: #{tpu_custom_call.1} parent=11 // pred_fallthru
          _
        // Predicated region
        $region17: #{tpu_custom_call.1} parent=11 // pred_check
          %p230 = pneg %p87
        $region18: #{tpu_custom_call.1} parent=11 // pred_check_branch
          %232 = sbr.rel (%p230) target = $region20
        $region19: #{tpu_custom_call.1} parent=11 // pred_region
          %s234 = ssub.s32 256, 256
          %235 = vsyncadd [#allocation5], %s234
          %s236 = sshll.u32 [#allocation6], 4
          %s237 = int_to_ptr.vmem [resolvable:$true] %s236
          %242 = dma.hbm_to_vmem [thread:$0]  %s2, 256, %s237, [#allocation5], 128, 128, 8
        $region20: #{tpu_custom_call.1} parent=11 // pred_fallthru
          _
        // Predicated region
        $region21: #{tpu_custom_call.1} parent=11 // pred_check
          %p243 = pneg %p108
        $region22: #{tpu_custom_call.1} parent=11 // pred_check_branch
          %245 = sbr.rel (%p243) target = $region24
        $region23: #{tpu_custom_call.1} parent=11 // pred_region
          %s247 = ssub.s32 256, 256
          %248 = vsyncadd [#allocation8], %s247
          %s249 = sshll.u32 [#allocation7], 4
          %s250 = int_to_ptr.vmem [resolvable:$true] %s249
          %255 = dma.hbm_to_vmem [thread:$0]  %s3, 256, %s250, [#allocation8], 128, 128, 8
        $region24: #{tpu_custom_call.1} parent=11 // pred_fallthru
          _
        // Predicated region
        $region25: #{tpu_custom_call.1} parent=11 // pred_check
          %p256 = pneg %p129
        $region26: #{tpu_custom_call.1} parent=11 // pred_check_branch
          %258 = sbr.rel (%p256) target = $region28
        $region27: #{tpu_custom_call.1} parent=11 // pred_region
          %s260 = ssub.s32 256, 256
          %261 = vsyncadd [#allocation8], %s260
          %s262 = sshll.u32 [#allocation9], 4
          %s263 = int_to_ptr.vmem [resolvable:$true] %s262
          %268 = dma.hbm_to_vmem [thread:$0]  %s4, 256, %s263, [#allocation8], 128, 128, 8
        $region28: #{tpu_custom_call.1} parent=11 // pred_fallthru
          _
        // Predicated region
        $region29: #{tpu_custom_call.1} parent=11 // pred_check
          %p269 = pneg %p150
        $region30: #{tpu_custom_call.1} parent=11 // pred_check_branch
          %271 = sbr.rel (%p269) target = $region32
        $region31: #{tpu_custom_call.1} parent=11 // pred_region
          _
        $region32: #{tpu_custom_call.1} parent=11 // pred_fallthru
          _
      $region12: #{tpu_custom_call.1} parent=5 // pred_fallthru
        _
      %p272 = scmp.lt.s32.totalorder %s19, 2
      // Predicated region
      $region33: #{tpu_custom_call.1} parent=5 // pred_check
        %p273 = pneg %p272
      $region34: #{tpu_custom_call.1} parent=5 // pred_check_branch
        %275 = sbr.rel (%p273) target = $region36
      $region35: #{tpu_custom_call.1} parent=5 // pred_region
        // Predicated region
        $region37: #{tpu_custom_call.1} parent=35 // pred_check
          %p276 = pneg %p39
        $region38: #{tpu_custom_call.1} parent=35 // pred_check_branch
          %278 = sbr.rel (%p276) target = $region40
        $region39: #{tpu_custom_call.1} parent=35 // pred_region
          %s279 = sand.u32 %s29, 1
          %s280 = scalar_lea.sflag [#allocation3], %s279
          %s281 = sand.u32 %s29, 1
          %s282 = smul.addr %s281, 32
          %s283 = scalar_lea.vmem [#allocation2], %s282
          %s284 = smul.u32 2, %s19
          %s286 = ssub.s32 512, 512
          %287 = vsyncadd %s280, %s286
          %s288 = smul.addr %s284, 2
          %s289 = smul.addr %s288, 128
          %s290 = scalar_lea.hbm %s0, %s289
          %s291 = sshll.u32 %s283, 4
          %s292 = int_to_ptr.vmem [resolvable:$true] %s291
          %297 = dma.hbm_to_vmem [thread:$0]  %s290, 512, %s292, %s280, 128, 128, 8
        $region40: #{tpu_custom_call.1} parent=35 // pred_fallthru
          _
      $region36: #{tpu_custom_call.1} parent=5 // pred_fallthru
        _
      %p298 = scmp.le.s32.totalorder 1, %s19
      %p299 = scmp.lt.s32.totalorder %s19, 3
      %p300 = pnand %p298, %p299
      %p301 = pneg %p300
      // Predicated region
      $region41: #{tpu_custom_call.1} parent=5 // pred_check
        _
      $region42: #{tpu_custom_call.1} parent=5 // pred_check_branch
        %303 = sbr.rel (%p300) target = $region44
      $region43: #{tpu_custom_call.1} parent=5 // pred_region
        %s304 = ssub.s32 %s19, 1
        %s305 = sand.u32 %s32, 1
        %s306 = scalar_lea.sflag [#allocation3], %s305
        %s307 = sand.u32 %s32, 1
        %s308 = smul.addr %s307, 32
        %s309 = scalar_lea.vmem [#allocation2], %s308
        // Predicated region
        $region45: #{tpu_custom_call.1} parent=43 // pred_check
          %p310 = pneg %p45
        $region46: #{tpu_custom_call.1} parent=43 // pred_check_branch
          %312 = sbr.rel (%p310) target = $region48
        $region47: #{tpu_custom_call.1} parent=43 // pred_region
          %313 = dma.done %s306, 512
        $region48: #{tpu_custom_call.1} parent=43 // pred_fallthru
          _
        // Predicated region
        $region49: #{tpu_custom_call.1} parent=43 // pred_check
          %p314 = pneg %p66
        $region50: #{tpu_custom_call.1} parent=43 // pred_check_branch
          %316 = sbr.rel (%p314) target = $region52
        $region51: #{tpu_custom_call.1} parent=43 // pred_region
          %317 = dma.done [#allocation5], 256
        $region52: #{tpu_custom_call.1} parent=43 // pred_fallthru
          _
        // Predicated region
        $region53: #{tpu_custom_call.1} parent=43 // pred_check
          %p318 = pneg %p87
        $region54: #{tpu_custom_call.1} parent=43 // pred_check_branch
          %320 = sbr.rel (%p318) target = $region56
        $region55: #{tpu_custom_call.1} parent=43 // pred_region
          %321 = dma.done [#allocation5], 256
        $region56: #{tpu_custom_call.1} parent=43 // pred_fallthru
          _
        // Predicated region
        $region57: #{tpu_custom_call.1} parent=43 // pred_check
          %p322 = pneg %p108
        $region58: #{tpu_custom_call.1} parent=43 // pred_check_branch
          %324 = sbr.rel (%p322) target = $region60
        $region59: #{tpu_custom_call.1} parent=43 // pred_region
          %325 = dma.done [#allocation8], 256
        $region60: #{tpu_custom_call.1} parent=43 // pred_fallthru
          _
        // Predicated region
        $region61: #{tpu_custom_call.1} parent=43 // pred_check
          %p326 = pneg %p129
        $region62: #{tpu_custom_call.1} parent=43 // pred_check_branch
          %328 = sbr.rel (%p326) target = $region64
        $region63: #{tpu_custom_call.1} parent=43 // pred_region
          %329 = dma.done [#allocation8], 256
        $region64: #{tpu_custom_call.1} parent=43 // pred_fallthru
          _
        %s330 = sand.u32 %s32, 1
        %s331 = scalar_lea.sflag [#allocation3], %s330
        %s332 = sand.u32 %s32, 1
        %s333 = smul.addr %s332, 32
        %s334 = scalar_lea.vmem [#allocation2], %s333
        %p335 = pneg %p45
        %p336 = pneg %p42
        %p337 = pneg %p66
        %p338 = pneg %p63
        %p339 = pneg %p87
        %p340 = pneg %p84
        %p341 = pneg %p108
        %p342 = pneg %p105
        %p343 = pneg %p129
        %p344 = pneg %p126
        %p345 = pneg %p150
        %p346 = pneg %p147
        %p347 = pneg %p176
        %p348 = pneg %p173
        %s349 = smul.u32 2, %s24
        %p350 = scmp.lt.s32.totalorder %s349, 3
        %s351 = scalar_select %p350, %s349, 3
        %s352 = smul.addr %s351, 2
        %s353 = smul.addr %s352, 8
        %s354 = scalar_lea.vmem %s6, %s353
        %p355 = pneg %p202
        %p356 = pneg %p199
        %s357 = smul.u32 2, %s24
        %p358 = scmp.lt.s32.totalorder %s357, 3
        %s359 = scalar_select %p358, %s357, 3
        %s360 = smul.addr %s359, 2
        %s361 = smul.addr %s360, 8
        %s362 = scalar_lea.vmem %s7, %s361
        %s363 = smul.u32 2, %s24
        %s364 = smul.u32 2, %s24
        %p365 = scmp.lt.s32.totalorder %s364, 3
        %s366 = scalar_select %p365, %s364, 3
        %s367 = smul.addr %s366, 2
        %s368 = smul.addr %s367, 8
        %s369 = scalar_lea.vmem %s6, %s368
        %s370 = smul.u32 2, %s24
        %s371 = smul.u32 2, %s24
        %p372 = scmp.lt.s32.totalorder %s371, 3
        %s373 = scalar_select %p372, %s371, 3
        %s374 = smul.addr %s373, 2
        %s375 = smul.addr %s374, 8
        %s376 = scalar_lea.vmem %s7, %s375
        %s377 = smul.u32 2, %s24
        %v378 = vld [vmem:[#allocation4] sm:$0xff]
        %v379 = vld [vmem:[#allocation4 + $0x8] sm:$0xff]
        %v380 = vld [vmem:[#allocation6] sm:$0xff]
        %v381 = vld [vmem:[#allocation6 + $0x8] sm:$0xff]
        %v382 = vld [vmem:[#allocation7] sm:$0xff]
        %v383 = vld [vmem:[#allocation7 + $0x8] sm:$0xff]
        %v384 = vld [vmem:[#allocation9] sm:$0xff]
        %v385 = vld [vmem:[#allocation9 + $0x8] sm:$0xff]
        %v386 = vld [vmem:[%s5] sm:$0xff]
        %v387 = vld [vmem:[%s5 + $0x8] sm:$0xff]
        %v388 = vld [vmem:[%s309] sm:$0xff]
        %v389 = vld [vmem:[%s309 + $0x8] sm:$0xff]
        %v390 = vmax.f32 %v388, 0.0
        %v391 = vmax.f32 %v389, 0.0
        %v392 = vand.u32 2147483647, %v388
        %v393 = vand.u32 2147483647, %v389
        %v394 = vsub.f32 0.0, %v392
        %v395 = vsub.f32 0.0, %v393
        %v396 = vmul.f32 %v394, 1.442695
        %v397 = vpow.pop %v396
        %v398 = vmul.f32 %v395, 1.442695
        %v399 = vpow.pop %v398
        %v400 = vadd.f32 %v397, 1.0
        %v401 = vlog2.pop %v400
        %v402 = vmul.f32 %v401, 0.6931472
        %v403 = vmul.f32 -0.5, %v397
        %v404 = vadd.f32 %v403, 1.0
        %v405 = vmul.f32 %v404, %v397
        %v406 = vand.u32 2147483647, %v397
        %vm407 = vcmp.lt.f32.partialorder %v406, 0.0004427343
        %v408 = vsel %vm407, %v405, %v402
        %v409 = vadd.f32 %v399, 1.0
        %v410 = vlog2.pop %v409
        %v411 = vmul.f32 %v410, 0.6931472
        %v412 = vmul.f32 -0.5, %v399
        %v413 = vadd.f32 %v412, 1.0
        %v414 = vmul.f32 %v413, %v399
        %v415 = vand.u32 2147483647, %v399
        %vm416 = vcmp.lt.f32.partialorder %v415, 0.0004427343
        %v417 = vsel %vm416, %v414, %v411
        %v418 = vadd.f32 %v390, %v408
        %v419 = vadd.f32 %v391, %v417
        %v420 = vmul.f32 %v418, %v378
        %v421 = vmul.f32 %v419, %v379
        %vm422 = vcmask 130048
        %v424 = vsel %vm422, %v420, 0
        %v427 = vsel %vm422, %v421, 0
        %429 = vmatprep.subr.mxu0 0.0
        %430 = vmatpush1.msra.mxu0 %v384
        %431 = vmatprep.subr.mxu0 0.0
        %432 = vmatpush1.msra.mxu0 %v385
        %433 = vmatprep.subr.mxu0 0.0
        %434 = vmatpush1.msra.mxu0 0.0
        %435 = vmatprep.subr.mxu0 0.0
        %436 = vmatpush1.msra.mxu0 0.0
        %437 = vmatprep.subr.mxu0 0.0
        %438 = vmatpush1.msra.mxu0 0.0
        %439 = vmatprep.subr.mxu0 0.0
        %440 = vmatpush1.msra.mxu0 0.0
        %441 = vmatprep.subr.mxu0 0.0
        %442 = vmatpush1.msra.mxu0 0.0
        %443 = vmatprep.subr.mxu0 0.0
        %444 = vmatpush1.msra.mxu0 0.0
        %445 = vmatprep.subr.mxu0 0.0
        %446 = vmatpush1.msra.mxu0 0.0
        %447 = vmatprep.subr.mxu0 0.0
        %448 = vmatpush1.msra.mxu0 0.0
        %449 = vmatprep.subr.mxu0 0.0
        %450 = vmatpush1.msra.mxu0 0.0
        %451 = vmatprep.subr.mxu0 0.0
        %452 = vmatpush1.msra.mxu0 0.0
        %453 = vmatprep.subr.mxu0 0.0
        %454 = vmatpush1.msra.mxu0 0.0
        %455 = vmatprep.subr.mxu0 0.0
        %456 = vmatpush1.msra.mxu0 0.0
        %457 = vmatprep.subr.mxu0 0.0
        %458 = vmatpush1.msra.mxu0 0.0
        %459 = vmatprep.subr.mxu0 0.0
        %460 = vmatpush1.msra.mxu0 0.0
        %461 = vmatprep.subr.mxu0 0.0
        %462 = vmatpush1.msra.mxu0 0.0
        %463 = vmatprep.subr.mxu0 0.0
        %464 = vmatpush1.msra.mxu0 0.0
        %465 = vmatprep.subr.mxu0 0.0
        %466 = vmatpush1.msra.mxu0 0.0
        %467 = vmatprep.subr.mxu0 0.0
        %468 = vmatpush1.msra.mxu0 0.0
        %469 = vmatprep.subr.mxu0 0.0
        %470 = vmatpush1.msra.mxu0 0.0
        %471 = vmatprep.subr.mxu0 0.0
        %472 = vmatpush1.msra.mxu0 0.0
        %473 = vmatprep.subr.mxu0 0.0
        %474 = vmatpush1.msra.mxu0 0.0
        %475 = vmatprep.subr.mxu0 0.0
        %476 = vmatpush1.msra.mxu0 0.0
        %477 = vmatprep.subr.mxu0 0.0
        %478 = vmatpush1.msra.mxu0 0.0
        %479 = vmatprep.subr.mxu0 0.0
        %480 = vmatpush1.msra.mxu0 0.0
        %481 = vmatprep.subr.mxu0 0.0
        %482 = vmatpush1.msra.mxu0 0.0
        %483 = vmatprep.subr.mxu0 0.0
        %484 = vmatpush1.msra.mxu0 0.0
        %485 = vmatprep.subr.mxu0 0.0
        %486 = vmatpush1.msra.mxu0 0.0
        %487 = vmatprep.subr.mxu0 0.0
        %488 = vmatpush1.msra.mxu0 0.0
        %489 = vmatprep.subr.mxu0 0.0
        %490 = vmatpush1.msra.mxu0 0.0
        %491 = vmatprep.subr.mxu0 0.0
        %492 = vmatpush1.msra.mxu0 0.0
        %493 = vmatprep.mubr.f32.mxu0 0.0
        %494 = vmatmul.mubr.f32.gmra.mrb[0].mxu0 %v424
        %v495 = vpop.f32.mrb[0].mxu0
        %v496 = vadd.f32 0.0, %v495
        %v497 = vpop.f32.mrb[0].mxu0
        %498 = vmatprep.mubr.f32.mxu0 0.0
        %499 = vmatmul.mubr.f32.gmra.mrb[0].mxu0 %v427
        %v500 = vpop.f32.mrb[0].mxu0
        %v501 = vadd.f32 0.0, %v500
        %v502 = vpop.f32.mrb[0].mxu0
        %503 = vdwg.mxu0
        %504 = vmatprep.subr.mxu0 0.0
        %505 = vmatpush1.msra.mxu0 %v386
        %506 = vmatprep.subr.mxu0 0.0
        %507 = vmatpush1.msra.mxu0 %v387
        %508 = vmatprep.subr.mxu0 0.0
        %509 = vmatpush1.msra.mxu0 0.0
        %510 = vmatprep.subr.mxu0 0.0
        %511 = vmatpush1.msra.mxu0 0.0
        %512 = vmatprep.subr.mxu0 0.0
        %513 = vmatpush1.msra.mxu0 0.0
        %514 = vmatprep.subr.mxu0 0.0
        %515 = vmatpush1.msra.mxu0 0.0
        %516 = vmatprep.subr.mxu0 0.0
        %517 = vmatpush1.msra.mxu0 0.0
        %518 = vmatprep.subr.mxu0 0.0
        %519 = vmatpush1.msra.mxu0 0.0
        %520 = vmatprep.subr.mxu0 0.0
        %521 = vmatpush1.msra.mxu0 0.0
        %522 = vmatprep.subr.mxu0 0.0
        %523 = vmatpush1.msra.mxu0 0.0
        %524 = vmatprep.subr.mxu0 0.0
        %525 = vmatpush1.msra.mxu0 0.0
        %526 = vmatprep.subr.mxu0 0.0
        %527 = vmatpush1.msra.mxu0 0.0
        %528 = vmatprep.subr.mxu0 0.0
        %529 = vmatpush1.msra.mxu0 0.0
        %530 = vmatprep.subr.mxu0 0.0
        %531 = vmatpush1.msra.mxu0 0.0
        %532 = vmatprep.subr.mxu0 0.0
        %533 = vmatpush1.msra.mxu0 0.0
        %534 = vmatprep.subr.mxu0 0.0
        %535 = vmatpush1.msra.mxu0 0.0
        %536 = vmatprep.subr.mxu0 0.0
        %537 = vmatpush1.msra.mxu0 0.0
        %538 = vmatprep.subr.mxu0 0.0
        %539 = vmatpush1.msra.mxu0 0.0
        %540 = vmatprep.subr.mxu0 0.0
        %541 = vmatpush1.msra.mxu0 0.0
        %542 = vmatprep.subr.mxu0 0.0
        %543 = vmatpush1.msra.mxu0 0.0
        %544 = vmatprep.subr.mxu0 0.0
        %545 = vmatpush1.msra.mxu0 0.0
        %546 = vmatprep.subr.mxu0 0.0
        %547 = vmatpush1.msra.mxu0 0.0
        %548 = vmatprep.subr.mxu0 0.0
        %549 = vmatpush1.msra.mxu0 0.0
        %550 = vmatprep.subr.mxu0 0.0
        %551 = vmatpush1.msra.mxu0 0.0
        %552 = vmatprep.subr.mxu0 0.0
        %553 = vmatpush1.msra.mxu0 0.0
        %554 = vmatprep.subr.mxu0 0.0
        %555 = vmatpush1.msra.mxu0 0.0
        %556 = vmatprep.subr.mxu0 0.0
        %557 = vmatpush1.msra.mxu0 0.0
        %558 = vmatprep.subr.mxu0 0.0
        %559 = vmatpush1.msra.mxu0 0.0
        %560 = vmatprep.subr.mxu0 0.0
        %561 = vmatpush1.msra.mxu0 0.0
        %562 = vmatprep.subr.mxu0 0.0
        %563 = vmatpush1.msra.mxu0 0.0
        %564 = vmatprep.subr.mxu0 0.0
        %565 = vmatpush1.msra.mxu0 0.0
        %566 = vmatprep.subr.mxu0 0.0
        %567 = vmatpush1.msra.mxu0 0.0
        %568 = vmatprep.mubr.f32.mxu0 0.0
        %569 = vmatmul.mubr.f32.gmra.mrb[0].mxu0 %v424
        %v570 = vpop.f32.mrb[0].mxu0
        %v571 = vadd.f32 0.0, %v570
        %v572 = vpop.f32.mrb[0].mxu0
        %573 = vmatprep.mubr.f32.mxu0 0.0
        %574 = vmatmul.mubr.f32.gmra.mrb[0].mxu0 %v427
        %v575 = vpop.f32.mrb[0].mxu0
        %v576 = vadd.f32 0.0, %v575
        %v577 = vpop.f32.mrb[0].mxu0
        %578 = vdwg.mxu0
        %v580 = vsel %vm422, %v380, 0
        %v583 = vsel %vm422, %v381, 0
        %585 = vmatprep.subr.mxu0 0.0
        %586 = vmatpush1.msra.mxu0 %v496
        %587 = vmatprep.subr.mxu0 0.0
        %588 = vmatpush1.msra.mxu0 %v501
        %589 = vmatprep.subr.mxu0 0.0
        %590 = vmatpush1.msra.mxu0 0.0
        %591 = vmatprep.subr.mxu0 0.0
        %592 = vmatpush1.msra.mxu0 0.0
        %593 = vmatprep.subr.mxu0 0.0
        %594 = vmatpush1.msra.mxu0 0.0
        %595 = vmatprep.subr.mxu0 0.0
        %596 = vmatpush1.msra.mxu0 0.0
        %597 = vmatprep.subr.mxu0 0.0
        %598 = vmatpush1.msra.mxu0 0.0
        %599 = vmatprep.subr.mxu0 0.0
        %600 = vmatpush1.msra.mxu0 0.0
        %601 = vmatprep.subr.mxu0 0.0
        %602 = vmatpush1.msra.mxu0 0.0
        %603 = vmatprep.subr.mxu0 0.0
        %604 = vmatpush1.msra.mxu0 0.0
        %605 = vmatprep.subr.mxu0 0.0
        %606 = vmatpush1.msra.mxu0 0.0
        %607 = vmatprep.subr.mxu0 0.0
        %608 = vmatpush1.msra.mxu0 0.0
        %609 = vmatprep.subr.mxu0 0.0
        %610 = vmatpush1.msra.mxu0 0.0
        %611 = vmatprep.subr.mxu0 0.0
        %612 = vmatpush1.msra.mxu0 0.0
        %613 = vmatprep.subr.mxu0 0.0
        %614 = vmatpush1.msra.mxu0 0.0
        %615 = vmatprep.subr.mxu0 0.0
        %616 = vmatpush1.msra.mxu0 0.0
        %617 = vmatprep.subr.mxu0 0.0
        %618 = vmatpush1.msra.mxu0 0.0
        %619 = vmatprep.subr.mxu0 0.0
        %620 = vmatpush1.msra.mxu0 0.0
        %621 = vmatprep.subr.mxu0 0.0
        %622 = vmatpush1.msra.mxu0 0.0
        %623 = vmatprep.subr.mxu0 0.0
        %624 = vmatpush1.msra.mxu0 0.0
        %625 = vmatprep.subr.mxu0 0.0
        %626 = vmatpush1.msra.mxu0 0.0
        %627 = vmatprep.subr.mxu0 0.0
        %628 = vmatpush1.msra.mxu0 0.0
        %629 = vmatprep.subr.mxu0 0.0
        %630 = vmatpush1.msra.mxu0 0.0
        %631 = vmatprep.subr.mxu0 0.0
        %632 = vmatpush1.msra.mxu0 0.0
        %633 = vmatprep.subr.mxu0 0.0
        %634 = vmatpush1.msra.mxu0 0.0
        %635 = vmatprep.subr.mxu0 0.0
        %636 = vmatpush1.msra.mxu0 0.0
        %637 = vmatprep.subr.mxu0 0.0
        %638 = vmatpush1.msra.mxu0 0.0
        %639 = vmatprep.subr.mxu0 0.0
        %640 = vmatpush1.msra.mxu0 0.0
        %641 = vmatprep.subr.mxu0 0.0
        %642 = vmatpush1.msra.mxu0 0.0
        %643 = vmatprep.subr.mxu0 0.0
        %644 = vmatpush1.msra.mxu0 0.0
        %645 = vmatprep.subr.mxu0 0.0
        %646 = vmatpush1.msra.mxu0 0.0
        %647 = vmatprep.subr.mxu0 0.0
        %648 = vmatpush1.msra.mxu0 0.0
        %649 = vmatprep.mubr.f32.mxu0 0.0
        %650 = vmatmul.mubr.f32.gmra.mrb[0].mxu0 %v580
        %v651 = vpop.f32.mrb[0].mxu0
        %v652 = vadd.f32 0.0, %v651
        %v653 = vpop.f32.mrb[0].mxu0
        %654 = vmatprep.mubr.f32.mxu0 0.0
        %655 = vmatmul.mubr.f32.gmra.mrb[0].mxu0 %v583
        %v656 = vpop.f32.mrb[0].mxu0
        %v657 = vadd.f32 0.0, %v656
        %v658 = vpop.f32.mrb[0].mxu0
        %659 = vdwg.mxu0
        %v661 = vsel %vm422, %v382, 0
        %v664 = vsel %vm422, %v383, 0
        %666 = vmatprep.subr.mxu0 0.0
        %667 = vmatpush1.msra.mxu0 %v571
        %668 = vmatprep.subr.mxu0 0.0
        %669 = vmatpush1.msra.mxu0 %v576
        %670 = vmatprep.subr.mxu0 0.0
        %671 = vmatpush1.msra.mxu0 0.0
        %672 = vmatprep.subr.mxu0 0.0
        %673 = vmatpush1.msra.mxu0 0.0
        %674 = vmatprep.subr.mxu0 0.0
        %675 = vmatpush1.msra.mxu0 0.0
        %676 = vmatprep.subr.mxu0 0.0
        %677 = vmatpush1.msra.mxu0 0.0
        %678 = vmatprep.subr.mxu0 0.0
        %679 = vmatpush1.msra.mxu0 0.0
        %680 = vmatprep.subr.mxu0 0.0
        %681 = vmatpush1.msra.mxu0 0.0
        %682 = vmatprep.subr.mxu0 0.0
        %683 = vmatpush1.msra.mxu0 0.0
        %684 = vmatprep.subr.mxu0 0.0
        %685 = vmatpush1.msra.mxu0 0.0
        %686 = vmatprep.subr.mxu0 0.0
        %687 = vmatpush1.msra.mxu0 0.0
        %688 = vmatprep.subr.mxu0 0.0
        %689 = vmatpush1.msra.mxu0 0.0
        %690 = vmatprep.subr.mxu0 0.0
        %691 = vmatpush1.msra.mxu0 0.0
        %692 = vmatprep.subr.mxu0 0.0
        %693 = vmatpush1.msra.mxu0 0.0
        %694 = vmatprep.subr.mxu0 0.0
        %695 = vmatpush1.msra.mxu0 0.0
        %696 = vmatprep.subr.mxu0 0.0
        %697 = vmatpush1.msra.mxu0 0.0
        %698 = vmatprep.subr.mxu0 0.0
        %699 = vmatpush1.msra.mxu0 0.0
        %700 = vmatprep.subr.mxu0 0.0
        %701 = vmatpush1.msra.mxu0 0.0
        %702 = vmatprep.subr.mxu0 0.0
        %703 = vmatpush1.msra.mxu0 0.0
        %704 = vmatprep.subr.mxu0 0.0
        %705 = vmatpush1.msra.mxu0 0.0
        %706 = vmatprep.subr.mxu0 0.0
        %707 = vmatpush1.msra.mxu0 0.0
        %708 = vmatprep.subr.mxu0 0.0
        %709 = vmatpush1.msra.mxu0 0.0
        %710 = vmatprep.subr.mxu0 0.0
        %711 = vmatpush1.msra.mxu0 0.0
        %712 = vmatprep.subr.mxu0 0.0
        %713 = vmatpush1.msra.mxu0 0.0
        %714 = vmatprep.subr.mxu0 0.0
        %715 = vmatpush1.msra.mxu0 0.0
        %716 = vmatprep.subr.mxu0 0.0
        %717 = vmatpush1.msra.mxu0 0.0
        %718 = vmatprep.subr.mxu0 0.0
        %719 = vmatpush1.msra.mxu0 0.0
        %720 = vmatprep.subr.mxu0 0.0
        %721 = vmatpush1.msra.mxu0 0.0
        %722 = vmatprep.subr.mxu0 0.0
        %723 = vmatpush1.msra.mxu0 0.0
        %724 = vmatprep.subr.mxu0 0.0
        %725 = vmatpush1.msra.mxu0 0.0
        %726 = vmatprep.subr.mxu0 0.0
        %727 = vmatpush1.msra.mxu0 0.0
        %728 = vmatprep.subr.mxu0 0.0
        %729 = vmatpush1.msra.mxu0 0.0
        %730 = vmatprep.mubr.f32.mxu0 0.0
        %731 = vmatmul.mubr.f32.gmra.mrb[0].mxu0 %v661
        %v732 = vpop.f32.mrb[0].mxu0
        %v733 = vadd.f32 0.0, %v732
        %v734 = vpop.f32.mrb[0].mxu0
        %735 = vmatprep.mubr.f32.mxu0 0.0
        %736 = vmatmul.mubr.f32.gmra.mrb[0].mxu0 %v664
        %v737 = vpop.f32.mrb[0].mxu0
        %v738 = vadd.f32 0.0, %v737
        %v739 = vpop.f32.mrb[0].mxu0
        %740 = vdwg.mxu0
        %v741 = vsub.f32 %v652, %v733
        %v742 = vsub.f32 %v657, %v738
        %vm743 = vcmask 72704
        %744 = vst.msk [vmem:[%s369] sm:$0xff] %vm743, %v741
        %745 = vst.msk [vmem:[%s369 + $0x8] sm:$0xff] %vm743, %v742
        %746 = vmatprep.subr.mxu0 0.0
        %747 = vmatpush1.msra.mxu0 %v496
        %748 = vmatprep.subr.mxu0 0.0
        %749 = vmatpush1.msra.mxu0 %v501
        %750 = vmatprep.subr.mxu0 0.0
        %751 = vmatpush1.msra.mxu0 0.0
        %752 = vmatprep.subr.mxu0 0.0
        %753 = vmatpush1.msra.mxu0 0.0
        %754 = vmatprep.subr.mxu0 0.0
        %755 = vmatpush1.msra.mxu0 0.0
        %756 = vmatprep.subr.mxu0 0.0
        %757 = vmatpush1.msra.mxu0 0.0
        %758 = vmatprep.subr.mxu0 0.0
        %759 = vmatpush1.msra.mxu0 0.0
        %760 = vmatprep.subr.mxu0 0.0
        %761 = vmatpush1.msra.mxu0 0.0
        %762 = vmatprep.subr.mxu0 0.0
        %763 = vmatpush1.msra.mxu0 0.0
        %764 = vmatprep.subr.mxu0 0.0
        %765 = vmatpush1.msra.mxu0 0.0
        %766 = vmatprep.subr.mxu0 0.0
        %767 = vmatpush1.msra.mxu0 0.0
        %768 = vmatprep.subr.mxu0 0.0
        %769 = vmatpush1.msra.mxu0 0.0
        %770 = vmatprep.subr.mxu0 0.0
        %771 = vmatpush1.msra.mxu0 0.0
        %772 = vmatprep.subr.mxu0 0.0
        %773 = vmatpush1.msra.mxu0 0.0
        %774 = vmatprep.subr.mxu0 0.0
        %775 = vmatpush1.msra.mxu0 0.0
        %776 = vmatprep.subr.mxu0 0.0
        %777 = vmatpush1.msra.mxu0 0.0
        %778 = vmatprep.subr.mxu0 0.0
        %779 = vmatpush1.msra.mxu0 0.0
        %780 = vmatprep.subr.mxu0 0.0
        %781 = vmatpush1.msra.mxu0 0.0
        %782 = vmatprep.subr.mxu0 0.0
        %783 = vmatpush1.msra.mxu0 0.0
        %784 = vmatprep.subr.mxu0 0.0
        %785 = vmatpush1.msra.mxu0 0.0
        %786 = vmatprep.subr.mxu0 0.0
        %787 = vmatpush1.msra.mxu0 0.0
        %788 = vmatprep.subr.mxu0 0.0
        %789 = vmatpush1.msra.mxu0 0.0
        %790 = vmatprep.subr.mxu0 0.0
        %791 = vmatpush1.msra.mxu0 0.0
        %792 = vmatprep.subr.mxu0 0.0
        %793 = vmatpush1.msra.mxu0 0.0
        %794 = vmatprep.subr.mxu0 0.0
        %795 = vmatpush1.msra.mxu0 0.0
        %796 = vmatprep.subr.mxu0 0.0
        %797 = vmatpush1.msra.mxu0 0.0
        %798 = vmatprep.subr.mxu0 0.0
        %799 = vmatpush1.msra.mxu0 0.0
        %800 = vmatprep.subr.mxu0 0.0
        %801 = vmatpush1.msra.mxu0 0.0
        %802 = vmatprep.subr.mxu0 0.0
        %803 = vmatpush1.msra.mxu0 0.0
        %804 = vmatprep.subr.mxu0 0.0
        %805 = vmatpush1.msra.mxu0 0.0
        %806 = vmatprep.subr.mxu0 0.0
        %807 = vmatpush1.msra.mxu0 0.0
        %808 = vmatprep.subr.mxu0 0.0
        %809 = vmatpush1.msra.mxu0 0.0
        %810 = vmatprep.mubr.f32.mxu0 0.0
        %811 = vmatmul.mubr.f32.gmra.mrb[0].mxu0 %v661
        %v812 = vpop.f32.mrb[0].mxu0
        %v813 = vadd.f32 0.0, %v812
        %v814 = vpop.f32.mrb[0].mxu0
        %815 = vmatprep.mubr.f32.mxu0 0.0
        %816 = vmatmul.mubr.f32.gmra.mrb[0].mxu0 %v664
        %v817 = vpop.f32.mrb[0].mxu0
        %v818 = vadd.f32 0.0, %v817
        %v819 = vpop.f32.mrb[0].mxu0
        %820 = vdwg.mxu0
        %821 = vmatprep.subr.mxu0 0.0
        %822 = vmatpush1.msra.mxu0 %v571
        %823 = vmatprep.subr.mxu0 0.0
        %824 = vmatpush1.msra.mxu0 %v576
        %825 = vmatprep.subr.mxu0 0.0
        %826 = vmatpush1.msra.mxu0 0.0
        %827 = vmatprep.subr.mxu0 0.0
        %828 = vmatpush1.msra.mxu0 0.0
        %829 = vmatprep.subr.mxu0 0.0
        %830 = vmatpush1.msra.mxu0 0.0
        %831 = vmatprep.subr.mxu0 0.0
        %832 = vmatpush1.msra.mxu0 0.0
        %833 = vmatprep.subr.mxu0 0.0
        %834 = vmatpush1.msra.mxu0 0.0
        %835 = vmatprep.subr.mxu0 0.0
        %836 = vmatpush1.msra.mxu0 0.0
        %837 = vmatprep.subr.mxu0 0.0
        %838 = vmatpush1.msra.mxu0 0.0
        %839 = vmatprep.subr.mxu0 0.0
        %840 = vmatpush1.msra.mxu0 0.0
        %841 = vmatprep.subr.mxu0 0.0
        %842 = vmatpush1.msra.mxu0 0.0
        %843 = vmatprep.subr.mxu0 0.0
        %844 = vmatpush1.msra.mxu0 0.0
        %845 = vmatprep.subr.mxu0 0.0
        %846 = vmatpush1.msra.mxu0 0.0
        %847 = vmatprep.subr.mxu0 0.0
        %848 = vmatpush1.msra.mxu0 0.0
        %849 = vmatprep.subr.mxu0 0.0
        %850 = vmatpush1.msra.mxu0 0.0
        %851 = vmatprep.subr.mxu0 0.0
        %852 = vmatpush1.msra.mxu0 0.0
        %853 = vmatprep.subr.mxu0 0.0
        %854 = vmatpush1.msra.mxu0 0.0
        %855 = vmatprep.subr.mxu0 0.0
        %856 = vmatpush1.msra.mxu0 0.0
        %857 = vmatprep.subr.mxu0 0.0
        %858 = vmatpush1.msra.mxu0 0.0
        %859 = vmatprep.subr.mxu0 0.0
        %860 = vmatpush1.msra.mxu0 0.0
        %861 = vmatprep.subr.mxu0 0.0
        %862 = vmatpush1.msra.mxu0 0.0
        %863 = vmatprep.subr.mxu0 0.0
        %864 = vmatpush1.msra.mxu0 0.0
        %865 = vmatprep.subr.mxu0 0.0
        %866 = vmatpush1.msra.mxu0 0.0
        %867 = vmatprep.subr.mxu0 0.0
        %868 = vmatpush1.msra.mxu0 0.0
        %869 = vmatprep.subr.mxu0 0.0
        %870 = vmatpush1.msra.mxu0 0.0
        %871 = vmatprep.subr.mxu0 0.0
        %872 = vmatpush1.msra.mxu0 0.0
        %873 = vmatprep.subr.mxu0 0.0
        %874 = vmatpush1.msra.mxu0 0.0
        %875 = vmatprep.subr.mxu0 0.0
        %876 = vmatpush1.msra.mxu0 0.0
        %877 = vmatprep.subr.mxu0 0.0
        %878 = vmatpush1.msra.mxu0 0.0
        %879 = vmatprep.subr.mxu0 0.0
        %880 = vmatpush1.msra.mxu0 0.0
        %881 = vmatprep.subr.mxu0 0.0
        %882 = vmatpush1.msra.mxu0 0.0
        %883 = vmatprep.subr.mxu0 0.0
        %884 = vmatpush1.msra.mxu0 0.0
        %885 = vmatprep.mubr.f32.mxu0 0.0
        %886 = vmatmul.mubr.f32.gmra.mrb[0].mxu0 %v580
        %v887 = vpop.f32.mrb[0].mxu0
        %v888 = vadd.f32 %v813, %v887
        %v889 = vpop.f32.mrb[0].mxu0
        %890 = vmatprep.mubr.f32.mxu0 0.0
        %891 = vmatmul.mubr.f32.gmra.mrb[0].mxu0 %v583
        %v892 = vpop.f32.mrb[0].mxu0
        %v893 = vadd.f32 %v818, %v892
        %v894 = vpop.f32.mrb[0].mxu0
        %895 = vdwg.mxu0
        %896 = vst.msk [vmem:[%s376] sm:$0xff] %vm743, %v888
        %897 = vst.msk [vmem:[%s376 + $0x8] sm:$0xff] %vm743, %v893
        %s898 = scalar_lea.vmem %s309, 16 [#allocation2]
        %v899 = vld [vmem:[%s898] sm:$0xff]
        %v900 = vld [vmem:[%s898 + $0x8] sm:$0xff]
        %v901 = vmax.f32 %v899, 0.0
        %v902 = vmax.f32 %v900, 0.0
        %v903 = vand.u32 2147483647, %v899
        %v904 = vand.u32 2147483647, %v900
        %v905 = vsub.f32 0.0, %v903
        %v906 = vsub.f32 0.0, %v904
        %v907 = vmul.f32 %v905, 1.442695
        %v908 = vpow.pop %v907
        %v909 = vmul.f32 %v906, 1.442695
        %v910 = vpow.pop %v909
        %v911 = vadd.f32 %v908, 1.0
        %v912 = vlog2.pop %v911
        %v913 = vmul.f32 %v912, 0.6931472
        %v914 = vmul.f32 -0.5, %v908
        %v915 = vadd.f32 %v914, 1.0
        %v916 = vmul.f32 %v915, %v908
        %v917 = vand.u32 2147483647, %v908
        %vm918 = vcmp.lt.f32.partialorder %v917, 0.0004427343
        %v919 = vsel %vm918, %v916, %v913
        %v920 = vadd.f32 %v910, 1.0
        %v921 = vlog2.pop %v920
        %v922 = vmul.f32 %v921, 0.6931472
        %v923 = vmul.f32 -0.5, %v910
        %v924 = vadd.f32 %v923, 1.0
        %v925 = vmul.f32 %v924, %v910
        %v926 = vand.u32 2147483647, %v910
        %vm927 = vcmp.lt.f32.partialorder %v926, 0.0004427343
        %v928 = vsel %vm927, %v925, %v922
        %v929 = vadd.f32 %v901, %v919
        %v930 = vadd.f32 %v902, %v928
        %v931 = vmul.f32 %v929, %v378
        %v932 = vmul.f32 %v930, %v379
        %v934 = vsel %vm422, %v931, 0
        %v937 = vsel %vm422, %v932, 0
        %939 = vmatprep.subr.mxu0 0.0
        %940 = vmatpush1.msra.mxu0 %v384
        %941 = vmatprep.subr.mxu0 0.0
        %942 = vmatpush1.msra.mxu0 %v385
        %943 = vmatprep.subr.mxu0 0.0
        %944 = vmatpush1.msra.mxu0 0.0
        %945 = vmatprep.subr.mxu0 0.0
        %946 = vmatpush1.msra.mxu0 0.0
        %947 = vmatprep.subr.mxu0 0.0
        %948 = vmatpush1.msra.mxu0 0.0
        %949 = vmatprep.subr.mxu0 0.0
        %950 = vmatpush1.msra.mxu0 0.0
        %951 = vmatprep.subr.mxu0 0.0
        %952 = vmatpush1.msra.mxu0 0.0
        %953 = vmatprep.subr.mxu0 0.0
        %954 = vmatpush1.msra.mxu0 0.0
        %955 = vmatprep.subr.mxu0 0.0
        %956 = vmatpush1.msra.mxu0 0.0
        %957 = vmatprep.subr.mxu0 0.0
        %958 = vmatpush1.msra.mxu0 0.0
        %959 = vmatprep.subr.mxu0 0.0
        %960 = vmatpush1.msra.mxu0 0.0
        %961 = vmatprep.subr.mxu0 0.0
        %962 = vmatpush1.msra.mxu0 0.0
        %963 = vmatprep.subr.mxu0 0.0
        %964 = vmatpush1.msra.mxu0 0.0
        %965 = vmatprep.subr.mxu0 0.0
        %966 = vmatpush1.msra.mxu0 0.0
        %967 = vmatprep.subr.mxu0 0.0
        %968 = vmatpush1.msra.mxu0 0.0
        %969 = vmatprep.subr.mxu0 0.0
        %970 = vmatpush1.msra.mxu0 0.0
        %971 = vmatprep.subr.mxu0 0.0
        %972 = vmatpush1.msra.mxu0 0.0
        %973 = vmatprep.subr.mxu0 0.0
        %974 = vmatpush1.msra.mxu0 0.0
        %975 = vmatprep.subr.mxu0 0.0
        %976 = vmatpush1.msra.mxu0 0.0
        %977 = vmatprep.subr.mxu0 0.0
        %978 = vmatpush1.msra.mxu0 0.0
        %979 = vmatprep.subr.mxu0 0.0
        %980 = vmatpush1.msra.mxu0 0.0
        %981 = vmatprep.subr.mxu0 0.0
        %982 = vmatpush1.msra.mxu0 0.0
        %983 = vmatprep.subr.mxu0 0.0
        %984 = vmatpush1.msra.mxu0 0.0
        %985 = vmatprep.subr.mxu0 0.0
        %986 = vmatpush1.msra.mxu0 0.0
        %987 = vmatprep.subr.mxu0 0.0
        %988 = vmatpush1.msra.mxu0 0.0
        %989 = vmatprep.subr.mxu0 0.0
        %990 = vmatpush1.msra.mxu0 0.0
        %991 = vmatprep.subr.mxu0 0.0
        %992 = vmatpush1.msra.mxu0 0.0
        %993 = vmatprep.subr.mxu0 0.0
        %994 = vmatpush1.msra.mxu0 0.0
        %995 = vmatprep.subr.mxu0 0.0
        %996 = vmatpush1.msra.mxu0 0.0
        %997 = vmatprep.subr.mxu0 0.0
        %998 = vmatpush1.msra.mxu0 0.0
        %999 = vmatprep.subr.mxu0 0.0
        %1000 = vmatpush1.msra.mxu0 0.0
        %1001 = vmatprep.subr.mxu0 0.0
        %1002 = vmatpush1.msra.mxu0 0.0
        %1003 = vmatprep.mubr.f32.mxu0 0.0
        %1004 = vmatmul.mubr.f32.gmra.mrb[0].mxu0 %v934
        %v1005 = vpop.f32.mrb[0].mxu0
        %v1006 = vadd.f32 0.0, %v1005
        %v1007 = vpop.f32.mrb[0].mxu0
        %1008 = vmatprep.mubr.f32.mxu0 0.0
        %1009 = vmatmul.mubr.f32.gmra.mrb[0].mxu0 %v937
        %v1010 = vpop.f32.mrb[0].mxu0
        %v1011 = vadd.f32 0.0, %v1010
        %v1012 = vpop.f32.mrb[0].mxu0
        %1013 = vdwg.mxu0
        %1014 = vmatprep.subr.mxu0 0.0
        %1015 = vmatpush1.msra.mxu0 %v386
        %1016 = vmatprep.subr.mxu0 0.0
        %1017 = vmatpush1.msra.mxu0 %v387
        %1018 = vmatprep.subr.mxu0 0.0
        %1019 = vmatpush1.msra.mxu0 0.0
        %1020 = vmatprep.subr.mxu0 0.0
        %1021 = vmatpush1.msra.mxu0 0.0
        %1022 = vmatprep.subr.mxu0 0.0
        %1023 = vmatpush1.msra.mxu0 0.0
        %1024 = vmatprep.subr.mxu0 0.0
        %1025 = vmatpush1.msra.mxu0 0.0
        %1026 = vmatprep.subr.mxu0 0.0
        %1027 = vmatpush1.msra.mxu0 0.0
        %1028 = vmatprep.subr.mxu0 0.0
        %1029 = vmatpush1.msra.mxu0 0.0
        %1030 = vmatprep.subr.mxu0 0.0
        %1031 = vmatpush1.msra.mxu0 0.0
        %1032 = vmatprep.subr.mxu0 0.0
        %1033 = vmatpush1.msra.mxu0 0.0
        %1034 = vmatprep.subr.mxu0 0.0
        %1035 = vmatpush1.msra.mxu0 0.0
        %1036 = vmatprep.subr.mxu0 0.0
        %1037 = vmatpush1.msra.mxu0 0.0
        %1038 = vmatprep.subr.mxu0 0.0
        %1039 = vmatpush1.msra.mxu0 0.0
        %1040 = vmatprep.subr.mxu0 0.0
        %1041 = vmatpush1.msra.mxu0 0.0
        %1042 = vmatprep.subr.mxu0 0.0
        %1043 = vmatpush1.msra.mxu0 0.0
        %1044 = vmatprep.subr.mxu0 0.0
        %1045 = vmatpush1.msra.mxu0 0.0
        %1046 = vmatprep.subr.mxu0 0.0
        %1047 = vmatpush1.msra.mxu0 0.0
        %1048 = vmatprep.subr.mxu0 0.0
        %1049 = vmatpush1.msra.mxu0 0.0
        %1050 = vmatprep.subr.mxu0 0.0
        %1051 = vmatpush1.msra.mxu0 0.0
        %1052 = vmatprep.subr.mxu0 0.0
        %1053 = vmatpush1.msra.mxu0 0.0
        %1054 = vmatprep.subr.mxu0 0.0
        %1055 = vmatpush1.msra.mxu0 0.0
        %1056 = vmatprep.subr.mxu0 0.0
        %1057 = vmatpush1.msra.mxu0 0.0
        %1058 = vmatprep.subr.mxu0 0.0
        %1059 = vmatpush1.msra.mxu0 0.0
        %1060 = vmatprep.subr.mxu0 0.0
        %1061 = vmatpush1.msra.mxu0 0.0
        %1062 = vmatprep.subr.mxu0 0.0
        %1063 = vmatpush1.msra.mxu0 0.0
        %1064 = vmatprep.subr.mxu0 0.0
        %1065 = vmatpush1.msra.mxu0 0.0
        %1066 = vmatprep.subr.mxu0 0.0
        %1067 = vmatpush1.msra.mxu0 0.0
        %1068 = vmatprep.subr.mxu0 0.0
        %1069 = vmatpush1.msra.mxu0 0.0
        %1070 = vmatprep.subr.mxu0 0.0
        %1071 = vmatpush1.msra.mxu0 0.0
        %1072 = vmatprep.subr.mxu0 0.0
        %1073 = vmatpush1.msra.mxu0 0.0
        %1074 = vmatprep.subr.mxu0 0.0
        %1075 = vmatpush1.msra.mxu0 0.0
        %1076 = vmatprep.subr.mxu0 0.0
        %1077 = vmatpush1.msra.mxu0 0.0
        %1078 = vmatprep.mubr.f32.mxu0 0.0
        %1079 = vmatmul.mubr.f32.gmra.mrb[0].mxu0 %v934
        %v1080 = vpop.f32.mrb[0].mxu0
        %v1081 = vadd.f32 0.0, %v1080
        %v1082 = vpop.f32.mrb[0].mxu0
        %1083 = vmatprep.mubr.f32.mxu0 0.0
        %1084 = vmatmul.mubr.f32.gmra.mrb[0].mxu0 %v937
        %v1085 = vpop.f32.mrb[0].mxu0
        %v1086 = vadd.f32 0.0, %v1085
        %v1087 = vpop.f32.mrb[0].mxu0
        %1088 = vdwg.mxu0
        %1089 = vmatprep.subr.mxu0 0.0
        %1090 = vmatpush1.msra.mxu0 %v1006
        %1091 = vmatprep.subr.mxu0 0.0
        %1092 = vmatpush1.msra.mxu0 %v1011
        %1093 = vmatprep.subr.mxu0 0.0
        %1094 = vmatpush1.msra.mxu0 0.0
        %1095 = vmatprep.subr.mxu0 0.0
        %1096 = vmatpush1.msra.mxu0 0.0
        %1097 = vmatprep.subr.mxu0 0.0
        %1098 = vmatpush1.msra.mxu0 0.0
        %1099 = vmatprep.subr.mxu0 0.0
        %1100 = vmatpush1.msra.mxu0 0.0
        %1101 = vmatprep.subr.mxu0 0.0
        %1102 = vmatpush1.msra.mxu0 0.0
        %1103 = vmatprep.subr.mxu0 0.0
        %1104 = vmatpush1.msra.mxu0 0.0
        %1105 = vmatprep.subr.mxu0 0.0
        %1106 = vmatpush1.msra.mxu0 0.0
        %1107 = vmatprep.subr.mxu0 0.0
        %1108 = vmatpush1.msra.mxu0 0.0
        %1109 = vmatprep.subr.mxu0 0.0
        %1110 = vmatpush1.msra.mxu0 0.0
        %1111 = vmatprep.subr.mxu0 0.0
        %1112 = vmatpush1.msra.mxu0 0.0
        %1113 = vmatprep.subr.mxu0 0.0
        %1114 = vmatpush1.msra.mxu0 0.0
        %1115 = vmatprep.subr.mxu0 0.0
        %1116 = vmatpush1.msra.mxu0 0.0
        %1117 = vmatprep.subr.mxu0 0.0
        %1118 = vmatpush1.msra.mxu0 0.0
        %1119 = vmatprep.subr.mxu0 0.0
        %1120 = vmatpush1.msra.mxu0 0.0
        %1121 = vmatprep.subr.mxu0 0.0
        %1122 = vmatpush1.msra.mxu0 0.0
        %1123 = vmatprep.subr.mxu0 0.0
        %1124 = vmatpush1.msra.mxu0 0.0
        %1125 = vmatprep.subr.mxu0 0.0
        %1126 = vmatpush1.msra.mxu0 0.0
        %1127 = vmatprep.subr.mxu0 0.0
        %1128 = vmatpush1.msra.mxu0 0.0
        %1129 = vmatprep.subr.mxu0 0.0
        %1130 = vmatpush1.msra.mxu0 0.0
        %1131 = vmatprep.subr.mxu0 0.0
        %1132 = vmatpush1.msra.mxu0 0.0
        %1133 = vmatprep.subr.mxu0 0.0
        %1134 = vmatpush1.msra.mxu0 0.0
        %1135 = vmatprep.subr.mxu0 0.0
        %1136 = vmatpush1.msra.mxu0 0.0
        %1137 = vmatprep.subr.mxu0 0.0
        %1138 = vmatpush1.msra.mxu0 0.0
        %1139 = vmatprep.subr.mxu0 0.0
        %1140 = vmatpush1.msra.mxu0 0.0
        %1141 = vmatprep.subr.mxu0 0.0
        %1142 = vmatpush1.msra.mxu0 0.0
        %1143 = vmatprep.subr.mxu0 0.0
        %1144 = vmatpush1.msra.mxu0 0.0
        %1145 = vmatprep.subr.mxu0 0.0
        %1146 = vmatpush1.msra.mxu0 0.0
        %1147 = vmatprep.subr.mxu0 0.0
        %1148 = vmatpush1.msra.mxu0 0.0
        %1149 = vmatprep.subr.mxu0 0.0
        %1150 = vmatpush1.msra.mxu0 0.0
        %1151 = vmatprep.subr.mxu0 0.0
        %1152 = vmatpush1.msra.mxu0 0.0
        %1153 = vmatprep.mubr.f32.mxu0 0.0
        %1154 = vmatmul.mubr.f32.gmra.mrb[0].mxu0 %v580
        %v1155 = vpop.f32.mrb[0].mxu0
        %v1156 = vadd.f32 0.0, %v1155
        %v1157 = vpop.f32.mrb[0].mxu0
        %1158 = vmatprep.mubr.f32.mxu0 0.0
        %1159 = vmatmul.mubr.f32.gmra.mrb[0].mxu0 %v583
        %v1160 = vpop.f32.mrb[0].mxu0
        %v1161 = vadd.f32 0.0, %v1160
        %v1162 = vpop.f32.mrb[0].mxu0
        %1163 = vdwg.mxu0
        %1164 = vmatprep.subr.mxu0 0.0
        %1165 = vmatpush1.msra.mxu0 %v1081
        %1166 = vmatprep.subr.mxu0 0.0
        %1167 = vmatpush1.msra.mxu0 %v1086
        %1168 = vmatprep.subr.mxu0 0.0
        %1169 = vmatpush1.msra.mxu0 0.0
        %1170 = vmatprep.subr.mxu0 0.0
        %1171 = vmatpush1.msra.mxu0 0.0
        %1172 = vmatprep.subr.mxu0 0.0
        %1173 = vmatpush1.msra.mxu0 0.0
        %1174 = vmatprep.subr.mxu0 0.0
        %1175 = vmatpush1.msra.mxu0 0.0
        %1176 = vmatprep.subr.mxu0 0.0
        %1177 = vmatpush1.msra.mxu0 0.0
        %1178 = vmatprep.subr.mxu0 0.0
        %1179 = vmatpush1.msra.mxu0 0.0
        %1180 = vmatprep.subr.mxu0 0.0
        %1181 = vmatpush1.msra.mxu0 0.0
        %1182 = vmatprep.subr.mxu0 0.0
        %1183 = vmatpush1.msra.mxu0 0.0
        %1184 = vmatprep.subr.mxu0 0.0
        %1185 = vmatpush1.msra.mxu0 0.0
        %1186 = vmatprep.subr.mxu0 0.0
        %1187 = vmatpush1.msra.mxu0 0.0
        %1188 = vmatprep.subr.mxu0 0.0
        %1189 = vmatpush1.msra.mxu0 0.0
        %1190 = vmatprep.subr.mxu0 0.0
        %1191 = vmatpush1.msra.mxu0 0.0
        %1192 = vmatprep.subr.mxu0 0.0
        %1193 = vmatpush1.msra.mxu0 0.0
        %1194 = vmatprep.subr.mxu0 0.0
        %1195 = vmatpush1.msra.mxu0 0.0
        %1196 = vmatprep.subr.mxu0 0.0
        %1197 = vmatpush1.msra.mxu0 0.0
        %1198 = vmatprep.subr.mxu0 0.0
        %1199 = vmatpush1.msra.mxu0 0.0
        %1200 = vmatprep.subr.mxu0 0.0
        %1201 = vmatpush1.msra.mxu0 0.0
        %1202 = vmatprep.subr.mxu0 0.0
        %1203 = vmatpush1.msra.mxu0 0.0
        %1204 = vmatprep.subr.mxu0 0.0
        %1205 = vmatpush1.msra.mxu0 0.0
        %1206 = vmatprep.subr.mxu0 0.0
        %1207 = vmatpush1.msra.mxu0 0.0
        %1208 = vmatprep.subr.mxu0 0.0
        %1209 = vmatpush1.msra.mxu0 0.0
        %1210 = vmatprep.subr.mxu0 0.0
        %1211 = vmatpush1.msra.mxu0 0.0
        %1212 = vmatprep.subr.mxu0 0.0
        %1213 = vmatpush1.msra.mxu0 0.0
        %1214 = vmatprep.subr.mxu0 0.0
        %1215 = vmatpush1.msra.mxu0 0.0
        %1216 = vmatprep.subr.mxu0 0.0
        %1217 = vmatpush1.msra.mxu0 0.0
        %1218 = vmatprep.subr.mxu0 0.0
        %1219 = vmatpush1.msra.mxu0 0.0
        %1220 = vmatprep.subr.mxu0 0.0
        %1221 = vmatpush1.msra.mxu0 0.0
        %1222 = vmatprep.subr.mxu0 0.0
        %1223 = vmatpush1.msra.mxu0 0.0
        %1224 = vmatprep.subr.mxu0 0.0
        %1225 = vmatpush1.msra.mxu0 0.0
        %1226 = vmatprep.subr.mxu0 0.0
        %1227 = vmatpush1.msra.mxu0 0.0
        %1228 = vmatprep.mubr.f32.mxu0 0.0
        %1229 = vmatmul.mubr.f32.gmra.mrb[0].mxu0 %v661
        %v1230 = vpop.f32.mrb[0].mxu0
        %v1231 = vadd.f32 0.0, %v1230
        %v1232 = vpop.f32.mrb[0].mxu0
        %1233 = vmatprep.mubr.f32.mxu0 0.0
        %1234 = vmatmul.mubr.f32.gmra.mrb[0].mxu0 %v664
        %v1235 = vpop.f32.mrb[0].mxu0
        %v1236 = vadd.f32 0.0, %v1235
        %v1237 = vpop.f32.mrb[0].mxu0
        %1238 = vdwg.mxu0
        %v1239 = vsub.f32 %v1156, %v1231
        %v1240 = vsub.f32 %v1161, %v1236
        %s1241 = scalar_lea.vmem %s369, 16
        %1242 = vst.msk [vmem:[%s1241] sm:$0xff] %vm743, %v1239
        %1243 = vst.msk [vmem:[%s1241 + $0x8] sm:$0xff] %vm743, %v1240
        %1244 = vmatprep.subr.mxu0 0.0
        %1245 = vmatpush1.msra.mxu0 %v1006
        %1246 = vmatprep.subr.mxu0 0.0
        %1247 = vmatpush1.msra.mxu0 %v1011
        %1248 = vmatprep.subr.mxu0 0.0
        %1249 = vmatpush1.msra.mxu0 0.0
        %1250 = vmatprep.subr.mxu0 0.0
        %1251 = vmatpush1.msra.mxu0 0.0
        %1252 = vmatprep.subr.mxu0 0.0
        %1253 = vmatpush1.msra.mxu0 0.0
        %1254 = vmatprep.subr.mxu0 0.0
        %1255 = vmatpush1.msra.mxu0 0.0
        %1256 = vmatprep.subr.mxu0 0.0
        %1257 = vmatpush1.msra.mxu0 0.0
        %1258 = vmatprep.subr.mxu0 0.0
        %1259 = vmatpush1.msra.mxu0 0.0
        %1260 = vmatprep.subr.mxu0 0.0
        %1261 = vmatpush1.msra.mxu0 0.0
        %1262 = vmatprep.subr.mxu0 0.0
        %1263 = vmatpush1.msra.mxu0 0.0
        %1264 = vmatprep.subr.mxu0 0.0
        %1265 = vmatpush1.msra.mxu0 0.0
        %1266 = vmatprep.subr.mxu0 0.0
        %1267 = vmatpush1.msra.mxu0 0.0
        %1268 = vmatprep.subr.mxu0 0.0
        %1269 = vmatpush1.msra.mxu0 0.0
        %1270 = vmatprep.subr.mxu0 0.0
        %1271 = vmatpush1.msra.mxu0 0.0
        %1272 = vmatprep.subr.mxu0 0.0
        %1273 = vmatpush1.msra.mxu0 0.0
        %1274 = vmatprep.subr.mxu0 0.0
        %1275 = vmatpush1.msra.mxu0 0.0
        %1276 = vmatprep.subr.mxu0 0.0
        %1277 = vmatpush1.msra.mxu0 0.0
        %1278 = vmatprep.subr.mxu0 0.0
        %1279 = vmatpush1.msra.mxu0 0.0
        %1280 = vmatprep.subr.mxu0 0.0
        %1281 = vmatpush1.msra.mxu0 0.0
        %1282 = vmatprep.subr.mxu0 0.0
        %1283 = vmatpush1.msra.mxu0 0.0
        %1284 = vmatprep.subr.mxu0 0.0
        %1285 = vmatpush1.msra.mxu0 0.0
        %1286 = vmatprep.subr.mxu0 0.0
        %1287 = vmatpush1.msra.mxu0 0.0
        %1288 = vmatprep.subr.mxu0 0.0
        %1289 = vmatpush1.msra.mxu0 0.0
        %1290 = vmatprep.subr.mxu0 0.0
        %1291 = vmatpush1.msra.mxu0 0.0
        %1292 = vmatprep.subr.mxu0 0.0
        %1293 = vmatpush1.msra.mxu0 0.0
        %1294 = vmatprep.subr.mxu0 0.0
        %1295 = vmatpush1.msra.mxu0 0.0
        %1296 = vmatprep.subr.mxu0 0.0
        %1297 = vmatpush1.msra.mxu0 0.0
        %1298 = vmatprep.subr.mxu0 0.0
        %1299 = vmatpush1.msra.mxu0 0.0
        %1300 = vmatprep.subr.mxu0 0.0
        %1301 = vmatpush1.msra.mxu0 0.0
        %1302 = vmatprep.subr.mxu0 0.0
        %1303 = vmatpush1.msra.mxu0 0.0
        %1304 = vmatprep.subr.mxu0 0.0
        %1305 = vmatpush1.msra.mxu0 0.0
        %1306 = vmatprep.subr.mxu0 0.0
        %1307 = vmatpush1.msra.mxu0 0.0
        %1308 = vmatprep.mubr.f32.mxu0 0.0
        %1309 = vmatmul.mubr.f32.gmra.mrb[0].mxu0 %v661
        %v1310 = vpop.f32.mrb[0].mxu0
        %v1311 = vadd.f32 0.0, %v1310
        %v1312 = vpop.f32.mrb[0].mxu0
        %1313 = vmatprep.mubr.f32.mxu0 0.0
        %1314 = vmatmul.mubr.f32.gmra.mrb[0].mxu0 %v664
        %v1315 = vpop.f32.mrb[0].mxu0
        %v1316 = vadd.f32 0.0, %v1315
        %v1317 = vpop.f32.mrb[0].mxu0
        %1318 = vdwg.mxu0
        %1319 = vmatprep.subr.mxu0 0.0
        %1320 = vmatpush1.msra.mxu0 %v1081
        %1321 = vmatprep.subr.mxu0 0.0
        %1322 = vmatpush1.msra.mxu0 %v1086
        %1323 = vmatprep.subr.mxu0 0.0
        %1324 = vmatpush1.msra.mxu0 0.0
        %1325 = vmatprep.subr.mxu0 0.0
        %1326 = vmatpush1.msra.mxu0 0.0
        %1327 = vmatprep.subr.mxu0 0.0
        %1328 = vmatpush1.msra.mxu0 0.0
        %1329 = vmatprep.subr.mxu0 0.0
        %1330 = vmatpush1.msra.mxu0 0.0
        %1331 = vmatprep.subr.mxu0 0.0
        %1332 = vmatpush1.msra.mxu0 0.0
        %1333 = vmatprep.subr.mxu0 0.0
        %1334 = vmatpush1.msra.mxu0 0.0
        %1335 = vmatprep.subr.mxu0 0.0
        %1336 = vmatpush1.msra.mxu0 0.0
        %1337 = vmatprep.subr.mxu0 0.0
        %1338 = vmatpush1.msra.mxu0 0.0
        %1339 = vmatprep.subr.mxu0 0.0
        %1340 = vmatpush1.msra.mxu0 0.0
        %1341 = vmatprep.subr.mxu0 0.0
        %1342 = vmatpush1.msra.mxu0 0.0
        %1343 = vmatprep.subr.mxu0 0.0
        %1344 = vmatpush1.msra.mxu0 0.0
        %1345 = vmatprep.subr.mxu0 0.0
        %1346 = vmatpush1.msra.mxu0 0.0
        %1347 = vmatprep.subr.mxu0 0.0
        %1348 = vmatpush1.msra.mxu0 0.0
        %1349 = vmatprep.subr.mxu0 0.0
        %1350 = vmatpush1.msra.mxu0 0.0
        %1351 = vmatprep.subr.mxu0 0.0
        %1352 = vmatpush1.msra.mxu0 0.0
        %1353 = vmatprep.subr.mxu0 0.0
        %1354 = vmatpush1.msra.mxu0 0.0
        %1355 = vmatprep.subr.mxu0 0.0
        %1356 = vmatpush1.msra.mxu0 0.0
        %1357 = vmatprep.subr.mxu0 0.0
        %1358 = vmatpush1.msra.mxu0 0.0
        %1359 = vmatprep.subr.mxu0 0.0
        %1360 = vmatpush1.msra.mxu0 0.0
        %1361 = vmatprep.subr.mxu0 0.0
        %1362 = vmatpush1.msra.mxu0 0.0
        %1363 = vmatprep.subr.mxu0 0.0
        %1364 = vmatpush1.msra.mxu0 0.0
        %1365 = vmatprep.subr.mxu0 0.0
        %1366 = vmatpush1.msra.mxu0 0.0
        %1367 = vmatprep.subr.mxu0 0.0
        %1368 = vmatpush1.msra.mxu0 0.0
        %1369 = vmatprep.subr.mxu0 0.0
        %1370 = vmatpush1.msra.mxu0 0.0
        %1371 = vmatprep.subr.mxu0 0.0
        %1372 = vmatpush1.msra.mxu0 0.0
        %1373 = vmatprep.subr.mxu0 0.0
        %1374 = vmatpush1.msra.mxu0 0.0
        %1375 = vmatprep.subr.mxu0 0.0
        %1376 = vmatpush1.msra.mxu0 0.0
        %1377 = vmatprep.subr.mxu0 0.0
        %1378 = vmatpush1.msra.mxu0 0.0
        %1379 = vmatprep.subr.mxu0 0.0
        %1380 = vmatpush1.msra.mxu0 0.0
        %1381 = vmatprep.subr.mxu0 0.0
        %1382 = vmatpush1.msra.mxu0 0.0
        %1383 = vmatprep.mubr.f32.mxu0 0.0
        %1384 = vmatmul.mubr.f32.gmra.mrb[0].mxu0 %v580
        %v1385 = vpop.f32.mrb[0].mxu0
        %v1386 = vadd.f32 %v1311, %v1385
        %v1387 = vpop.f32.mrb[0].mxu0
        %1388 = vmatprep.mubr.f32.mxu0 0.0
        %1389 = vmatmul.mubr.f32.gmra.mrb[0].mxu0 %v583
        %v1390 = vpop.f32.mrb[0].mxu0
        %v1391 = vadd.f32 %v1316, %v1390
        %v1392 = vpop.f32.mrb[0].mxu0
        %1393 = vdwg.mxu0
        %s1394 = scalar_lea.vmem %s376, 16
        %1395 = vst.msk [vmem:[%s1394] sm:$0xff] %vm743, %v1386
        %1396 = vst.msk [vmem:[%s1394 + $0x8] sm:$0xff] %vm743, %v1391
        %s1397 = smul.u32 2, %s24
        %p1398 = scmp.lt.s32.totalorder %s1397, 3
        %s1399 = scalar_select %p1398, %s1397, 3
        %s1400 = smul.addr %s1399, 2
        %s1401 = smul.addr %s1400, 8
        %s1402 = scalar_lea.vmem %s6, %s1401
        %s1403 = smul.u32 2, %s24
        %p1404 = scmp.lt.s32.totalorder %s1403, 3
        %s1405 = scalar_select %p1404, %s1403, 3
        %s1406 = smul.addr %s1405, 2
        %s1407 = smul.addr %s1406, 8
        %s1408 = scalar_lea.vmem %s7, %s1407
        // Predicated region
        $region65: #{tpu_custom_call.1} parent=43 // pred_check
          %p1409 = pneg %p173
        $region66: #{tpu_custom_call.1} parent=43 // pred_check_branch
          %1411 = sbr.rel (%p1409) target = $region68
        $region67: #{tpu_custom_call.1} parent=43 // pred_region
          %s1412 = smul.u32 2, %s24
        $region68: #{tpu_custom_call.1} parent=43 // pred_fallthru
          _
        // Predicated region
        $region69: #{tpu_custom_call.1} parent=43 // pred_check
          %p1413 = pneg %p199
        $region70: #{tpu_custom_call.1} parent=43 // pred_check_branch
          %1415 = sbr.rel (%p1413) target = $region72
        $region71: #{tpu_custom_call.1} parent=43 // pred_region
          %s1416 = smul.u32 2, %s24
        $region72: #{tpu_custom_call.1} parent=43 // pred_fallthru
          _
      $region44: #{tpu_custom_call.1} parent=5 // pred_fallthru
        _
      %p1417 = scmp.le.s32.totalorder 2, %s19
      // Predicated region
      $region73: #{tpu_custom_call.1} parent=5 // pred_check
        %p1418 = pneg %p1417
      $region74: #{tpu_custom_call.1} parent=5 // pred_check_branch
        %1420 = sbr.rel (%p1418) target = $region76
      $region75: #{tpu_custom_call.1} parent=5 // pred_region
        %s1421 = ssub.s32 %s19, 2
        // Predicated region
        $region77: #{tpu_custom_call.1} parent=75 // pred_check
          %p1422 = pneg %p179
        $region78: #{tpu_custom_call.1} parent=75 // pred_check_branch
          %1424 = sbr.rel (%p1422) target = $region80
        $region79: #{tpu_custom_call.1} parent=75 // pred_region
          %s1425 = smul.u32 2, %s25
          %p1426 = scmp.lt.s32.totalorder %s1425, 3
          %s1427 = scalar_select %p1426, %s1425, 3
          %s1428 = smul.addr %s1427, 2
          %s1429 = smul.addr %s1428, 8
          %s1430 = scalar_lea.vmem %s6, %s1429
        $region80: #{tpu_custom_call.1} parent=75 // pred_fallthru
          _
        // Predicated region
        $region81: #{tpu_custom_call.1} parent=75 // pred_check
          %p1431 = pneg %p205
        $region82: #{tpu_custom_call.1} parent=75 // pred_check_branch
          %1433 = sbr.rel (%p1431) target = $region84
        $region83: #{tpu_custom_call.1} parent=75 // pred_region
          %s1434 = smul.u32 2, %s25
          %p1435 = scmp.lt.s32.totalorder %s1434, 3
          %s1436 = scalar_select %p1435, %s1434, 3
          %s1437 = smul.addr %s1436, 2
          %s1438 = smul.addr %s1437, 8
          %s1439 = scalar_lea.vmem %s7, %s1438
        $region84: #{tpu_custom_call.1} parent=75 // pred_fallthru
          _
      $region76: #{tpu_custom_call.1} parent=5 // pred_fallthru
        _
    $region6: #{tpu_custom_call.1} parent=1 // loop_footer
      %s23 = sadd.s32 1, %s19
    $region7: #{tpu_custom_call.1} parent=1 // loop_footer_branch
      %18 = sbr.rel target = $region3
    $region8: #{tpu_custom_call.1} parent=1 // loop_exit
      _
    %1440 = vsyncpa [#allocation3], 1
    %s1441 = scalar_lea.sflag [#allocation3], 1
    %1442 = vsyncpa %s1441, 1
    %1443 = vsyncpa [#allocation5], 1
    %1444 = vsyncpa [#allocation8], 1

</llo_original>
